<compile_context>
chip_gen: v7x
topology: tpu7x:2x2x1
jax: 0.10.0
libtpu: 0.0.40
codegen_flags: <defaults>
</compile_context>

<pallas_src>
import jax
import jax.numpy as jnp
from jax.experimental import pallas as pl
from jax.experimental.pallas import tpu as pltpu


def _layer_norm(x, gamma, beta, eps=1e-5):
    # Single-pass LN: E[x] and E[x*x] are independent lane reductions.
    mu = jnp.mean(x, axis=-1, keepdims=True)
    ms = jnp.mean(x * x, axis=-1, keepdims=True)
    var = jnp.maximum(ms - mu * mu, 0.0)
    return (x - mu) * jax.lax.rsqrt(var + eps) * gamma + beta


def _gelu(x):
    # TODO(synk): PyTorch nn.GELU() default is exact erf-based GELU; we use the
    # tanh approximation (== nn.GELU(approximate='tanh')) for guaranteed Mosaic
    # lowering (no erf primitive dependency).
    return jax.nn.gelu(x, approximate=True)


def ssvep_encoder_kernel(x_ref,
                         ln1g_ref, ln1b_ref,
                         convw_ref, convb_ref,
                         ln2g_ref, ln2b_ref,
                         ln3g_ref, ln3b_ref,
                         mlpwt_ref, mlpb_ref,
                         o_ref):
    TB, C, F = x_ref.shape
    KC = convw_ref.shape[1]
    K = KC // C
    PAD = (K - 1) // 2

    # ---- batch-folded (TB*C, F) slab: all row-wise ops act on it at once ----
    x = x_ref[...].reshape(TB * C, F).astype(jnp.float32)

    # ---- weights: loaded once, loop-invariant ----
    ln1g, ln1b = ln1g_ref[...], ln1b_ref[...]      # (1, F)
    ln2g, ln2b = ln2g_ref[...], ln2b_ref[...]      # (1, F)
    ln3g, ln3b = ln3g_ref[...], ln3b_ref[...]      # (1, F)
    convw = convw_ref[...]                         # (C, K*C) lane-dense im2col weight
    convb = convb_ref[...]                         # (C, 1)
    mlpwt = mlpwt_ref[...]                         # (F, F) pre-transposed (in, out)
    mlpb = mlpb_ref[...]                           # (1, F)

    # ---- hoisted conv constants (independent of x; shared by both encoder
    #      applications and all batch elements): static lane shifts and
    #      (1, F) boundary masks, at most ONE compare per tap ----
    f_idx = jax.lax.broadcasted_iota(jnp.int32, (1, F), 1)
    taps = []
    for k in range(K):
        s = k - PAD                                # tap offset in [-PAD, PAD]
        sh = (-s) % F
        if s < 0:
            m = f_idx >= -s                        # valid: f + s >= 0
        elif s > 0:
            m = f_idx < F - s                      # valid: f + s <  F
        else:
            m = None                               # center tap: no mask needed
        taps.append((sh, m))

    # SSVEPEncoder = the same encoder layer (shared weights) applied twice.
    for _ in range(2):
        # ---- CNN sub-block: LN -> Conv1d(k, 'same') -> LN -> GELU -> (+res) ----
        y = _layer_norm(x, ln1g, ln1b)                              # (TB*C, F)

        # One roll + mask per tap for the whole slab (hoisted out of the
        # per-batch loop); masks are (1, F) so they broadcast over all rows.
        rolled = []
        for sh, m in taps:
            r = y if sh == 0 else pltpu.roll(y, shift=sh, axis=1)
            rolled.append(r if m is None else jnp.where(m, r, 0.0))

        outs = []
        for b in range(TB):                                         # static loop
            # im2col columns for batch element b: (K*C, F)
            xcol = jnp.concatenate([r[b * C:(b + 1) * C] for r in rolled],
                                   axis=0)
            outs.append(jnp.dot(convw, xcol,
                                preferred_element_type=jnp.float32) + convb)
        y = jnp.concatenate(outs, axis=0)                           # (TB*C, F)
        y = _gelu(_layer_norm(y, ln2g, ln2b))
        x = x + y                                   # dropout = identity (inference)

        # ---- channel-MLP sub-block: LN -> Linear(F, F) -> GELU -> (+res) ----
        y = _layer_norm(x, ln3g, ln3b)
        y = _gelu(jnp.dot(y, mlpwt, preferred_element_type=jnp.float32) + mlpb)
        x = x + y

    # ---- write back (reshape is layout-preserving: C % 8 == 0, F % 128 == 0) ----
    o_ref[...] = x.reshape(TB, C, F).astype(o_ref.dtype)


_PARAM_ORDER = ("ln1_g", "ln1_b", "conv_w", "conv_b",
                "ln2_g", "ln2_b", "ln3_g", "ln3_b",
                "mlp_w", "mlp_b")


def _prep_params(params):
    """Host-side layout prep: lane-dense conv weight + pre-transposed MLP weight."""
    K, O, C = params["conv_w"].shape
    p = dict(params)
    # W_flat[o, k*C + c] = conv_w[k, o, c]  ->  (C, K*C), e.g. (8, 248)
    p["conv_w"] = jnp.transpose(params["conv_w"], (1, 0, 2)).reshape(O, K * C)
    # nn.Linear stores (out, in); pass (in, out) so the kernel does y @ W_t.
    p["mlp_w"] = params["mlp_w"].T
    return [p[k] for k in _PARAM_ORDER]


def _full_spec(shape):
    nd = len(shape)
    return pl.BlockSpec(shape, lambda b, _nd=nd: (0,) * _nd)


def ssvep_encoder(x, params, *, tb=None):
    B, C, F = x.shape
    if tb is None:
        # Fill the MXU sublane dimension (tb*C ~ 128) while keeping >= 2 grid
        # steps when possible (so both TensorCores get balanced work).
        tb = max(1, min(max(B // 2, 1), max(128 // C, 1)))
        while B % tb:
            tb -= 1
    assert B % tb == 0, f"batch {B} must be divisible by batch tile {tb}"
    plist = _prep_params(params)
    return pl.pallas_call(
        ssvep_encoder_kernel,
        out_shape=jax.ShapeDtypeStruct((B, C, F), x.dtype),
        grid=(B // tb,),
        in_specs=[pl.BlockSpec((tb, C, F), lambda b: (b, 0, 0))]
                 + [_full_spec(p.shape) for p in plist],
        out_specs=pl.BlockSpec((tb, C, F), lambda b: (b, 0, 0)),
        compiler_params=pltpu.CompilerParams(
            dimension_semantics=("parallel",)),
    )(x, *plist)


# ---- pure-JAX reference (same math, no Pallas) for correctness check ----
def ref_forward(x, p):
    def ln(v, g, b, eps=1e-5):
        mu = jnp.mean(v, axis=-1, keepdims=True)
        var = jnp.mean((v - mu) ** 2, axis=-1, keepdims=True)
        return (v - mu) * jax.lax.rsqrt(var + eps) * g + b

    B, C, F = x.shape
    K = p["conv_w"].shape[0]
    PAD = (K - 1) // 2
    for _ in range(2):
        y = ln(x, p["ln1_g"], p["ln1_b"])
        ypad = jnp.pad(y, ((0, 0), (0, 0), (PAD, PAD)))
        acc = jnp.zeros((B, C, F), jnp.float32)
        for k in range(K):
            acc = acc + jnp.einsum("oc,bcf->bof", p["conv_w"][k],
                                   ypad[:, :, k:k + F])
        y = acc + p["conv_b"][None]
        y = ln(y, p["ln2_g"], p["ln2_b"])
        y = jax.nn.gelu(y, approximate=True)
        x = x + y

        y = ln(x, p["ln3_g"], p["ln3_b"])
        y = jnp.einsum("bcf,of->bco", y, p["mlp_w"]) + p["mlp_b"][None]
        y = jax.nn.gelu(y, approximate=True)
        x = x + y
    return x


if __name__ == "__main__":
    B, C, F, K = 8, 8, 128, 31     # batch, tokens (=2*channels), freq bins, conv kernel
    key = jax.random.PRNGKey(0)
    ks = jax.random.split(key, 5)

    x = jax.random.normal(ks[0], (B, C, F), jnp.float32)
    params = dict(
        ln1_g=jnp.ones((1, F), jnp.float32), ln1_b=jnp.zeros((1, F), jnp.float32),
        conv_w=jax.random.normal(ks[1], (K, C, C), jnp.float32) / jnp.sqrt(C * K),
        conv_b=jax.random.normal(ks[2], (C, 1), jnp.float32) * 0.02,
        ln2_g=jnp.ones((1, F), jnp.float32), ln2_b=jnp.zeros((1, F), jnp.float32),
        ln3_g=jnp.ones((1, F), jnp.float32), ln3_b=jnp.zeros((1, F), jnp.float32),
        mlp_w=jax.random.normal(ks[3], (F, F), jnp.float32) / jnp.sqrt(F),
        mlp_b=jax.random.normal(ks[4], (1, F), jnp.float32) * 0.02,
    )

    # TB=4 -> grid of 2 steps, each step works on a (32, F) batch-folded slab.
    out = jax.block_until_ready(ssvep_encoder(x, params, tb=4))
    ref = ref_forward(x, params)

    assert out.shape == (B, C, F)
    assert jnp.allclose(out, ref, atol=2e-3, rtol=2e-3), \
        f"max abs err = {float(jnp.max(jnp.abs(out - ref)))}"
    print("KERNEL_OK")
</pallas_src>

<mosaic_0001>
module attributes {stable_mosaic.version = 11 : i64} {
  func.func @ssvep_encoder_kernel(%arg0: i32, %arg1: memref<4x8x128xf32, #tpu.memory_space<vmem>>, %arg2: memref<1x128xf32, #tpu.memory_space<vmem>>, %arg3: memref<1x128xf32, #tpu.memory_space<vmem>>, %arg4: memref<8x248xf32, #tpu.memory_space<vmem>>, %arg5: memref<8x1xf32, #tpu.memory_space<vmem>>, %arg6: memref<1x128xf32, #tpu.memory_space<vmem>>, %arg7: memref<1x128xf32, #tpu.memory_space<vmem>>, %arg8: memref<1x128xf32, #tpu.memory_space<vmem>>, %arg9: memref<1x128xf32, #tpu.memory_space<vmem>>, %arg10: memref<128x128xf32, #tpu.memory_space<vmem>>, %arg11: memref<1x128xf32, #tpu.memory_space<vmem>>, %arg12: memref<4x8x128xf32, #tpu.memory_space<vmem>>) attributes {dimension_semantics = [#tpu.dimension_semantics<parallel>], iteration_bounds = array<i64: 2>, scalar_prefetch = 0 : i64, scratch_operands = 0 : i64, tpu.core_type = #tpu.core_type<tc>, window_params = [{transform_indices = @transform_0, window_bounds = array<i64: 4, 8, 128>}, {pipeline_mode = #tpu.pipeline_mode<synchronous>, transform_indices = @transform_1, window_bounds = array<i64: 1, 128>}, {pipeline_mode = #tpu.pipeline_mode<synchronous>, transform_indices = @transform_2, window_bounds = array<i64: 1, 128>}, {pipeline_mode = #tpu.pipeline_mode<synchronous>, transform_indices = @transform_3, window_bounds = array<i64: 8, 248>}, {pipeline_mode = #tpu.pipeline_mode<synchronous>, transform_indices = @transform_4, window_bounds = array<i64: 8, 1>}, {pipeline_mode = #tpu.pipeline_mode<synchronous>, transform_indices = @transform_5, window_bounds = array<i64: 1, 128>}, {pipeline_mode = #tpu.pipeline_mode<synchronous>, transform_indices = @transform_6, window_bounds = array<i64: 1, 128>}, {pipeline_mode = #tpu.pipeline_mode<synchronous>, transform_indices = @transform_7, window_bounds = array<i64: 1, 128>}, {pipeline_mode = #tpu.pipeline_mode<synchronous>, transform_indices = @transform_8, window_bounds = array<i64: 1, 128>}, {pipeline_mode = #tpu.pipeline_mode<synchronous>, transform_indices = @transform_9, window_bounds = array<i64: 128, 128>}, {pipeline_mode = #tpu.pipeline_mode<synchronous>, transform_indices = @transform_10, window_bounds = array<i64: 1, 128>}, {transform_indices = @transform_11, window_bounds = array<i64: 4, 8, 128>}]} {
    %c0 = arith.constant 0 : index
    %c0_0 = arith.constant 0 : index
    %c0_1 = arith.constant 0 : index
    %0 = vector.load %arg1[%c0, %c0_0, %c0_1] : memref<4x8x128xf32, #tpu.memory_space<vmem>>, vector<4x8x128xf32>
    %1 = vector.shape_cast %0 : vector<4x8x128xf32> to vector<32x128xf32>
    %c0_2 = arith.constant 0 : index
    %c0_3 = arith.constant 0 : index
    %2 = vector.load %arg2[%c0_2, %c0_3] : memref<1x128xf32, #tpu.memory_space<vmem>>, vector<1x128xf32>
    %c0_4 = arith.constant 0 : index
    %c0_5 = arith.constant 0 : index
    %3 = vector.load %arg3[%c0_4, %c0_5] : memref<1x128xf32, #tpu.memory_space<vmem>>, vector<1x128xf32>
    %c0_6 = arith.constant 0 : index
    %c0_7 = arith.constant 0 : index
    %4 = vector.load %arg6[%c0_6, %c0_7] : memref<1x128xf32, #tpu.memory_space<vmem>>, vector<1x128xf32>
    %c0_8 = arith.constant 0 : index
    %c0_9 = arith.constant 0 : index
    %5 = vector.load %arg7[%c0_8, %c0_9] : memref<1x128xf32, #tpu.memory_space<vmem>>, vector<1x128xf32>
    %c0_10 = arith.constant 0 : index
    %c0_11 = arith.constant 0 : index
    %6 = vector.load %arg8[%c0_10, %c0_11] : memref<1x128xf32, #tpu.memory_space<vmem>>, vector<1x128xf32>
    %c0_12 = arith.constant 0 : index
    %c0_13 = arith.constant 0 : index
    %7 = vector.load %arg9[%c0_12, %c0_13] : memref<1x128xf32, #tpu.memory_space<vmem>>, vector<1x128xf32>
    %c0_14 = arith.constant 0 : index
    %c0_15 = arith.constant 0 : index
    %8 = vector.load %arg4[%c0_14, %c0_15] : memref<8x248xf32, #tpu.memory_space<vmem>>, vector<8x248xf32>
    %c0_16 = arith.constant 0 : index
    %c0_17 = arith.constant 0 : index
    %9 = vector.load %arg5[%c0_16, %c0_17] : memref<8x1xf32, #tpu.memory_space<vmem>>, vector<8x1xf32>
    %c0_18 = arith.constant 0 : index
    %c0_19 = arith.constant 0 : index
    %10 = vector.load %arg10[%c0_18, %c0_19] : memref<128x128xf32, #tpu.memory_space<vmem>>, vector<128x128xf32>
    %c0_20 = arith.constant 0 : index
    %c0_21 = arith.constant 0 : index
    %11 = vector.load %arg11[%c0_20, %c0_21] : memref<1x128xf32, #tpu.memory_space<vmem>>, vector<1x128xf32>
    %12 = tpu.iota {dimensions = array<i32: 1>} : vector<1x128xi32>
    %c15_i32 = arith.constant 15 : i32
    %13 = vector.broadcast %c15_i32 : i32 to vector<1x128xi32>
    %14 = arith.cmpi sge, %12, %13 : vector<1x128xi32>
    %c14_i32 = arith.constant 14 : i32
    %15 = vector.broadcast %c14_i32 : i32 to vector<1x128xi32>
    %16 = arith.cmpi sge, %12, %15 : vector<1x128xi32>
    %c13_i32 = arith.constant 13 : i32
    %17 = vector.broadcast %c13_i32 : i32 to vector<1x128xi32>
    %18 = arith.cmpi sge, %12, %17 : vector<1x128xi32>
    %c12_i32 = arith.constant 12 : i32
    %19 = vector.broadcast %c12_i32 : i32 to vector<1x128xi32>
    %20 = arith.cmpi sge, %12, %19 : vector<1x128xi32>
    %c11_i32 = arith.constant 11 : i32
    %21 = vector.broadcast %c11_i32 : i32 to vector<1x128xi32>
    %22 = arith.cmpi sge, %12, %21 : vector<1x128xi32>
    %c10_i32 = arith.constant 10 : i32
    %23 = vector.broadcast %c10_i32 : i32 to vector<1x128xi32>
    %24 = arith.cmpi sge, %12, %23 : vector<1x128xi32>
    %c9_i32 = arith.constant 9 : i32
    %25 = vector.broadcast %c9_i32 : i32 to vector<1x128xi32>
    %26 = arith.cmpi sge, %12, %25 : vector<1x128xi32>
    %c8_i32 = arith.constant 8 : i32
    %27 = vector.broadcast %c8_i32 : i32 to vector<1x128xi32>
    %28 = arith.cmpi sge, %12, %27 : vector<1x128xi32>
    %c7_i32 = arith.constant 7 : i32
    %29 = vector.broadcast %c7_i32 : i32 to vector<1x128xi32>
    %30 = arith.cmpi sge, %12, %29 : vector<1x128xi32>
    %c6_i32 = arith.constant 6 : i32
    %31 = vector.broadcast %c6_i32 : i32 to vector<1x128xi32>
    %32 = arith.cmpi sge, %12, %31 : vector<1x128xi32>
    %c5_i32 = arith.constant 5 : i32
    %33 = vector.broadcast %c5_i32 : i32 to vector<1x128xi32>
    %34 = arith.cmpi sge, %12, %33 : vector<1x128xi32>
    %c4_i32 = arith.constant 4 : i32
    %35 = vector.broadcast %c4_i32 : i32 to vector<1x128xi32>
    %36 = arith.cmpi sge, %12, %35 : vector<1x128xi32>
    %c3_i32 = arith.constant 3 : i32
    %37 = vector.broadcast %c3_i32 : i32 to vector<1x128xi32>
    %38 = arith.cmpi sge, %12, %37 : vector<1x128xi32>
    %c2_i32 = arith.constant 2 : i32
    %39 = vector.broadcast %c2_i32 : i32 to vector<1x128xi32>
    %40 = arith.cmpi sge, %12, %39 : vector<1x128xi32>
    %c1_i32 = arith.constant 1 : i32
    %41 = vector.broadcast %c1_i32 : i32 to vector<1x128xi32>
    %42 = arith.cmpi sge, %12, %41 : vector<1x128xi32>
    %c127_i32 = arith.constant 127 : i32
    %43 = vector.broadcast %c127_i32 : i32 to vector<1x128xi32>
    %44 = arith.cmpi slt, %12, %43 : vector<1x128xi32>
    %c126_i32 = arith.constant 126 : i32
    %45 = vector.broadcast %c126_i32 : i32 to vector<1x128xi32>
    %46 = arith.cmpi slt, %12, %45 : vector<1x128xi32>
    %c125_i32 = arith.constant 125 : i32
    %47 = vector.broadcast %c125_i32 : i32 to vector<1x128xi32>
    %48 = arith.cmpi slt, %12, %47 : vector<1x128xi32>
    %c124_i32 = arith.constant 124 : i32
    %49 = vector.broadcast %c124_i32 : i32 to vector<1x128xi32>
    %50 = arith.cmpi slt, %12, %49 : vector<1x128xi32>
    %c123_i32 = arith.constant 123 : i32
    %51 = vector.broadcast %c123_i32 : i32 to vector<1x128xi32>
    %52 = arith.cmpi slt, %12, %51 : vector<1x128xi32>
    %c122_i32 = arith.constant 122 : i32
    %53 = vector.broadcast %c122_i32 : i32 to vector<1x128xi32>
    %54 = arith.cmpi slt, %12, %53 : vector<1x128xi32>
    %c121_i32 = arith.constant 121 : i32
    %55 = vector.broadcast %c121_i32 : i32 to vector<1x128xi32>
    %56 = arith.cmpi slt, %12, %55 : vector<1x128xi32>
    %c120_i32 = arith.constant 120 : i32
    %57 = vector.broadcast %c120_i32 : i32 to vector<1x128xi32>
    %58 = arith.cmpi slt, %12, %57 : vector<1x128xi32>
    %c119_i32 = arith.constant 119 : i32
    %59 = vector.broadcast %c119_i32 : i32 to vector<1x128xi32>
    %60 = arith.cmpi slt, %12, %59 : vector<1x128xi32>
    %c118_i32 = arith.constant 118 : i32
    %61 = vector.broadcast %c118_i32 : i32 to vector<1x128xi32>
    %62 = arith.cmpi slt, %12, %61 : vector<1x128xi32>
    %c117_i32 = arith.constant 117 : i32
    %63 = vector.broadcast %c117_i32 : i32 to vector<1x128xi32>
    %64 = arith.cmpi slt, %12, %63 : vector<1x128xi32>
    %c116_i32 = arith.constant 116 : i32
    %65 = vector.broadcast %c116_i32 : i32 to vector<1x128xi32>
    %66 = arith.cmpi slt, %12, %65 : vector<1x128xi32>
    %c115_i32 = arith.constant 115 : i32
    %67 = vector.broadcast %c115_i32 : i32 to vector<1x128xi32>
    %68 = arith.cmpi slt, %12, %67 : vector<1x128xi32>
    %c114_i32 = arith.constant 114 : i32
    %69 = vector.broadcast %c114_i32 : i32 to vector<1x128xi32>
    %70 = arith.cmpi slt, %12, %69 : vector<1x128xi32>
    %c113_i32 = arith.constant 113 : i32
    %71 = vector.broadcast %c113_i32 : i32 to vector<1x128xi32>
    %72 = arith.cmpi slt, %12, %71 : vector<1x128xi32>
    %cst = arith.constant dense<0.000000e+00> : vector<32xf32>
    %73 = vector.multi_reduction <add>, %1, %cst [1] : vector<32x128xf32> to vector<32xf32>
    %74 = vector.shape_cast %73 : vector<32xf32> to vector<32x1xf32>
    %cst_22 = arith.constant 1.280000e+02 : f32
    %75 = vector.broadcast %cst_22 : f32 to vector<32x1xf32>
    %76 = arith.divf %74, %75 : vector<32x1xf32>
    %77 = arith.mulf %1, %1 : vector<32x128xf32>
    %cst_23 = arith.constant dense<0.000000e+00> : vector<32xf32>
    %78 = vector.multi_reduction <add>, %77, %cst_23 [1] : vector<32x128xf32> to vector<32xf32>
    %79 = vector.shape_cast %78 : vector<32xf32> to vector<32x1xf32>
    %cst_24 = arith.constant 1.280000e+02 : f32
    %80 = vector.broadcast %cst_24 : f32 to vector<32x1xf32>
    %81 = arith.divf %79, %80 : vector<32x1xf32>
    %82 = arith.mulf %76, %76 : vector<32x1xf32>
    %83 = arith.subf %81, %82 : vector<32x1xf32>
    %cst_25 = arith.constant 0.000000e+00 : f32
    %84 = vector.broadcast %cst_25 : f32 to vector<32x1xf32>
    %85 = arith.maximumf %83, %84 : vector<32x1xf32>
    %86 = vector.broadcast %76 : vector<32x1xf32> to vector<32x128xf32>
    %87 = arith.subf %1, %86 : vector<32x128xf32>
    %cst_26 = arith.constant 9.99999974E-6 : f32
    %88 = vector.broadcast %cst_26 : f32 to vector<32x1xf32>
    %89 = arith.addf %85, %88 : vector<32x1xf32>
    %90 = math.rsqrt %89 : vector<32x1xf32>
    %91 = vector.broadcast %90 : vector<32x1xf32> to vector<32x128xf32>
    %92 = arith.mulf %87, %91 : vector<32x128xf32>
    %93 = vector.broadcast %2 : vector<1x128xf32> to vector<32x128xf32>
    %94 = arith.mulf %92, %93 : vector<32x128xf32>
    %95 = vector.broadcast %3 : vector<1x128xf32> to vector<32x128xf32>
    %96 = arith.addf %94, %95 : vector<32x128xf32>
    %c15_i32_27 = arith.constant 15 : i32
    %97 = tpu.dynamic_rotate %96 by %c15_i32_27 dim 1 : vector<32x128xf32>, i32 -> vector<32x128xf32>
    %cst_28 = arith.constant 0.000000e+00 : f32
    %98 = vector.shape_cast %14 : vector<1x128xi1> to vector<1x128xi1>
    %99 = vector.broadcast %98 : vector<1x128xi1> to vector<32x128xi1>
    %100 = vector.broadcast %cst_28 : f32 to vector<32x128xf32>
    %101 = arith.select %99, %97, %100 : vector<32x128xi1>, vector<32x128xf32>
    %c14_i32_29 = arith.constant 14 : i32
    %102 = tpu.dynamic_rotate %96 by %c14_i32_29 dim 1 : vector<32x128xf32>, i32 -> vector<32x128xf32>
    %cst_30 = arith.constant 0.000000e+00 : f32
    %103 = vector.shape_cast %16 : vector<1x128xi1> to vector<1x128xi1>
    %104 = vector.broadcast %103 : vector<1x128xi1> to vector<32x128xi1>
    %105 = vector.broadcast %cst_30 : f32 to vector<32x128xf32>
    %106 = arith.select %104, %102, %105 : vector<32x128xi1>, vector<32x128xf32>
    %c13_i32_31 = arith.constant 13 : i32
    %107 = tpu.dynamic_rotate %96 by %c13_i32_31 dim 1 : vector<32x128xf32>, i32 -> vector<32x128xf32>
    %cst_32 = arith.constant 0.000000e+00 : f32
    %108 = vector.shape_cast %18 : vector<1x128xi1> to vector<1x128xi1>
    %109 = vector.broadcast %108 : vector<1x128xi1> to vector<32x128xi1>
    %110 = vector.broadcast %cst_32 : f32 to vector<32x128xf32>
    %111 = arith.select %109, %107, %110 : vector<32x128xi1>, vector<32x128xf32>
    %c12_i32_33 = arith.constant 12 : i32
    %112 = tpu.dynamic_rotate %96 by %c12_i32_33 dim 1 : vector<32x128xf32>, i32 -> vector<32x128xf32>
    %cst_34 = arith.constant 0.000000e+00 : f32
    %113 = vector.shape_cast %20 : vector<1x128xi1> to vector<1x128xi1>
    %114 = vector.broadcast %113 : vector<1x128xi1> to vector<32x128xi1>
    %115 = vector.broadcast %cst_34 : f32 to vector<32x128xf32>
    %116 = arith.select %114, %112, %115 : vector<32x128xi1>, vector<32x128xf32>
    %c11_i32_35 = arith.constant 11 : i32
    %117 = tpu.dynamic_rotate %96 by %c11_i32_35 dim 1 : vector<32x128xf32>, i32 -> vector<32x128xf32>
    %cst_36 = arith.constant 0.000000e+00 : f32
    %118 = vector.shape_cast %22 : vector<1x128xi1> to vector<1x128xi1>
    %119 = vector.broadcast %118 : vector<1x128xi1> to vector<32x128xi1>
    %120 = vector.broadcast %cst_36 : f32 to vector<32x128xf32>
    %121 = arith.select %119, %117, %120 : vector<32x128xi1>, vector<32x128xf32>
    %c10_i32_37 = arith.constant 10 : i32
    %122 = tpu.dynamic_rotate %96 by %c10_i32_37 dim 1 : vector<32x128xf32>, i32 -> vector<32x128xf32>
    %cst_38 = arith.constant 0.000000e+00 : f32
    %123 = vector.shape_cast %24 : vector<1x128xi1> to vector<1x128xi1>
    %124 = vector.broadcast %123 : vector<1x128xi1> to vector<32x128xi1>
    %125 = vector.broadcast %cst_38 : f32 to vector<32x128xf32>
    %126 = arith.select %124, %122, %125 : vector<32x128xi1>, vector<32x128xf32>
    %c9_i32_39 = arith.constant 9 : i32
    %127 = tpu.dynamic_rotate %96 by %c9_i32_39 dim 1 : vector<32x128xf32>, i32 -> vector<32x128xf32>
    %cst_40 = arith.constant 0.000000e+00 : f32
    %128 = vector.shape_cast %26 : vector<1x128xi1> to vector<1x128xi1>
    %129 = vector.broadcast %128 : vector<1x128xi1> to vector<32x128xi1>
    %130 = vector.broadcast %cst_40 : f32 to vector<32x128xf32>
    %131 = arith.select %129, %127, %130 : vector<32x128xi1>, vector<32x128xf32>
    %c8_i32_41 = arith.constant 8 : i32
    %132 = tpu.dynamic_rotate %96 by %c8_i32_41 dim 1 : vector<32x128xf32>, i32 -> vector<32x128xf32>
    %cst_42 = arith.constant 0.000000e+00 : f32
    %133 = vector.shape_cast %28 : vector<1x128xi1> to vector<1x128xi1>
    %134 = vector.broadcast %133 : vector<1x128xi1> to vector<32x128xi1>
    %135 = vector.broadcast %cst_42 : f32 to vector<32x128xf32>
    %136 = arith.select %134, %132, %135 : vector<32x128xi1>, vector<32x128xf32>
    %c7_i32_43 = arith.constant 7 : i32
    %137 = tpu.dynamic_rotate %96 by %c7_i32_43 dim 1 : vector<32x128xf32>, i32 -> vector<32x128xf32>
    %cst_44 = arith.constant 0.000000e+00 : f32
    %138 = vector.shape_cast %30 : vector<1x128xi1> to vector<1x128xi1>
    %139 = vector.broadcast %138 : vector<1x128xi1> to vector<32x128xi1>
    %140 = vector.broadcast %cst_44 : f32 to vector<32x128xf32>
    %141 = arith.select %139, %137, %140 : vector<32x128xi1>, vector<32x128xf32>
    %c6_i32_45 = arith.constant 6 : i32
    %142 = tpu.dynamic_rotate %96 by %c6_i32_45 dim 1 : vector<32x128xf32>, i32 -> vector<32x128xf32>
    %cst_46 = arith.constant 0.000000e+00 : f32
    %143 = vector.shape_cast %32 : vector<1x128xi1> to vector<1x128xi1>
    %144 = vector.broadcast %143 : vector<1x128xi1> to vector<32x128xi1>
    %145 = vector.broadcast %cst_46 : f32 to vector<32x128xf32>
    %146 = arith.select %144, %142, %145 : vector<32x128xi1>, vector<32x128xf32>
    %c5_i32_47 = arith.constant 5 : i32
    %147 = tpu.dynamic_rotate %96 by %c5_i32_47 dim 1 : vector<32x128xf32>, i32 -> vector<32x128xf32>
    %cst_48 = arith.constant 0.000000e+00 : f32
    %148 = vector.shape_cast %34 : vector<1x128xi1> to vector<1x128xi1>
    %149 = vector.broadcast %148 : vector<1x128xi1> to vector<32x128xi1>
    %150 = vector.broadcast %cst_48 : f32 to vector<32x128xf32>
    %151 = arith.select %149, %147, %150 : vector<32x128xi1>, vector<32x128xf32>
    %c4_i32_49 = arith.constant 4 : i32
    %152 = tpu.dynamic_rotate %96 by %c4_i32_49 dim 1 : vector<32x128xf32>, i32 -> vector<32x128xf32>
    %cst_50 = arith.constant 0.000000e+00 : f32
    %153 = vector.shape_cast %36 : vector<1x128xi1> to vector<1x128xi1>
    %154 = vector.broadcast %153 : vector<1x128xi1> to vector<32x128xi1>
    %155 = vector.broadcast %cst_50 : f32 to vector<32x128xf32>
    %156 = arith.select %154, %152, %155 : vector<32x128xi1>, vector<32x128xf32>
    %c3_i32_51 = arith.constant 3 : i32
    %157 = tpu.dynamic_rotate %96 by %c3_i32_51 dim 1 : vector<32x128xf32>, i32 -> vector<32x128xf32>
    %cst_52 = arith.constant 0.000000e+00 : f32
    %158 = vector.shape_cast %38 : vector<1x128xi1> to vector<1x128xi1>
    %159 = vector.broadcast %158 : vector<1x128xi1> to vector<32x128xi1>
    %160 = vector.broadcast %cst_52 : f32 to vector<32x128xf32>
    %161 = arith.select %159, %157, %160 : vector<32x128xi1>, vector<32x128xf32>
    %c2_i32_53 = arith.constant 2 : i32
    %162 = tpu.dynamic_rotate %96 by %c2_i32_53 dim 1 : vector<32x128xf32>, i32 -> vector<32x128xf32>
    %cst_54 = arith.constant 0.000000e+00 : f32
    %163 = vector.shape_cast %40 : vector<1x128xi1> to vector<1x128xi1>
    %164 = vector.broadcast %163 : vector<1x128xi1> to vector<32x128xi1>
    %165 = vector.broadcast %cst_54 : f32 to vector<32x128xf32>
    %166 = arith.select %164, %162, %165 : vector<32x128xi1>, vector<32x128xf32>
    %c1_i32_55 = arith.constant 1 : i32
    %167 = tpu.dynamic_rotate %96 by %c1_i32_55 dim 1 : vector<32x128xf32>, i32 -> vector<32x128xf32>
    %cst_56 = arith.constant 0.000000e+00 : f32
    %168 = vector.shape_cast %42 : vector<1x128xi1> to vector<1x128xi1>
    %169 = vector.broadcast %168 : vector<1x128xi1> to vector<32x128xi1>
    %170 = vector.broadcast %cst_56 : f32 to vector<32x128xf32>
    %171 = arith.select %169, %167, %170 : vector<32x128xi1>, vector<32x128xf32>
    %c127_i32_57 = arith.constant 127 : i32
    %172 = tpu.dynamic_rotate %96 by %c127_i32_57 dim 1 : vector<32x128xf32>, i32 -> vector<32x128xf32>
    %cst_58 = arith.constant 0.000000e+00 : f32
    %173 = vector.shape_cast %44 : vector<1x128xi1> to vector<1x128xi1>
    %174 = vector.broadcast %173 : vector<1x128xi1> to vector<32x128xi1>
    %175 = vector.broadcast %cst_58 : f32 to vector<32x128xf32>
    %176 = arith.select %174, %172, %175 : vector<32x128xi1>, vector<32x128xf32>
    %c126_i32_59 = arith.constant 126 : i32
    %177 = tpu.dynamic_rotate %96 by %c126_i32_59 dim 1 : vector<32x128xf32>, i32 -> vector<32x128xf32>
    %cst_60 = arith.constant 0.000000e+00 : f32
    %178 = vector.shape_cast %46 : vector<1x128xi1> to vector<1x128xi1>
    %179 = vector.broadcast %178 : vector<1x128xi1> to vector<32x128xi1>
    %180 = vector.broadcast %cst_60 : f32 to vector<32x128xf32>
    %181 = arith.select %179, %177, %180 : vector<32x128xi1>, vector<32x128xf32>
    %c125_i32_61 = arith.constant 125 : i32
    %182 = tpu.dynamic_rotate %96 by %c125_i32_61 dim 1 : vector<32x128xf32>, i32 -> vector<32x128xf32>
    %cst_62 = arith.constant 0.000000e+00 : f32
    %183 = vector.shape_cast %48 : vector<1x128xi1> to vector<1x128xi1>
    %184 = vector.broadcast %183 : vector<1x128xi1> to vector<32x128xi1>
    %185 = vector.broadcast %cst_62 : f32 to vector<32x128xf32>
    %186 = arith.select %184, %182, %185 : vector<32x128xi1>, vector<32x128xf32>
    %c124_i32_63 = arith.constant 124 : i32
    %187 = tpu.dynamic_rotate %96 by %c124_i32_63 dim 1 : vector<32x128xf32>, i32 -> vector<32x128xf32>
    %cst_64 = arith.constant 0.000000e+00 : f32
    %188 = vector.shape_cast %50 : vector<1x128xi1> to vector<1x128xi1>
    %189 = vector.broadcast %188 : vector<1x128xi1> to vector<32x128xi1>
    %190 = vector.broadcast %cst_64 : f32 to vector<32x128xf32>
    %191 = arith.select %189, %187, %190 : vector<32x128xi1>, vector<32x128xf32>
    %c123_i32_65 = arith.constant 123 : i32
    %192 = tpu.dynamic_rotate %96 by %c123_i32_65 dim 1 : vector<32x128xf32>, i32 -> vector<32x128xf32>
    %cst_66 = arith.constant 0.000000e+00 : f32
    %193 = vector.shape_cast %52 : vector<1x128xi1> to vector<1x128xi1>
    %194 = vector.broadcast %193 : vector<1x128xi1> to vector<32x128xi1>
    %195 = vector.broadcast %cst_66 : f32 to vector<32x128xf32>
    %196 = arith.select %194, %192, %195 : vector<32x128xi1>, vector<32x128xf32>
    %c122_i32_67 = arith.constant 122 : i32
    %197 = tpu.dynamic_rotate %96 by %c122_i32_67 dim 1 : vector<32x128xf32>, i32 -> vector<32x128xf32>
    %cst_68 = arith.constant 0.000000e+00 : f32
    %198 = vector.shape_cast %54 : vector<1x128xi1> to vector<1x128xi1>
    %199 = vector.broadcast %198 : vector<1x128xi1> to vector<32x128xi1>
    %200 = vector.broadcast %cst_68 : f32 to vector<32x128xf32>
    %201 = arith.select %199, %197, %200 : vector<32x128xi1>, vector<32x128xf32>
    %c121_i32_69 = arith.constant 121 : i32
    %202 = tpu.dynamic_rotate %96 by %c121_i32_69 dim 1 : vector<32x128xf32>, i32 -> vector<32x128xf32>
    %cst_70 = arith.constant 0.000000e+00 : f32
    %203 = vector.shape_cast %56 : vector<1x128xi1> to vector<1x128xi1>
    %204 = vector.broadcast %203 : vector<1x128xi1> to vector<32x128xi1>
    %205 = vector.broadcast %cst_70 : f32 to vector<32x128xf32>
    %206 = arith.select %204, %202, %205 : vector<32x128xi1>, vector<32x128xf32>
    %c120_i32_71 = arith.constant 120 : i32
    %207 = tpu.dynamic_rotate %96 by %c120_i32_71 dim 1 : vector<32x128xf32>, i32 -> vector<32x128xf32>
    %cst_72 = arith.constant 0.000000e+00 : f32
    %208 = vector.shape_cast %58 : vector<1x128xi1> to vector<1x128xi1>
    %209 = vector.broadcast %208 : vector<1x128xi1> to vector<32x128xi1>
    %210 = vector.broadcast %cst_72 : f32 to vector<32x128xf32>
    %211 = arith.select %209, %207, %210 : vector<32x128xi1>, vector<32x128xf32>
    %c119_i32_73 = arith.constant 119 : i32
    %212 = tpu.dynamic_rotate %96 by %c119_i32_73 dim 1 : vector<32x128xf32>, i32 -> vector<32x128xf32>
    %cst_74 = arith.constant 0.000000e+00 : f32
    %213 = vector.shape_cast %60 : vector<1x128xi1> to vector<1x128xi1>
    %214 = vector.broadcast %213 : vector<1x128xi1> to vector<32x128xi1>
    %215 = vector.broadcast %cst_74 : f32 to vector<32x128xf32>
    %216 = arith.select %214, %212, %215 : vector<32x128xi1>, vector<32x128xf32>
    %c118_i32_75 = arith.constant 118 : i32
    %217 = tpu.dynamic_rotate %96 by %c118_i32_75 dim 1 : vector<32x128xf32>, i32 -> vector<32x128xf32>
    %cst_76 = arith.constant 0.000000e+00 : f32
    %218 = vector.shape_cast %62 : vector<1x128xi1> to vector<1x128xi1>
    %219 = vector.broadcast %218 : vector<1x128xi1> to vector<32x128xi1>
    %220 = vector.broadcast %cst_76 : f32 to vector<32x128xf32>
    %221 = arith.select %219, %217, %220 : vector<32x128xi1>, vector<32x128xf32>
    %c117_i32_77 = arith.constant 117 : i32
    %222 = tpu.dynamic_rotate %96 by %c117_i32_77 dim 1 : vector<32x128xf32>, i32 -> vector<32x128xf32>
    %cst_78 = arith.constant 0.000000e+00 : f32
    %223 = vector.shape_cast %64 : vector<1x128xi1> to vector<1x128xi1>
    %224 = vector.broadcast %223 : vector<1x128xi1> to vector<32x128xi1>
    %225 = vector.broadcast %cst_78 : f32 to vector<32x128xf32>
    %226 = arith.select %224, %222, %225 : vector<32x128xi1>, vector<32x128xf32>
    %c116_i32_79 = arith.constant 116 : i32
    %227 = tpu.dynamic_rotate %96 by %c116_i32_79 dim 1 : vector<32x128xf32>, i32 -> vector<32x128xf32>
    %cst_80 = arith.constant 0.000000e+00 : f32
    %228 = vector.shape_cast %66 : vector<1x128xi1> to vector<1x128xi1>
    %229 = vector.broadcast %228 : vector<1x128xi1> to vector<32x128xi1>
    %230 = vector.broadcast %cst_80 : f32 to vector<32x128xf32>
    %231 = arith.select %229, %227, %230 : vector<32x128xi1>, vector<32x128xf32>
    %c115_i32_81 = arith.constant 115 : i32
    %232 = tpu.dynamic_rotate %96 by %c115_i32_81 dim 1 : vector<32x128xf32>, i32 -> vector<32x128xf32>
    %cst_82 = arith.constant 0.000000e+00 : f32
    %233 = vector.shape_cast %68 : vector<1x128xi1> to vector<1x128xi1>
    %234 = vector.broadcast %233 : vector<1x128xi1> to vector<32x128xi1>
    %235 = vector.broadcast %cst_82 : f32 to vector<32x128xf32>
    %236 = arith.select %234, %232, %235 : vector<32x128xi1>, vector<32x128xf32>
    %c114_i32_83 = arith.constant 114 : i32
    %237 = tpu.dynamic_rotate %96 by %c114_i32_83 dim 1 : vector<32x128xf32>, i32 -> vector<32x128xf32>
    %cst_84 = arith.constant 0.000000e+00 : f32
    %238 = vector.shape_cast %70 : vector<1x128xi1> to vector<1x128xi1>
    %239 = vector.broadcast %238 : vector<1x128xi1> to vector<32x128xi1>
    %240 = vector.broadcast %cst_84 : f32 to vector<32x128xf32>
    %241 = arith.select %239, %237, %240 : vector<32x128xi1>, vector<32x128xf32>
    %c113_i32_85 = arith.constant 113 : i32
    %242 = tpu.dynamic_rotate %96 by %c113_i32_85 dim 1 : vector<32x128xf32>, i32 -> vector<32x128xf32>
    %cst_86 = arith.constant 0.000000e+00 : f32
    %243 = vector.shape_cast %72 : vector<1x128xi1> to vector<1x128xi1>
    %244 = vector.broadcast %243 : vector<1x128xi1> to vector<32x128xi1>
    %245 = vector.broadcast %cst_86 : f32 to vector<32x128xf32>
    %246 = arith.select %244, %242, %245 : vector<32x128xi1>, vector<32x128xf32>
    %247 = vector.extract_strided_slice %101 {offsets = [0, 0], sizes = [8, 128], strides = [1, 1]} : vector<32x128xf32> to vector<8x128xf32>
    %248 = vector.extract_strided_slice %106 {offsets = [0, 0], sizes = [8, 128], strides = [1, 1]} : vector<32x128xf32> to vector<8x128xf32>
    %249 = vector.extract_strided_slice %111 {offsets = [0, 0], sizes = [8, 128], strides = [1, 1]} : vector<32x128xf32> to vector<8x128xf32>
    %250 = vector.extract_strided_slice %116 {offsets = [0, 0], sizes = [8, 128], strides = [1, 1]} : vector<32x128xf32> to vector<8x128xf32>
    %251 = vector.extract_strided_slice %121 {offsets = [0, 0], sizes = [8, 128], strides = [1, 1]} : vector<32x128xf32> to vector<8x128xf32>
    %252 = vector.extract_strided_slice %126 {offsets = [0, 0], sizes = [8, 128], strides = [1, 1]} : vector<32x128xf32> to vector<8x128xf32>
    %253 = vector.extract_strided_slice %131 {offsets = [0, 0], sizes = [8, 128], strides = [1, 1]} : vector<32x128xf32> to vector<8x128xf32>
    %254 = vector.extract_strided_slice %136 {offsets = [0, 0], sizes = [8, 128], strides = [1, 1]} : vector<32x128xf32> to vector<8x128xf32>
    %255 = vector.extract_strided_slice %141 {offsets = [0, 0], sizes = [8, 128], strides = [1, 1]} : vector<32x128xf32> to vector<8x128xf32>
    %256 = vector.extract_strided_slice %146 {offsets = [0, 0], sizes = [8, 128], strides = [1, 1]} : vector<32x128xf32> to vector<8x128xf32>
    %257 = vector.extract_strided_slice %151 {offsets = [0, 0], sizes = [8, 128], strides = [1, 1]} : vector<32x128xf32> to vector<8x128xf32>
    %258 = vector.extract_strided_slice %156 {offsets = [0, 0], sizes = [8, 128], strides = [1, 1]} : vector<32x128xf32> to vector<8x128xf32>
    %259 = vector.extract_strided_slice %161 {offsets = [0, 0], sizes = [8, 128], strides = [1, 1]} : vector<32x128xf32> to vector<8x128xf32>
    %260 = vector.extract_strided_slice %166 {offsets = [0, 0], sizes = [8, 128], strides = [1, 1]} : vector<32x128xf32> to vector<8x128xf32>
    %261 = vector.extract_strided_slice %171 {offsets = [0, 0], sizes = [8, 128], strides = [1, 1]} : vector<32x128xf32> to vector<8x128xf32>
    %262 = vector.extract_strided_slice %96 {offsets = [0, 0], sizes = [8, 128], strides = [1, 1]} : vector<32x128xf32> to vector<8x128xf32>
    %263 = vector.extract_strided_slice %176 {offsets = [0, 0], sizes = [8, 128], strides = [1, 1]} : vector<32x128xf32> to vector<8x128xf32>
    %264 = vector.extract_strided_slice %181 {offsets = [0, 0], sizes = [8, 128], strides = [1, 1]} : vector<32x128xf32> to vector<8x128xf32>
    %265 = vector.extract_strided_slice %186 {offsets = [0, 0], sizes = [8, 128], strides = [1, 1]} : vector<32x128xf32> to vector<8x128xf32>
    %266 = vector.extract_strided_slice %191 {offsets = [0, 0], sizes = [8, 128], strides = [1, 1]} : vector<32x128xf32> to vector<8x128xf32>
    %267 = vector.extract_strided_slice %196 {offsets = [0, 0], sizes = [8, 128], strides = [1, 1]} : vector<32x128xf32> to vector<8x128xf32>
    %268 = vector.extract_strided_slice %201 {offsets = [0, 0], sizes = [8, 128], strides = [1, 1]} : vector<32x128xf32> to vector<8x128xf32>
    %269 = vector.extract_strided_slice %206 {offsets = [0, 0], sizes = [8, 128], strides = [1, 1]} : vector<32x128xf32> to vector<8x128xf32>
    %270 = vector.extract_strided_slice %211 {offsets = [0, 0], sizes = [8, 128], strides = [1, 1]} : vector<32x128xf32> to vector<8x128xf32>
    %271 = vector.extract_strided_slice %216 {offsets = [0, 0], sizes = [8, 128], strides = [1, 1]} : vector<32x128xf32> to vector<8x128xf32>
    %272 = vector.extract_strided_slice %221 {offsets = [0, 0], sizes = [8, 128], strides = [1, 1]} : vector<32x128xf32> to vector<8x128xf32>
    %273 = vector.extract_strided_slice %226 {offsets = [0, 0], sizes = [8, 128], strides = [1, 1]} : vector<32x128xf32> to vector<8x128xf32>
    %274 = vector.extract_strided_slice %231 {offsets = [0, 0], sizes = [8, 128], strides = [1, 1]} : vector<32x128xf32> to vector<8x128xf32>
    %275 = vector.extract_strided_slice %236 {offsets = [0, 0], sizes = [8, 128], strides = [1, 1]} : vector<32x128xf32> to vector<8x128xf32>
    %276 = vector.extract_strided_slice %241 {offsets = [0, 0], sizes = [8, 128], strides = [1, 1]} : vector<32x128xf32> to vector<8x128xf32>
    %277 = vector.extract_strided_slice %246 {offsets = [0, 0], sizes = [8, 128], strides = [1, 1]} : vector<32x128xf32> to vector<8x128xf32>
    %278 = tpu.concatenate %247, %248, %249, %250, %251, %252, %253, %254, %255, %256, %257, %258, %259, %260, %261, %262 in 0 : vector<8x128xf32>, vector<8x128xf32>, vector<8x128xf32>, vector<8x128xf32>, vector<8x128xf32>, vector<8x128xf32>, vector<8x128xf32>, vector<8x128xf32>, vector<8x128xf32>, vector<8x128xf32>, vector<8x128xf32>, vector<8x128xf32>, vector<8x128xf32>, vector<8x128xf32>, vector<8x128xf32>, vector<8x128xf32> -> vector<128x128xf32>
    %279 = tpu.concatenate %263, %264, %265, %266, %267, %268, %269, %270, %271, %272, %273, %274, %275, %276, %277 in 0 : vector<8x128xf32>, vector<8x128xf32>, vector<8x128xf32>, vector<8x128xf32>, vector<8x128xf32>, vector<8x128xf32>, vector<8x128xf32>, vector<8x128xf32>, vector<8x128xf32>, vector<8x128xf32>, vector<8x128xf32>, vector<8x128xf32>, vector<8x128xf32>, vector<8x128xf32>, vector<8x128xf32> -> vector<120x128xf32>
    %280 = tpu.concatenate %278, %279 in 0 : vector<128x128xf32>, vector<120x128xf32> -> vector<248x128xf32>
    %cst_87 = arith.constant dense<0.000000e+00> : vector<8x128xf32>
    %281 = tpu.matmul %8, %280, %cst_87 {dimension_numbers = #tpu.dot_dimension_numbers<[1], [0], [0], [1], [0, 0, 1, 1], [], []>} : vector<8x248xf32>, vector<248x128xf32>, vector<8x128xf32> -> vector<8x128xf32>
    %282 = vector.broadcast %9 : vector<8x1xf32> to vector<8x128xf32>
    %283 = arith.addf %281, %282 : vector<8x128xf32>
    %284 = vector.extract_strided_slice %101 {offsets = [8, 0], sizes = [8, 128], strides = [1, 1]} : vector<32x128xf32> to vector<8x128xf32>
    %285 = vector.extract_strided_slice %106 {offsets = [8, 0], sizes = [8, 128], strides = [1, 1]} : vector<32x128xf32> to vector<8x128xf32>
    %286 = vector.extract_strided_slice %111 {offsets = [8, 0], sizes = [8, 128], strides = [1, 1]} : vector<32x128xf32> to vector<8x128xf32>
    %287 = vector.extract_strided_slice %116 {offsets = [8, 0], sizes = [8, 128], strides = [1, 1]} : vector<32x128xf32> to vector<8x128xf32>
    %288 = vector.extract_strided_slice %121 {offsets = [8, 0], sizes = [8, 128], strides = [1, 1]} : vector<32x128xf32> to vector<8x128xf32>
    %289 = vector.extract_strided_slice %126 {offsets = [8, 0], sizes = [8, 128], strides = [1, 1]} : vector<32x128xf32> to vector<8x128xf32>
    %290 = vector.extract_strided_slice %131 {offsets = [8, 0], sizes = [8, 128], strides = [1, 1]} : vector<32x128xf32> to vector<8x128xf32>
    %291 = vector.extract_strided_slice %136 {offsets = [8, 0], sizes = [8, 128], strides = [1, 1]} : vector<32x128xf32> to vector<8x128xf32>
    %292 = vector.extract_strided_slice %141 {offsets = [8, 0], sizes = [8, 128], strides = [1, 1]} : vector<32x128xf32> to vector<8x128xf32>
    %293 = vector.extract_strided_slice %146 {offsets = [8, 0], sizes = [8, 128], strides = [1, 1]} : vector<32x128xf32> to vector<8x128xf32>
    %294 = vector.extract_strided_slice %151 {offsets = [8, 0], sizes = [8, 128], strides = [1, 1]} : vector<32x128xf32> to vector<8x128xf32>
    %295 = vector.extract_strided_slice %156 {offsets = [8, 0], sizes = [8, 128], strides = [1, 1]} : vector<32x128xf32> to vector<8x128xf32>
    %296 = vector.extract_strided_slice %161 {offsets = [8, 0], sizes = [8, 128], strides = [1, 1]} : vector<32x128xf32> to vector<8x128xf32>
    %297 = vector.extract_strided_slice %166 {offsets = [8, 0], sizes = [8, 128], strides = [1, 1]} : vector<32x128xf32> to vector<8x128xf32>
    %298 = vector.extract_strided_slice %171 {offsets = [8, 0], sizes = [8, 128], strides = [1, 1]} : vector<32x128xf32> to vector<8x128xf32>
    %299 = vector.extract_strided_slice %96 {offsets = [8, 0], sizes = [8, 128], strides = [1, 1]} : vector<32x128xf32> to vector<8x128xf32>
    %300 = vector.extract_strided_slice %176 {offsets = [8, 0], sizes = [8, 128], strides = [1, 1]} : vector<32x128xf32> to vector<8x128xf32>
    %301 = vector.extract_strided_slice %181 {offsets = [8, 0], sizes = [8, 128], strides = [1, 1]} : vector<32x128xf32> to vector<8x128xf32>
    %302 = vector.extract_strided_slice %186 {offsets = [8, 0], sizes = [8, 128], strides = [1, 1]} : vector<32x128xf32> to vector<8x128xf32>
    %303 = vector.extract_strided_slice %191 {offsets = [8, 0], sizes = [8, 128], strides = [1, 1]} : vector<32x128xf32> to vector<8x128xf32>
    %304 = vector.extract_strided_slice %196 {offsets = [8, 0], sizes = [8, 128], strides = [1, 1]} : vector<32x128xf32> to vector<8x128xf32>
    %305 = vector.extract_strided_slice %201 {offsets = [8, 0], sizes = [8, 128], strides = [1, 1]} : vector<32x128xf32> to vector<8x128xf32>
    %306 = vector.extract_strided_slice %206 {offsets = [8, 0], sizes = [8, 128], strides = [1, 1]} : vector<32x128xf32> to vector<8x128xf32>
    %307 = vector.extract_strided_slice %211 {offsets = [8, 0], sizes = [8, 128], strides = [1, 1]} : vector<32x128xf32> to vector<8x128xf32>
    %308 = vector.extract_strided_slice %216 {offsets = [8, 0], sizes = [8, 128], strides = [1, 1]} : vector<32x128xf32> to vector<8x128xf32>
    %309 = vector.extract_strided_slice %221 {offsets = [8, 0], sizes = [8, 128], strides = [1, 1]} : vector<32x128xf32> to vector<8x128xf32>
    %310 = vector.extract_strided_slice %226 {offsets = [8, 0], sizes = [8, 128], strides = [1, 1]} : vector<32x128xf32> to vector<8x128xf32>
    %311 = vector.extract_strided_slice %231 {offsets = [8, 0], sizes = [8, 128], strides = [1, 1]} : vector<32x128xf32> to vector<8x128xf32>
    %312 = vector.extract_strided_slice %236 {offsets = [8, 0], sizes = [8, 128], strides = [1, 1]} : vector<32x128xf32> to vector<8x128xf32>
    %313 = vector.extract_strided_slice %241 {offsets = [8, 0], sizes = [8, 128], strides = [1, 1]} : vector<32x128xf32> to vector<8x128xf32>
    %314 = vector.extract_strided_slice %246 {offsets = [8, 0], sizes = [8, 128], strides = [1, 1]} : vector<32x128xf32> to vector<8x128xf32>
    %315 = tpu.concatenate %284, %285, %286, %287, %288, %289, %290, %291, %292, %293, %294, %295, %296, %297, %298, %299 in 0 : vector<8x128xf32>, vector<8x128xf32>, vector<8x128xf32>, vector<8x128xf32>, vector<8x128xf32>, vector<8x128xf32>, vector<8x128xf32>, vector<8x128xf32>, vector<8x128xf32>, vector<8x128xf32>, vector<8x128xf32>, vector<8x128xf32>, vector<8x128xf32>, vector<8x128xf32>, vector<8x128xf32>, vector<8x128xf32> -> vector<128x128xf32>
    %316 = tpu.concatenate %300, %301, %302, %303, %304, %305, %306, %307, %308, %309, %310, %311, %312, %313, %314 in 0 : vector<8x128xf32>, vector<8x128xf32>, vector<8x128xf32>, vector<8x128xf32>, vector<8x128xf32>, vector<8x128xf32>, vector<8x128xf32>, vector<8x128xf32>, vector<8x128xf32>, vector<8x128xf32>, vector<8x128xf32>, vector<8x128xf32>, vector<8x128xf32>, vector<8x128xf32>, vector<8x128xf32> -> vector<120x128xf32>
    %317 = tpu.concatenate %315, %316 in 0 : vector<128x128xf32>, vector<120x128xf32> -> vector<248x128xf32>
    %cst_88 = arith.constant dense<0.000000e+00> : vector<8x128xf32>
    %318 = tpu.matmul %8, %317, %cst_88 {dimension_numbers = #tpu.dot_dimension_numbers<[1], [0], [0], [1], [0, 0, 1, 1], [], []>} : vector<8x248xf32>, vector<248x128xf32>, vector<8x128xf32> -> vector<8x128xf32>
    %319 = vector.broadcast %9 : vector<8x1xf32> to vector<8x128xf32>
    %320 = arith.addf %318, %319 : vector<8x128xf32>
    %321 = vector.extract_strided_slice %101 {offsets = [16, 0], sizes = [8, 128], strides = [1, 1]} : vector<32x128xf32> to vector<8x128xf32>
    %322 = vector.extract_strided_slice %106 {offsets = [16, 0], sizes = [8, 128], strides = [1, 1]} : vector<32x128xf32> to vector<8x128xf32>
    %323 = vector.extract_strided_slice %111 {offsets = [16, 0], sizes = [8, 128], strides = [1, 1]} : vector<32x128xf32> to vector<8x128xf32>
    %324 = vector.extract_strided_slice %116 {offsets = [16, 0], sizes = [8, 128], strides = [1, 1]} : vector<32x128xf32> to vector<8x128xf32>
    %325 = vector.extract_strided_slice %121 {offsets = [16, 0], sizes = [8, 128], strides = [1, 1]} : vector<32x128xf32> to vector<8x128xf32>
    %326 = vector.extract_strided_slice %126 {offsets = [16, 0], sizes = [8, 128], strides = [1, 1]} : vector<32x128xf32> to vector<8x128xf32>
    %327 = vector.extract_strided_slice %131 {offsets = [16, 0], sizes = [8, 128], strides = [1, 1]} : vector<32x128xf32> to vector<8x128xf32>
    %328 = vector.extract_strided_slice %136 {offsets = [16, 0], sizes = [8, 128], strides = [1, 1]} : vector<32x128xf32> to vector<8x128xf32>
    %329 = vector.extract_strided_slice %141 {offsets = [16, 0], sizes = [8, 128], strides = [1, 1]} : vector<32x128xf32> to vector<8x128xf32>
    %330 = vector.extract_strided_slice %146 {offsets = [16, 0], sizes = [8, 128], strides = [1, 1]} : vector<32x128xf32> to vector<8x128xf32>
    %331 = vector.extract_strided_slice %151 {offsets = [16, 0], sizes = [8, 128], strides = [1, 1]} : vector<32x128xf32> to vector<8x128xf32>
    %332 = vector.extract_strided_slice %156 {offsets = [16, 0], sizes = [8, 128], strides = [1, 1]} : vector<32x128xf32> to vector<8x128xf32>
    %333 = vector.extract_strided_slice %161 {offsets = [16, 0], sizes = [8, 128], strides = [1, 1]} : vector<32x128xf32> to vector<8x128xf32>
    %334 = vector.extract_strided_slice %166 {offsets = [16, 0], sizes = [8, 128], strides = [1, 1]} : vector<32x128xf32> to vector<8x128xf32>
    %335 = vector.extract_strided_slice %171 {offsets = [16, 0], sizes = [8, 128], strides = [1, 1]} : vector<32x128xf32> to vector<8x128xf32>
    %336 = vector.extract_strided_slice %96 {offsets = [16, 0], sizes = [8, 128], strides = [1, 1]} : vector<32x128xf32> to vector<8x128xf32>
    %337 = vector.extract_strided_slice %176 {offsets = [16, 0], sizes = [8, 128], strides = [1, 1]} : vector<32x128xf32> to vector<8x128xf32>
    %338 = vector.extract_strided_slice %181 {offsets = [16, 0], sizes = [8, 128], strides = [1, 1]} : vector<32x128xf32> to vector<8x128xf32>
    %339 = vector.extract_strided_slice %186 {offsets = [16, 0], sizes = [8, 128], strides = [1, 1]} : vector<32x128xf32> to vector<8x128xf32>
    %340 = vector.extract_strided_slice %191 {offsets = [16, 0], sizes = [8, 128], strides = [1, 1]} : vector<32x128xf32> to vector<8x128xf32>
    %341 = vector.extract_strided_slice %196 {offsets = [16, 0], sizes = [8, 128], strides = [1, 1]} : vector<32x128xf32> to vector<8x128xf32>
    %342 = vector.extract_strided_slice %201 {offsets = [16, 0], sizes = [8, 128], strides = [1, 1]} : vector<32x128xf32> to vector<8x128xf32>
    %343 = vector.extract_strided_slice %206 {offsets = [16, 0], sizes = [8, 128], strides = [1, 1]} : vector<32x128xf32> to vector<8x128xf32>
    %344 = vector.extract_strided_slice %211 {offsets = [16, 0], sizes = [8, 128], strides = [1, 1]} : vector<32x128xf32> to vector<8x128xf32>
    %345 = vector.extract_strided_slice %216 {offsets = [16, 0], sizes = [8, 128], strides = [1, 1]} : vector<32x128xf32> to vector<8x128xf32>
    %346 = vector.extract_strided_slice %221 {offsets = [16, 0], sizes = [8, 128], strides = [1, 1]} : vector<32x128xf32> to vector<8x128xf32>
    %347 = vector.extract_strided_slice %226 {offsets = [16, 0], sizes = [8, 128], strides = [1, 1]} : vector<32x128xf32> to vector<8x128xf32>
    %348 = vector.extract_strided_slice %231 {offsets = [16, 0], sizes = [8, 128], strides = [1, 1]} : vector<32x128xf32> to vector<8x128xf32>
    %349 = vector.extract_strided_slice %236 {offsets = [16, 0], sizes = [8, 128], strides = [1, 1]} : vector<32x128xf32> to vector<8x128xf32>
    %350 = vector.extract_strided_slice %241 {offsets = [16, 0], sizes = [8, 128], strides = [1, 1]} : vector<32x128xf32> to vector<8x128xf32>
    %351 = vector.extract_strided_slice %246 {offsets = [16, 0], sizes = [8, 128], strides = [1, 1]} : vector<32x128xf32> to vector<8x128xf32>
    %352 = tpu.concatenate %321, %322, %323, %324, %325, %326, %327, %328, %329, %330, %331, %332, %333, %334, %335, %336 in 0 : vector<8x128xf32>, vector<8x128xf32>, vector<8x128xf32>, vector<8x128xf32>, vector<8x128xf32>, vector<8x128xf32>, vector<8x128xf32>, vector<8x128xf32>, vector<8x128xf32>, vector<8x128xf32>, vector<8x128xf32>, vector<8x128xf32>, vector<8x128xf32>, vector<8x128xf32>, vector<8x128xf32>, vector<8x128xf32> -> vector<128x128xf32>
    %353 = tpu.concatenate %337, %338, %339, %340, %341, %342, %343, %344, %345, %346, %347, %348, %349, %350, %351 in 0 : vector<8x128xf32>, vector<8x128xf32>, vector<8x128xf32>, vector<8x128xf32>, vector<8x128xf32>, vector<8x128xf32>, vector<8x128xf32>, vector<8x128xf32>, vector<8x128xf32>, vector<8x128xf32>, vector<8x128xf32>, vector<8x128xf32>, vector<8x128xf32>, vector<8x128xf32>, vector<8x128xf32> -> vector<120x128xf32>
    %354 = tpu.concatenate %352, %353 in 0 : vector<128x128xf32>, vector<120x128xf32> -> vector<248x128xf32>
    %cst_89 = arith.constant dense<0.000000e+00> : vector<8x128xf32>
    %355 = tpu.matmul %8, %354, %cst_89 {dimension_numbers = #tpu.dot_dimension_numbers<[1], [0], [0], [1], [0, 0, 1, 1], [], []>} : vector<8x248xf32>, vector<248x128xf32>, vector<8x128xf32> -> vector<8x128xf32>
    %356 = vector.broadcast %9 : vector<8x1xf32> to vector<8x128xf32>
    %357 = arith.addf %355, %356 : vector<8x128xf32>
    %358 = vector.extract_strided_slice %101 {offsets = [24, 0], sizes = [8, 128], strides = [1, 1]} : vector<32x128xf32> to vector<8x128xf32>
    %359 = vector.extract_strided_slice %106 {offsets = [24, 0], sizes = [8, 128], strides = [1, 1]} : vector<32x128xf32> to vector<8x128xf32>
    %360 = vector.extract_strided_slice %111 {offsets = [24, 0], sizes = [8, 128], strides = [1, 1]} : vector<32x128xf32> to vector<8x128xf32>
    %361 = vector.extract_strided_slice %116 {offsets = [24, 0], sizes = [8, 128], strides = [1, 1]} : vector<32x128xf32> to vector<8x128xf32>
    %362 = vector.extract_strided_slice %121 {offsets = [24, 0], sizes = [8, 128], strides = [1, 1]} : vector<32x128xf32> to vector<8x128xf32>
    %363 = vector.extract_strided_slice %126 {offsets = [24, 0], sizes = [8, 128], strides = [1, 1]} : vector<32x128xf32> to vector<8x128xf32>
    %364 = vector.extract_strided_slice %131 {offsets = [24, 0], sizes = [8, 128], strides = [1, 1]} : vector<32x128xf32> to vector<8x128xf32>
    %365 = vector.extract_strided_slice %136 {offsets = [24, 0], sizes = [8, 128], strides = [1, 1]} : vector<32x128xf32> to vector<8x128xf32>
    %366 = vector.extract_strided_slice %141 {offsets = [24, 0], sizes = [8, 128], strides = [1, 1]} : vector<32x128xf32> to vector<8x128xf32>
    %367 = vector.extract_strided_slice %146 {offsets = [24, 0], sizes = [8, 128], strides = [1, 1]} : vector<32x128xf32> to vector<8x128xf32>
    %368 = vector.extract_strided_slice %151 {offsets = [24, 0], sizes = [8, 128], strides = [1, 1]} : vector<32x128xf32> to vector<8x128xf32>
    %369 = vector.extract_strided_slice %156 {offsets = [24, 0], sizes = [8, 128], strides = [1, 1]} : vector<32x128xf32> to vector<8x128xf32>
    %370 = vector.extract_strided_slice %161 {offsets = [24, 0], sizes = [8, 128], strides = [1, 1]} : vector<32x128xf32> to vector<8x128xf32>
    %371 = vector.extract_strided_slice %166 {offsets = [24, 0], sizes = [8, 128], strides = [1, 1]} : vector<32x128xf32> to vector<8x128xf32>
    %372 = vector.extract_strided_slice %171 {offsets = [24, 0], sizes = [8, 128], strides = [1, 1]} : vector<32x128xf32> to vector<8x128xf32>
    %373 = vector.extract_strided_slice %96 {offsets = [24, 0], sizes = [8, 128], strides = [1, 1]} : vector<32x128xf32> to vector<8x128xf32>
    %374 = vector.extract_strided_slice %176 {offsets = [24, 0], sizes = [8, 128], strides = [1, 1]} : vector<32x128xf32> to vector<8x128xf32>
    %375 = vector.extract_strided_slice %181 {offsets = [24, 0], sizes = [8, 128], strides = [1, 1]} : vector<32x128xf32> to vector<8x128xf32>
    %376 = vector.extract_strided_slice %186 {offsets = [24, 0], sizes = [8, 128], strides = [1, 1]} : vector<32x128xf32> to vector<8x128xf32>
    %377 = vector.extract_strided_slice %191 {offsets = [24, 0], sizes = [8, 128], strides = [1, 1]} : vector<32x128xf32> to vector<8x128xf32>
    %378 = vector.extract_strided_slice %196 {offsets = [24, 0], sizes = [8, 128], strides = [1, 1]} : vector<32x128xf32> to vector<8x128xf32>
    %379 = vector.extract_strided_slice %201 {offsets = [24, 0], sizes = [8, 128], strides = [1, 1]} : vector<32x128xf32> to vector<8x128xf32>
    %380 = vector.extract_strided_slice %206 {offsets = [24, 0], sizes = [8, 128], strides = [1, 1]} : vector<32x128xf32> to vector<8x128xf32>
    %381 = vector.extract_strided_slice %211 {offsets = [24, 0], sizes = [8, 128], strides = [1, 1]} : vector<32x128xf32> to vector<8x128xf32>
    %382 = vector.extract_strided_slice %216 {offsets = [24, 0], sizes = [8, 128], strides = [1, 1]} : vector<32x128xf32> to vector<8x128xf32>
    %383 = vector.extract_strided_slice %221 {offsets = [24, 0], sizes = [8, 128], strides = [1, 1]} : vector<32x128xf32> to vector<8x128xf32>
    %384 = vector.extract_strided_slice %226 {offsets = [24, 0], sizes = [8, 128], strides = [1, 1]} : vector<32x128xf32> to vector<8x128xf32>
    %385 = vector.extract_strided_slice %231 {offsets = [24, 0], sizes = [8, 128], strides = [1, 1]} : vector<32x128xf32> to vector<8x128xf32>
    %386 = vector.extract_strided_slice %236 {offsets = [24, 0], sizes = [8, 128], strides = [1, 1]} : vector<32x128xf32> to vector<8x128xf32>
    %387 = vector.extract_strided_slice %241 {offsets = [24, 0], sizes = [8, 128], strides = [1, 1]} : vector<32x128xf32> to vector<8x128xf32>
    %388 = vector.extract_strided_slice %246 {offsets = [24, 0], sizes = [8, 128], strides = [1, 1]} : vector<32x128xf32> to vector<8x128xf32>
    %389 = tpu.concatenate %358, %359, %360, %361, %362, %363, %364, %365, %366, %367, %368, %369, %370, %371, %372, %373 in 0 : vector<8x128xf32>, vector<8x128xf32>, vector<8x128xf32>, vector<8x128xf32>, vector<8x128xf32>, vector<8x128xf32>, vector<8x128xf32>, vector<8x128xf32>, vector<8x128xf32>, vector<8x128xf32>, vector<8x128xf32>, vector<8x128xf32>, vector<8x128xf32>, vector<8x128xf32>, vector<8x128xf32>, vector<8x128xf32> -> vector<128x128xf32>
    %390 = tpu.concatenate %374, %375, %376, %377, %378, %379, %380, %381, %382, %383, %384, %385, %386, %387, %388 in 0 : vector<8x128xf32>, vector<8x128xf32>, vector<8x128xf32>, vector<8x128xf32>, vector<8x128xf32>, vector<8x128xf32>, vector<8x128xf32>, vector<8x128xf32>, vector<8x128xf32>, vector<8x128xf32>, vector<8x128xf32>, vector<8x128xf32>, vector<8x128xf32>, vector<8x128xf32>, vector<8x128xf32> -> vector<120x128xf32>
    %391 = tpu.concatenate %389, %390 in 0 : vector<128x128xf32>, vector<120x128xf32> -> vector<248x128xf32>
    %cst_90 = arith.constant dense<0.000000e+00> : vector<8x128xf32>
    %392 = tpu.matmul %8, %391, %cst_90 {dimension_numbers = #tpu.dot_dimension_numbers<[1], [0], [0], [1], [0, 0, 1, 1], [], []>} : vector<8x248xf32>, vector<248x128xf32>, vector<8x128xf32> -> vector<8x128xf32>
    %393 = vector.broadcast %9 : vector<8x1xf32> to vector<8x128xf32>
    %394 = arith.addf %392, %393 : vector<8x128xf32>
    %395 = tpu.concatenate %283, %320, %357, %394 in 0 : vector<8x128xf32>, vector<8x128xf32>, vector<8x128xf32>, vector<8x128xf32> -> vector<32x128xf32>
    %cst_91 = arith.constant dense<0.000000e+00> : vector<32xf32>
    %396 = vector.multi_reduction <add>, %395, %cst_91 [1] : vector<32x128xf32> to vector<32xf32>
    %397 = vector.shape_cast %396 : vector<32xf32> to vector<32x1xf32>
    %cst_92 = arith.constant 1.280000e+02 : f32
    %398 = vector.broadcast %cst_92 : f32 to vector<32x1xf32>
    %399 = arith.divf %397, %398 : vector<32x1xf32>
    %400 = arith.mulf %395, %395 : vector<32x128xf32>
    %cst_93 = arith.constant dense<0.000000e+00> : vector<32xf32>
    %401 = vector.multi_reduction <add>, %400, %cst_93 [1] : vector<32x128xf32> to vector<32xf32>
    %402 = vector.shape_cast %401 : vector<32xf32> to vector<32x1xf32>
    %cst_94 = arith.constant 1.280000e+02 : f32
    %403 = vector.broadcast %cst_94 : f32 to vector<32x1xf32>
    %404 = arith.divf %402, %403 : vector<32x1xf32>
    %405 = arith.mulf %399, %399 : vector<32x1xf32>
    %406 = arith.subf %404, %405 : vector<32x1xf32>
    %cst_95 = arith.constant 0.000000e+00 : f32
    %407 = vector.broadcast %cst_95 : f32 to vector<32x1xf32>
    %408 = arith.maximumf %406, %407 : vector<32x1xf32>
    %409 = vector.broadcast %399 : vector<32x1xf32> to vector<32x128xf32>
    %410 = arith.subf %395, %409 : vector<32x128xf32>
    %cst_96 = arith.constant 9.99999974E-6 : f32
    %411 = vector.broadcast %cst_96 : f32 to vector<32x1xf32>
    %412 = arith.addf %408, %411 : vector<32x1xf32>
    %413 = math.rsqrt %412 : vector<32x1xf32>
    %414 = vector.broadcast %413 : vector<32x1xf32> to vector<32x128xf32>
    %415 = arith.mulf %410, %414 : vector<32x128xf32>
    %416 = vector.broadcast %4 : vector<1x128xf32> to vector<32x128xf32>
    %417 = arith.mulf %415, %416 : vector<32x128xf32>
    %418 = vector.broadcast %5 : vector<1x128xf32> to vector<32x128xf32>
    %419 = arith.addf %417, %418 : vector<32x128xf32>
    %420 = arith.mulf %419, %419 : vector<32x128xf32>
    %421 = arith.mulf %419, %420 : vector<32x128xf32>
    %cst_97 = arith.constant 4.471500e-02 : f32
    %422 = vector.broadcast %cst_97 : f32 to vector<32x128xf32>
    %423 = arith.mulf %422, %421 : vector<32x128xf32>
    %424 = arith.addf %419, %423 : vector<32x128xf32>
    %cst_98 = arith.constant 0.797884583 : f32
    %425 = vector.broadcast %cst_98 : f32 to vector<32x128xf32>
    %426 = arith.mulf %425, %424 : vector<32x128xf32>
    %427 = math.tanh %426 : vector<32x128xf32>
    %cst_99 = arith.constant 1.000000e+00 : f32
    %428 = vector.broadcast %cst_99 : f32 to vector<32x128xf32>
    %429 = arith.addf %428, %427 : vector<32x128xf32>
    %cst_100 = arith.constant 5.000000e-01 : f32
    %430 = vector.broadcast %cst_100 : f32 to vector<32x128xf32>
    %431 = arith.mulf %430, %429 : vector<32x128xf32>
    %432 = arith.mulf %419, %431 : vector<32x128xf32>
    %433 = arith.addf %1, %432 : vector<32x128xf32>
    %cst_101 = arith.constant dense<0.000000e+00> : vector<32xf32>
    %434 = vector.multi_reduction <add>, %433, %cst_101 [1] : vector<32x128xf32> to vector<32xf32>
    %435 = vector.shape_cast %434 : vector<32xf32> to vector<32x1xf32>
    %cst_102 = arith.constant 1.280000e+02 : f32
    %436 = vector.broadcast %cst_102 : f32 to vector<32x1xf32>
    %437 = arith.divf %435, %436 : vector<32x1xf32>
    %438 = arith.mulf %433, %433 : vector<32x128xf32>
    %cst_103 = arith.constant dense<0.000000e+00> : vector<32xf32>
    %439 = vector.multi_reduction <add>, %438, %cst_103 [1] : vector<32x128xf32> to vector<32xf32>
    %440 = vector.shape_cast %439 : vector<32xf32> to vector<32x1xf32>
    %cst_104 = arith.constant 1.280000e+02 : f32
    %441 = vector.broadcast %cst_104 : f32 to vector<32x1xf32>
    %442 = arith.divf %440, %441 : vector<32x1xf32>
    %443 = arith.mulf %437, %437 : vector<32x1xf32>
    %444 = arith.subf %442, %443 : vector<32x1xf32>
    %cst_105 = arith.constant 0.000000e+00 : f32
    %445 = vector.broadcast %cst_105 : f32 to vector<32x1xf32>
    %446 = arith.maximumf %444, %445 : vector<32x1xf32>
    %447 = vector.broadcast %437 : vector<32x1xf32> to vector<32x128xf32>
    %448 = arith.subf %433, %447 : vector<32x128xf32>
    %cst_106 = arith.constant 9.99999974E-6 : f32
    %449 = vector.broadcast %cst_106 : f32 to vector<32x1xf32>
    %450 = arith.addf %446, %449 : vector<32x1xf32>
    %451 = math.rsqrt %450 : vector<32x1xf32>
    %452 = vector.broadcast %451 : vector<32x1xf32> to vector<32x128xf32>
    %453 = arith.mulf %448, %452 : vector<32x128xf32>
    %454 = vector.broadcast %6 : vector<1x128xf32> to vector<32x128xf32>
    %455 = arith.mulf %453, %454 : vector<32x128xf32>
    %456 = vector.broadcast %7 : vector<1x128xf32> to vector<32x128xf32>
    %457 = arith.addf %455, %456 : vector<32x128xf32>
    %cst_107 = arith.constant dense<0.000000e+00> : vector<32x128xf32>
    %458 = tpu.matmul %457, %10, %cst_107 {dimension_numbers = #tpu.dot_dimension_numbers<[1], [0], [0], [1], [0, 0, 1, 1], [], []>} : vector<32x128xf32>, vector<128x128xf32>, vector<32x128xf32> -> vector<32x128xf32>
    %459 = vector.broadcast %11 : vector<1x128xf32> to vector<32x128xf32>
    %460 = arith.addf %458, %459 : vector<32x128xf32>
    %461 = arith.mulf %460, %460 : vector<32x128xf32>
    %462 = arith.mulf %460, %461 : vector<32x128xf32>
    %cst_108 = arith.constant 4.471500e-02 : f32
    %463 = vector.broadcast %cst_108 : f32 to vector<32x128xf32>
    %464 = arith.mulf %463, %462 : vector<32x128xf32>
    %465 = arith.addf %460, %464 : vector<32x128xf32>
    %cst_109 = arith.constant 0.797884583 : f32
    %466 = vector.broadcast %cst_109 : f32 to vector<32x128xf32>
    %467 = arith.mulf %466, %465 : vector<32x128xf32>
    %468 = math.tanh %467 : vector<32x128xf32>
    %cst_110 = arith.constant 1.000000e+00 : f32
    %469 = vector.broadcast %cst_110 : f32 to vector<32x128xf32>
    %470 = arith.addf %469, %468 : vector<32x128xf32>
    %cst_111 = arith.constant 5.000000e-01 : f32
    %471 = vector.broadcast %cst_111 : f32 to vector<32x128xf32>
    %472 = arith.mulf %471, %470 : vector<32x128xf32>
    %473 = arith.mulf %460, %472 : vector<32x128xf32>
    %474 = arith.addf %433, %473 : vector<32x128xf32>
    %cst_112 = arith.constant dense<0.000000e+00> : vector<32xf32>
    %475 = vector.multi_reduction <add>, %474, %cst_112 [1] : vector<32x128xf32> to vector<32xf32>
    %476 = vector.shape_cast %475 : vector<32xf32> to vector<32x1xf32>
    %cst_113 = arith.constant 1.280000e+02 : f32
    %477 = vector.broadcast %cst_113 : f32 to vector<32x1xf32>
    %478 = arith.divf %476, %477 : vector<32x1xf32>
    %479 = arith.mulf %474, %474 : vector<32x128xf32>
    %cst_114 = arith.constant dense<0.000000e+00> : vector<32xf32>
    %480 = vector.multi_reduction <add>, %479, %cst_114 [1] : vector<32x128xf32> to vector<32xf32>
    %481 = vector.shape_cast %480 : vector<32xf32> to vector<32x1xf32>
    %cst_115 = arith.constant 1.280000e+02 : f32
    %482 = vector.broadcast %cst_115 : f32 to vector<32x1xf32>
    %483 = arith.divf %481, %482 : vector<32x1xf32>
    %484 = arith.mulf %478, %478 : vector<32x1xf32>
    %485 = arith.subf %483, %484 : vector<32x1xf32>
    %cst_116 = arith.constant 0.000000e+00 : f32
    %486 = vector.broadcast %cst_116 : f32 to vector<32x1xf32>
    %487 = arith.maximumf %485, %486 : vector<32x1xf32>
    %488 = vector.broadcast %478 : vector<32x1xf32> to vector<32x128xf32>
    %489 = arith.subf %474, %488 : vector<32x128xf32>
    %cst_117 = arith.constant 9.99999974E-6 : f32
    %490 = vector.broadcast %cst_117 : f32 to vector<32x1xf32>
    %491 = arith.addf %487, %490 : vector<32x1xf32>
    %492 = math.rsqrt %491 : vector<32x1xf32>
    %493 = vector.broadcast %492 : vector<32x1xf32> to vector<32x128xf32>
    %494 = arith.mulf %489, %493 : vector<32x128xf32>
    %495 = vector.broadcast %2 : vector<1x128xf32> to vector<32x128xf32>
    %496 = arith.mulf %494, %495 : vector<32x128xf32>
    %497 = vector.broadcast %3 : vector<1x128xf32> to vector<32x128xf32>
    %498 = arith.addf %496, %497 : vector<32x128xf32>
    %c15_i32_118 = arith.constant 15 : i32
    %499 = tpu.dynamic_rotate %498 by %c15_i32_118 dim 1 : vector<32x128xf32>, i32 -> vector<32x128xf32>
    %cst_119 = arith.constant 0.000000e+00 : f32
    %500 = vector.shape_cast %14 : vector<1x128xi1> to vector<1x128xi1>
    %501 = vector.broadcast %500 : vector<1x128xi1> to vector<32x128xi1>
    %502 = vector.broadcast %cst_119 : f32 to vector<32x128xf32>
    %503 = arith.select %501, %499, %502 : vector<32x128xi1>, vector<32x128xf32>
    %c14_i32_120 = arith.constant 14 : i32
    %504 = tpu.dynamic_rotate %498 by %c14_i32_120 dim 1 : vector<32x128xf32>, i32 -> vector<32x128xf32>
    %cst_121 = arith.constant 0.000000e+00 : f32
    %505 = vector.shape_cast %16 : vector<1x128xi1> to vector<1x128xi1>
    %506 = vector.broadcast %505 : vector<1x128xi1> to vector<32x128xi1>
    %507 = vector.broadcast %cst_121 : f32 to vector<32x128xf32>
    %508 = arith.select %506, %504, %507 : vector<32x128xi1>, vector<32x128xf32>
    %c13_i32_122 = arith.constant 13 : i32
    %509 = tpu.dynamic_rotate %498 by %c13_i32_122 dim 1 : vector<32x128xf32>, i32 -> vector<32x128xf32>
    %cst_123 = arith.constant 0.000000e+00 : f32
    %510 = vector.shape_cast %18 : vector<1x128xi1> to vector<1x128xi1>
    %511 = vector.broadcast %510 : vector<1x128xi1> to vector<32x128xi1>
    %512 = vector.broadcast %cst_123 : f32 to vector<32x128xf32>
    %513 = arith.select %511, %509, %512 : vector<32x128xi1>, vector<32x128xf32>
    %c12_i32_124 = arith.constant 12 : i32
    %514 = tpu.dynamic_rotate %498 by %c12_i32_124 dim 1 : vector<32x128xf32>, i32 -> vector<32x128xf32>
    %cst_125 = arith.constant 0.000000e+00 : f32
    %515 = vector.shape_cast %20 : vector<1x128xi1> to vector<1x128xi1>
    %516 = vector.broadcast %515 : vector<1x128xi1> to vector<32x128xi1>
    %517 = vector.broadcast %cst_125 : f32 to vector<32x128xf32>
    %518 = arith.select %516, %514, %517 : vector<32x128xi1>, vector<32x128xf32>
    %c11_i32_126 = arith.constant 11 : i32
    %519 = tpu.dynamic_rotate %498 by %c11_i32_126 dim 1 : vector<32x128xf32>, i32 -> vector<32x128xf32>
    %cst_127 = arith.constant 0.000000e+00 : f32
    %520 = vector.shape_cast %22 : vector<1x128xi1> to vector<1x128xi1>
    %521 = vector.broadcast %520 : vector<1x128xi1> to vector<32x128xi1>
    %522 = vector.broadcast %cst_127 : f32 to vector<32x128xf32>
    %523 = arith.select %521, %519, %522 : vector<32x128xi1>, vector<32x128xf32>
    %c10_i32_128 = arith.constant 10 : i32
    %524 = tpu.dynamic_rotate %498 by %c10_i32_128 dim 1 : vector<32x128xf32>, i32 -> vector<32x128xf32>
    %cst_129 = arith.constant 0.000000e+00 : f32
    %525 = vector.shape_cast %24 : vector<1x128xi1> to vector<1x128xi1>
    %526 = vector.broadcast %525 : vector<1x128xi1> to vector<32x128xi1>
    %527 = vector.broadcast %cst_129 : f32 to vector<32x128xf32>
    %528 = arith.select %526, %524, %527 : vector<32x128xi1>, vector<32x128xf32>
    %c9_i32_130 = arith.constant 9 : i32
    %529 = tpu.dynamic_rotate %498 by %c9_i32_130 dim 1 : vector<32x128xf32>, i32 -> vector<32x128xf32>
    %cst_131 = arith.constant 0.000000e+00 : f32
    %530 = vector.shape_cast %26 : vector<1x128xi1> to vector<1x128xi1>
    %531 = vector.broadcast %530 : vector<1x128xi1> to vector<32x128xi1>
    %532 = vector.broadcast %cst_131 : f32 to vector<32x128xf32>
    %533 = arith.select %531, %529, %532 : vector<32x128xi1>, vector<32x128xf32>
    %c8_i32_132 = arith.constant 8 : i32
    %534 = tpu.dynamic_rotate %498 by %c8_i32_132 dim 1 : vector<32x128xf32>, i32 -> vector<32x128xf32>
    %cst_133 = arith.constant 0.000000e+00 : f32
    %535 = vector.shape_cast %28 : vector<1x128xi1> to vector<1x128xi1>
    %536 = vector.broadcast %535 : vector<1x128xi1> to vector<32x128xi1>
    %537 = vector.broadcast %cst_133 : f32 to vector<32x128xf32>
    %538 = arith.select %536, %534, %537 : vector<32x128xi1>, vector<32x128xf32>
    %c7_i32_134 = arith.constant 7 : i32
    %539 = tpu.dynamic_rotate %498 by %c7_i32_134 dim 1 : vector<32x128xf32>, i32 -> vector<32x128xf32>
    %cst_135 = arith.constant 0.000000e+00 : f32
    %540 = vector.shape_cast %30 : vector<1x128xi1> to vector<1x128xi1>
    %541 = vector.broadcast %540 : vector<1x128xi1> to vector<32x128xi1>
    %542 = vector.broadcast %cst_135 : f32 to vector<32x128xf32>
    %543 = arith.select %541, %539, %542 : vector<32x128xi1>, vector<32x128xf32>
    %c6_i32_136 = arith.constant 6 : i32
    %544 = tpu.dynamic_rotate %498 by %c6_i32_136 dim 1 : vector<32x128xf32>, i32 -> vector<32x128xf32>
    %cst_137 = arith.constant 0.000000e+00 : f32
    %545 = vector.shape_cast %32 : vector<1x128xi1> to vector<1x128xi1>
    %546 = vector.broadcast %545 : vector<1x128xi1> to vector<32x128xi1>
    %547 = vector.broadcast %cst_137 : f32 to vector<32x128xf32>
    %548 = arith.select %546, %544, %547 : vector<32x128xi1>, vector<32x128xf32>
    %c5_i32_138 = arith.constant 5 : i32
    %549 = tpu.dynamic_rotate %498 by %c5_i32_138 dim 1 : vector<32x128xf32>, i32 -> vector<32x128xf32>
    %cst_139 = arith.constant 0.000000e+00 : f32
    %550 = vector.shape_cast %34 : vector<1x128xi1> to vector<1x128xi1>
    %551 = vector.broadcast %550 : vector<1x128xi1> to vector<32x128xi1>
    %552 = vector.broadcast %cst_139 : f32 to vector<32x128xf32>
    %553 = arith.select %551, %549, %552 : vector<32x128xi1>, vector<32x128xf32>
    %c4_i32_140 = arith.constant 4 : i32
    %554 = tpu.dynamic_rotate %498 by %c4_i32_140 dim 1 : vector<32x128xf32>, i32 -> vector<32x128xf32>
    %cst_141 = arith.constant 0.000000e+00 : f32
    %555 = vector.shape_cast %36 : vector<1x128xi1> to vector<1x128xi1>
    %556 = vector.broadcast %555 : vector<1x128xi1> to vector<32x128xi1>
    %557 = vector.broadcast %cst_141 : f32 to vector<32x128xf32>
    %558 = arith.select %556, %554, %557 : vector<32x128xi1>, vector<32x128xf32>
    %c3_i32_142 = arith.constant 3 : i32
    %559 = tpu.dynamic_rotate %498 by %c3_i32_142 dim 1 : vector<32x128xf32>, i32 -> vector<32x128xf32>
    %cst_143 = arith.constant 0.000000e+00 : f32
    %560 = vector.shape_cast %38 : vector<1x128xi1> to vector<1x128xi1>
    %561 = vector.broadcast %560 : vector<1x128xi1> to vector<32x128xi1>
    %562 = vector.broadcast %cst_143 : f32 to vector<32x128xf32>
    %563 = arith.select %561, %559, %562 : vector<32x128xi1>, vector<32x128xf32>
    %c2_i32_144 = arith.constant 2 : i32
    %564 = tpu.dynamic_rotate %498 by %c2_i32_144 dim 1 : vector<32x128xf32>, i32 -> vector<32x128xf32>
    %cst_145 = arith.constant 0.000000e+00 : f32
    %565 = vector.shape_cast %40 : vector<1x128xi1> to vector<1x128xi1>
    %566 = vector.broadcast %565 : vector<1x128xi1> to vector<32x128xi1>
    %567 = vector.broadcast %cst_145 : f32 to vector<32x128xf32>
    %568 = arith.select %566, %564, %567 : vector<32x128xi1>, vector<32x128xf32>
    %c1_i32_146 = arith.constant 1 : i32
    %569 = tpu.dynamic_rotate %498 by %c1_i32_146 dim 1 : vector<32x128xf32>, i32 -> vector<32x128xf32>
    %cst_147 = arith.constant 0.000000e+00 : f32
    %570 = vector.shape_cast %42 : vector<1x128xi1> to vector<1x128xi1>
    %571 = vector.broadcast %570 : vector<1x128xi1> to vector<32x128xi1>
    %572 = vector.broadcast %cst_147 : f32 to vector<32x128xf32>
    %573 = arith.select %571, %569, %572 : vector<32x128xi1>, vector<32x128xf32>
    %c127_i32_148 = arith.constant 127 : i32
    %574 = tpu.dynamic_rotate %498 by %c127_i32_148 dim 1 : vector<32x128xf32>, i32 -> vector<32x128xf32>
    %cst_149 = arith.constant 0.000000e+00 : f32
    %575 = vector.shape_cast %44 : vector<1x128xi1> to vector<1x128xi1>
    %576 = vector.broadcast %575 : vector<1x128xi1> to vector<32x128xi1>
    %577 = vector.broadcast %cst_149 : f32 to vector<32x128xf32>
    %578 = arith.select %576, %574, %577 : vector<32x128xi1>, vector<32x128xf32>
    %c126_i32_150 = arith.constant 126 : i32
    %579 = tpu.dynamic_rotate %498 by %c126_i32_150 dim 1 : vector<32x128xf32>, i32 -> vector<32x128xf32>
    %cst_151 = arith.constant 0.000000e+00 : f32
    %580 = vector.shape_cast %46 : vector<1x128xi1> to vector<1x128xi1>
    %581 = vector.broadcast %580 : vector<1x128xi1> to vector<32x128xi1>
    %582 = vector.broadcast %cst_151 : f32 to vector<32x128xf32>
    %583 = arith.select %581, %579, %582 : vector<32x128xi1>, vector<32x128xf32>
    %c125_i32_152 = arith.constant 125 : i32
    %584 = tpu.dynamic_rotate %498 by %c125_i32_152 dim 1 : vector<32x128xf32>, i32 -> vector<32x128xf32>
    %cst_153 = arith.constant 0.000000e+00 : f32
    %585 = vector.shape_cast %48 : vector<1x128xi1> to vector<1x128xi1>
    %586 = vector.broadcast %585 : vector<1x128xi1> to vector<32x128xi1>
    %587 = vector.broadcast %cst_153 : f32 to vector<32x128xf32>
    %588 = arith.select %586, %584, %587 : vector<32x128xi1>, vector<32x128xf32>
    %c124_i32_154 = arith.constant 124 : i32
    %589 = tpu.dynamic_rotate %498 by %c124_i32_154 dim 1 : vector<32x128xf32>, i32 -> vector<32x128xf32>
    %cst_155 = arith.constant 0.000000e+00 : f32
    %590 = vector.shape_cast %50 : vector<1x128xi1> to vector<1x128xi1>
    %591 = vector.broadcast %590 : vector<1x128xi1> to vector<32x128xi1>
    %592 = vector.broadcast %cst_155 : f32 to vector<32x128xf32>
    %593 = arith.select %591, %589, %592 : vector<32x128xi1>, vector<32x128xf32>
    %c123_i32_156 = arith.constant 123 : i32
    %594 = tpu.dynamic_rotate %498 by %c123_i32_156 dim 1 : vector<32x128xf32>, i32 -> vector<32x128xf32>
    %cst_157 = arith.constant 0.000000e+00 : f32
    %595 = vector.shape_cast %52 : vector<1x128xi1> to vector<1x128xi1>
    %596 = vector.broadcast %595 : vector<1x128xi1> to vector<32x128xi1>
    %597 = vector.broadcast %cst_157 : f32 to vector<32x128xf32>
    %598 = arith.select %596, %594, %597 : vector<32x128xi1>, vector<32x128xf32>
    %c122_i32_158 = arith.constant 122 : i32
    %599 = tpu.dynamic_rotate %498 by %c122_i32_158 dim 1 : vector<32x128xf32>, i32 -> vector<32x128xf32>
    %cst_159 = arith.constant 0.000000e+00 : f32
    %600 = vector.shape_cast %54 : vector<1x128xi1> to vector<1x128xi1>
    %601 = vector.broadcast %600 : vector<1x128xi1> to vector<32x128xi1>
    %602 = vector.broadcast %cst_159 : f32 to vector<32x128xf32>
    %603 = arith.select %601, %599, %602 : vector<32x128xi1>, vector<32x128xf32>
    %c121_i32_160 = arith.constant 121 : i32
    %604 = tpu.dynamic_rotate %498 by %c121_i32_160 dim 1 : vector<32x128xf32>, i32 -> vector<32x128xf32>
    %cst_161 = arith.constant 0.000000e+00 : f32
    %605 = vector.shape_cast %56 : vector<1x128xi1> to vector<1x128xi1>
    %606 = vector.broadcast %605 : vector<1x128xi1> to vector<32x128xi1>
    %607 = vector.broadcast %cst_161 : f32 to vector<32x128xf32>
    %608 = arith.select %606, %604, %607 : vector<32x128xi1>, vector<32x128xf32>
    %c120_i32_162 = arith.constant 120 : i32
    %609 = tpu.dynamic_rotate %498 by %c120_i32_162 dim 1 : vector<32x128xf32>, i32 -> vector<32x128xf32>
    %cst_163 = arith.constant 0.000000e+00 : f32
    %610 = vector.shape_cast %58 : vector<1x128xi1> to vector<1x128xi1>
    %611 = vector.broadcast %610 : vector<1x128xi1> to vector<32x128xi1>
    %612 = vector.broadcast %cst_163 : f32 to vector<32x128xf32>
    %613 = arith.select %611, %609, %612 : vector<32x128xi1>, vector<32x128xf32>
    %c119_i32_164 = arith.constant 119 : i32
    %614 = tpu.dynamic_rotate %498 by %c119_i32_164 dim 1 : vector<32x128xf32>, i32 -> vector<32x128xf32>
    %cst_165 = arith.constant 0.000000e+00 : f32
    %615 = vector.shape_cast %60 : vector<1x128xi1> to vector<1x128xi1>
    %616 = vector.broadcast %615 : vector<1x128xi1> to vector<32x128xi1>
    %617 = vector.broadcast %cst_165 : f32 to vector<32x128xf32>
    %618 = arith.select %616, %614, %617 : vector<32x128xi1>, vector<32x128xf32>
    %c118_i32_166 = arith.constant 118 : i32
    %619 = tpu.dynamic_rotate %498 by %c118_i32_166 dim 1 : vector<32x128xf32>, i32 -> vector<32x128xf32>
    %cst_167 = arith.constant 0.000000e+00 : f32
    %620 = vector.shape_cast %62 : vector<1x128xi1> to vector<1x128xi1>
    %621 = vector.broadcast %620 : vector<1x128xi1> to vector<32x128xi1>
    %622 = vector.broadcast %cst_167 : f32 to vector<32x128xf32>
    %623 = arith.select %621, %619, %622 : vector<32x128xi1>, vector<32x128xf32>
    %c117_i32_168 = arith.constant 117 : i32
    %624 = tpu.dynamic_rotate %498 by %c117_i32_168 dim 1 : vector<32x128xf32>, i32 -> vector<32x128xf32>
    %cst_169 = arith.constant 0.000000e+00 : f32
    %625 = vector.shape_cast %64 : vector<1x128xi1> to vector<1x128xi1>
    %626 = vector.broadcast %625 : vector<1x128xi1> to vector<32x128xi1>
    %627 = vector.broadcast %cst_169 : f32 to vector<32x128xf32>
    %628 = arith.select %626, %624, %627 : vector<32x128xi1>, vector<32x128xf32>
    %c116_i32_170 = arith.constant 116 : i32
    %629 = tpu.dynamic_rotate %498 by %c116_i32_170 dim 1 : vector<32x128xf32>, i32 -> vector<32x128xf32>
    %cst_171 = arith.constant 0.000000e+00 : f32
    %630 = vector.shape_cast %66 : vector<1x128xi1> to vector<1x128xi1>
    %631 = vector.broadcast %630 : vector<1x128xi1> to vector<32x128xi1>
    %632 = vector.broadcast %cst_171 : f32 to vector<32x128xf32>
    %633 = arith.select %631, %629, %632 : vector<32x128xi1>, vector<32x128xf32>
    %c115_i32_172 = arith.constant 115 : i32
    %634 = tpu.dynamic_rotate %498 by %c115_i32_172 dim 1 : vector<32x128xf32>, i32 -> vector<32x128xf32>
    %cst_173 = arith.constant 0.000000e+00 : f32
    %635 = vector.shape_cast %68 : vector<1x128xi1> to vector<1x128xi1>
    %636 = vector.broadcast %635 : vector<1x128xi1> to vector<32x128xi1>
    %637 = vector.broadcast %cst_173 : f32 to vector<32x128xf32>
    %638 = arith.select %636, %634, %637 : vector<32x128xi1>, vector<32x128xf32>
    %c114_i32_174 = arith.constant 114 : i32
    %639 = tpu.dynamic_rotate %498 by %c114_i32_174 dim 1 : vector<32x128xf32>, i32 -> vector<32x128xf32>
    %cst_175 = arith.constant 0.000000e+00 : f32
    %640 = vector.shape_cast %70 : vector<1x128xi1> to vector<1x128xi1>
    %641 = vector.broadcast %640 : vector<1x128xi1> to vector<32x128xi1>
    %642 = vector.broadcast %cst_175 : f32 to vector<32x128xf32>
    %643 = arith.select %641, %639, %642 : vector<32x128xi1>, vector<32x128xf32>
    %c113_i32_176 = arith.constant 113 : i32
    %644 = tpu.dynamic_rotate %498 by %c113_i32_176 dim 1 : vector<32x128xf32>, i32 -> vector<32x128xf32>
    %cst_177 = arith.constant 0.000000e+00 : f32
    %645 = vector.shape_cast %72 : vector<1x128xi1> to vector<1x128xi1>
    %646 = vector.broadcast %645 : vector<1x128xi1> to vector<32x128xi1>
    %647 = vector.broadcast %cst_177 : f32 to vector<32x128xf32>
    %648 = arith.select %646, %644, %647 : vector<32x128xi1>, vector<32x128xf32>
    %649 = vector.extract_strided_slice %503 {offsets = [0, 0], sizes = [8, 128], strides = [1, 1]} : vector<32x128xf32> to vector<8x128xf32>
    %650 = vector.extract_strided_slice %508 {offsets = [0, 0], sizes = [8, 128], strides = [1, 1]} : vector<32x128xf32> to vector<8x128xf32>
    %651 = vector.extract_strided_slice %513 {offsets = [0, 0], sizes = [8, 128], strides = [1, 1]} : vector<32x128xf32> to vector<8x128xf32>
    %652 = vector.extract_strided_slice %518 {offsets = [0, 0], sizes = [8, 128], strides = [1, 1]} : vector<32x128xf32> to vector<8x128xf32>
    %653 = vector.extract_strided_slice %523 {offsets = [0, 0], sizes = [8, 128], strides = [1, 1]} : vector<32x128xf32> to vector<8x128xf32>
    %654 = vector.extract_strided_slice %528 {offsets = [0, 0], sizes = [8, 128], strides = [1, 1]} : vector<32x128xf32> to vector<8x128xf32>
    %655 = vector.extract_strided_slice %533 {offsets = [0, 0], sizes = [8, 128], strides = [1, 1]} : vector<32x128xf32> to vector<8x128xf32>
    %656 = vector.extract_strided_slice %538 {offsets = [0, 0], sizes = [8, 128], strides = [1, 1]} : vector<32x128xf32> to vector<8x128xf32>
    %657 = vector.extract_strided_slice %543 {offsets = [0, 0], sizes = [8, 128], strides = [1, 1]} : vector<32x128xf32> to vector<8x128xf32>
    %658 = vector.extract_strided_slice %548 {offsets = [0, 0], sizes = [8, 128], strides = [1, 1]} : vector<32x128xf32> to vector<8x128xf32>
    %659 = vector.extract_strided_slice %553 {offsets = [0, 0], sizes = [8, 128], strides = [1, 1]} : vector<32x128xf32> to vector<8x128xf32>
    %660 = vector.extract_strided_slice %558 {offsets = [0, 0], sizes = [8, 128], strides = [1, 1]} : vector<32x128xf32> to vector<8x128xf32>
    %661 = vector.extract_strided_slice %563 {offsets = [0, 0], sizes = [8, 128], strides = [1, 1]} : vector<32x128xf32> to vector<8x128xf32>
    %662 = vector.extract_strided_slice %568 {offsets = [0, 0], sizes = [8, 128], strides = [1, 1]} : vector<32x128xf32> to vector<8x128xf32>
    %663 = vector.extract_strided_slice %573 {offsets = [0, 0], sizes = [8, 128], strides = [1, 1]} : vector<32x128xf32> to vector<8x128xf32>
    %664 = vector.extract_strided_slice %498 {offsets = [0, 0], sizes = [8, 128], strides = [1, 1]} : vector<32x128xf32> to vector<8x128xf32>
    %665 = vector.extract_strided_slice %578 {offsets = [0, 0], sizes = [8, 128], strides = [1, 1]} : vector<32x128xf32> to vector<8x128xf32>
    %666 = vector.extract_strided_slice %583 {offsets = [0, 0], sizes = [8, 128], strides = [1, 1]} : vector<32x128xf32> to vector<8x128xf32>
    %667 = vector.extract_strided_slice %588 {offsets = [0, 0], sizes = [8, 128], strides = [1, 1]} : vector<32x128xf32> to vector<8x128xf32>
    %668 = vector.extract_strided_slice %593 {offsets = [0, 0], sizes = [8, 128], strides = [1, 1]} : vector<32x128xf32> to vector<8x128xf32>
    %669 = vector.extract_strided_slice %598 {offsets = [0, 0], sizes = [8, 128], strides = [1, 1]} : vector<32x128xf32> to vector<8x128xf32>
    %670 = vector.extract_strided_slice %603 {offsets = [0, 0], sizes = [8, 128], strides = [1, 1]} : vector<32x128xf32> to vector<8x128xf32>
    %671 = vector.extract_strided_slice %608 {offsets = [0, 0], sizes = [8, 128], strides = [1, 1]} : vector<32x128xf32> to vector<8x128xf32>
    %672 = vector.extract_strided_slice %613 {offsets = [0, 0], sizes = [8, 128], strides = [1, 1]} : vector<32x128xf32> to vector<8x128xf32>
    %673 = vector.extract_strided_slice %618 {offsets = [0, 0], sizes = [8, 128], strides = [1, 1]} : vector<32x128xf32> to vector<8x128xf32>
    %674 = vector.extract_strided_slice %623 {offsets = [0, 0], sizes = [8, 128], strides = [1, 1]} : vector<32x128xf32> to vector<8x128xf32>
    %675 = vector.extract_strided_slice %628 {offsets = [0, 0], sizes = [8, 128], strides = [1, 1]} : vector<32x128xf32> to vector<8x128xf32>
    %676 = vector.extract_strided_slice %633 {offsets = [0, 0], sizes = [8, 128], strides = [1, 1]} : vector<32x128xf32> to vector<8x128xf32>
    %677 = vector.extract_strided_slice %638 {offsets = [0, 0], sizes = [8, 128], strides = [1, 1]} : vector<32x128xf32> to vector<8x128xf32>
    %678 = vector.extract_strided_slice %643 {offsets = [0, 0], sizes = [8, 128], strides = [1, 1]} : vector<32x128xf32> to vector<8x128xf32>
    %679 = vector.extract_strided_slice %648 {offsets = [0, 0], sizes = [8, 128], strides = [1, 1]} : vector<32x128xf32> to vector<8x128xf32>
    %680 = tpu.concatenate %649, %650, %651, %652, %653, %654, %655, %656, %657, %658, %659, %660, %661, %662, %663, %664 in 0 : vector<8x128xf32>, vector<8x128xf32>, vector<8x128xf32>, vector<8x128xf32>, vector<8x128xf32>, vector<8x128xf32>, vector<8x128xf32>, vector<8x128xf32>, vector<8x128xf32>, vector<8x128xf32>, vector<8x128xf32>, vector<8x128xf32>, vector<8x128xf32>, vector<8x128xf32>, vector<8x128xf32>, vector<8x128xf32> -> vector<128x128xf32>
    %681 = tpu.concatenate %665, %666, %667, %668, %669, %670, %671, %672, %673, %674, %675, %676, %677, %678, %679 in 0 : vector<8x128xf32>, vector<8x128xf32>, vector<8x128xf32>, vector<8x128xf32>, vector<8x128xf32>, vector<8x128xf32>, vector<8x128xf32>, vector<8x128xf32>, vector<8x128xf32>, vector<8x128xf32>, vector<8x128xf32>, vector<8x128xf32>, vector<8x128xf32>, vector<8x128xf32>, vector<8x128xf32> -> vector<120x128xf32>
    %682 = tpu.concatenate %680, %681 in 0 : vector<128x128xf32>, vector<120x128xf32> -> vector<248x128xf32>
    %cst_178 = arith.constant dense<0.000000e+00> : vector<8x128xf32>
    %683 = tpu.matmul %8, %682, %cst_178 {dimension_numbers = #tpu.dot_dimension_numbers<[1], [0], [0], [1], [0, 0, 1, 1], [], []>} : vector<8x248xf32>, vector<248x128xf32>, vector<8x128xf32> -> vector<8x128xf32>
    %684 = vector.broadcast %9 : vector<8x1xf32> to vector<8x128xf32>
    %685 = arith.addf %683, %684 : vector<8x128xf32>
    %686 = vector.extract_strided_slice %503 {offsets = [8, 0], sizes = [8, 128], strides = [1, 1]} : vector<32x128xf32> to vector<8x128xf32>
    %687 = vector.extract_strided_slice %508 {offsets = [8, 0], sizes = [8, 128], strides = [1, 1]} : vector<32x128xf32> to vector<8x128xf32>
    %688 = vector.extract_strided_slice %513 {offsets = [8, 0], sizes = [8, 128], strides = [1, 1]} : vector<32x128xf32> to vector<8x128xf32>
    %689 = vector.extract_strided_slice %518 {offsets = [8, 0], sizes = [8, 128], strides = [1, 1]} : vector<32x128xf32> to vector<8x128xf32>
    %690 = vector.extract_strided_slice %523 {offsets = [8, 0], sizes = [8, 128], strides = [1, 1]} : vector<32x128xf32> to vector<8x128xf32>
    %691 = vector.extract_strided_slice %528 {offsets = [8, 0], sizes = [8, 128], strides = [1, 1]} : vector<32x128xf32> to vector<8x128xf32>
    %692 = vector.extract_strided_slice %533 {offsets = [8, 0], sizes = [8, 128], strides = [1, 1]} : vector<32x128xf32> to vector<8x128xf32>
    %693 = vector.extract_strided_slice %538 {offsets = [8, 0], sizes = [8, 128], strides = [1, 1]} : vector<32x128xf32> to vector<8x128xf32>
    %694 = vector.extract_strided_slice %543 {offsets = [8, 0], sizes = [8, 128], strides = [1, 1]} : vector<32x128xf32> to vector<8x128xf32>
    %695 = vector.extract_strided_slice %548 {offsets = [8, 0], sizes = [8, 128], strides = [1, 1]} : vector<32x128xf32> to vector<8x128xf32>
    %696 = vector.extract_strided_slice %553 {offsets = [8, 0], sizes = [8, 128], strides = [1, 1]} : vector<32x128xf32> to vector<8x128xf32>
    %697 = vector.extract_strided_slice %558 {offsets = [8, 0], sizes = [8, 128], strides = [1, 1]} : vector<32x128xf32> to vector<8x128xf32>
    %698 = vector.extract_strided_slice %563 {offsets = [8, 0], sizes = [8, 128], strides = [1, 1]} : vector<32x128xf32> to vector<8x128xf32>
    %699 = vector.extract_strided_slice %568 {offsets = [8, 0], sizes = [8, 128], strides = [1, 1]} : vector<32x128xf32> to vector<8x128xf32>
    %700 = vector.extract_strided_slice %573 {offsets = [8, 0], sizes = [8, 128], strides = [1, 1]} : vector<32x128xf32> to vector<8x128xf32>
    %701 = vector.extract_strided_slice %498 {offsets = [8, 0], sizes = [8, 128], strides = [1, 1]} : vector<32x128xf32> to vector<8x128xf32>
    %702 = vector.extract_strided_slice %578 {offsets = [8, 0], sizes = [8, 128], strides = [1, 1]} : vector<32x128xf32> to vector<8x128xf32>
    %703 = vector.extract_strided_slice %583 {offsets = [8, 0], sizes = [8, 128], strides = [1, 1]} : vector<32x128xf32> to vector<8x128xf32>
    %704 = vector.extract_strided_slice %588 {offsets = [8, 0], sizes = [8, 128], strides = [1, 1]} : vector<32x128xf32> to vector<8x128xf32>
    %705 = vector.extract_strided_slice %593 {offsets = [8, 0], sizes = [8, 128], strides = [1, 1]} : vector<32x128xf32> to vector<8x128xf32>
    %706 = vector.extract_strided_slice %598 {offsets = [8, 0], sizes = [8, 128], strides = [1, 1]} : vector<32x128xf32> to vector<8x128xf32>
    %707 = vector.extract_strided_slice %603 {offsets = [8, 0], sizes = [8, 128], strides = [1, 1]} : vector<32x128xf32> to vector<8x128xf32>
    %708 = vector.extract_strided_slice %608 {offsets = [8, 0], sizes = [8, 128], strides = [1, 1]} : vector<32x128xf32> to vector<8x128xf32>
    %709 = vector.extract_strided_slice %613 {offsets = [8, 0], sizes = [8, 128], strides = [1, 1]} : vector<32x128xf32> to vector<8x128xf32>
    %710 = vector.extract_strided_slice %618 {offsets = [8, 0], sizes = [8, 128], strides = [1, 1]} : vector<32x128xf32> to vector<8x128xf32>
    %711 = vector.extract_strided_slice %623 {offsets = [8, 0], sizes = [8, 128], strides = [1, 1]} : vector<32x128xf32> to vector<8x128xf32>
    %712 = vector.extract_strided_slice %628 {offsets = [8, 0], sizes = [8, 128], strides = [1, 1]} : vector<32x128xf32> to vector<8x128xf32>
    %713 = vector.extract_strided_slice %633 {offsets = [8, 0], sizes = [8, 128], strides = [1, 1]} : vector<32x128xf32> to vector<8x128xf32>
    %714 = vector.extract_strided_slice %638 {offsets = [8, 0], sizes = [8, 128], strides = [1, 1]} : vector<32x128xf32> to vector<8x128xf32>
    %715 = vector.extract_strided_slice %643 {offsets = [8, 0], sizes = [8, 128], strides = [1, 1]} : vector<32x128xf32> to vector<8x128xf32>
    %716 = vector.extract_strided_slice %648 {offsets = [8, 0], sizes = [8, 128], strides = [1, 1]} : vector<32x128xf32> to vector<8x128xf32>
    %717 = tpu.concatenate %686, %687, %688, %689, %690, %691, %692, %693, %694, %695, %696, %697, %698, %699, %700, %701 in 0 : vector<8x128xf32>, vector<8x128xf32>, vector<8x128xf32>, vector<8x128xf32>, vector<8x128xf32>, vector<8x128xf32>, vector<8x128xf32>, vector<8x128xf32>, vector<8x128xf32>, vector<8x128xf32>, vector<8x128xf32>, vector<8x128xf32>, vector<8x128xf32>, vector<8x128xf32>, vector<8x128xf32>, vector<8x128xf32> -> vector<128x128xf32>
    %718 = tpu.concatenate %702, %703, %704, %705, %706, %707, %708, %709, %710, %711, %712, %713, %714, %715, %716 in 0 : vector<8x128xf32>, vector<8x128xf32>, vector<8x128xf32>, vector<8x128xf32>, vector<8x128xf32>, vector<8x128xf32>, vector<8x128xf32>, vector<8x128xf32>, vector<8x128xf32>, vector<8x128xf32>, vector<8x128xf32>, vector<8x128xf32>, vector<8x128xf32>, vector<8x128xf32>, vector<8x128xf32> -> vector<120x128xf32>
    %719 = tpu.concatenate %717, %718 in 0 : vector<128x128xf32>, vector<120x128xf32> -> vector<248x128xf32>
    %cst_179 = arith.constant dense<0.000000e+00> : vector<8x128xf32>
    %720 = tpu.matmul %8, %719, %cst_179 {dimension_numbers = #tpu.dot_dimension_numbers<[1], [0], [0], [1], [0, 0, 1, 1], [], []>} : vector<8x248xf32>, vector<248x128xf32>, vector<8x128xf32> -> vector<8x128xf32>
    %721 = vector.broadcast %9 : vector<8x1xf32> to vector<8x128xf32>
    %722 = arith.addf %720, %721 : vector<8x128xf32>
    %723 = vector.extract_strided_slice %503 {offsets = [16, 0], sizes = [8, 128], strides = [1, 1]} : vector<32x128xf32> to vector<8x128xf32>
    %724 = vector.extract_strided_slice %508 {offsets = [16, 0], sizes = [8, 128], strides = [1, 1]} : vector<32x128xf32> to vector<8x128xf32>
    %725 = vector.extract_strided_slice %513 {offsets = [16, 0], sizes = [8, 128], strides = [1, 1]} : vector<32x128xf32> to vector<8x128xf32>
    %726 = vector.extract_strided_slice %518 {offsets = [16, 0], sizes = [8, 128], strides = [1, 1]} : vector<32x128xf32> to vector<8x128xf32>
    %727 = vector.extract_strided_slice %523 {offsets = [16, 0], sizes = [8, 128], strides = [1, 1]} : vector<32x128xf32> to vector<8x128xf32>
    %728 = vector.extract_strided_slice %528 {offsets = [16, 0], sizes = [8, 128], strides = [1, 1]} : vector<32x128xf32> to vector<8x128xf32>
    %729 = vector.extract_strided_slice %533 {offsets = [16, 0], sizes = [8, 128], strides = [1, 1]} : vector<32x128xf32> to vector<8x128xf32>
    %730 = vector.extract_strided_slice %538 {offsets = [16, 0], sizes = [8, 128], strides = [1, 1]} : vector<32x128xf32> to vector<8x128xf32>
    %731 = vector.extract_strided_slice %543 {offsets = [16, 0], sizes = [8, 128], strides = [1, 1]} : vector<32x128xf32> to vector<8x128xf32>
    %732 = vector.extract_strided_slice %548 {offsets = [16, 0], sizes = [8, 128], strides = [1, 1]} : vector<32x128xf32> to vector<8x128xf32>
    %733 = vector.extract_strided_slice %553 {offsets = [16, 0], sizes = [8, 128], strides = [1, 1]} : vector<32x128xf32> to vector<8x128xf32>
    %734 = vector.extract_strided_slice %558 {offsets = [16, 0], sizes = [8, 128], strides = [1, 1]} : vector<32x128xf32> to vector<8x128xf32>
    %735 = vector.extract_strided_slice %563 {offsets = [16, 0], sizes = [8, 128], strides = [1, 1]} : vector<32x128xf32> to vector<8x128xf32>
    %736 = vector.extract_strided_slice %568 {offsets = [16, 0], sizes = [8, 128], strides = [1, 1]} : vector<32x128xf32> to vector<8x128xf32>
    %737 = vector.extract_strided_slice %573 {offsets = [16, 0], sizes = [8, 128], strides = [1, 1]} : vector<32x128xf32> to vector<8x128xf32>
    %738 = vector.extract_strided_slice %498 {offsets = [16, 0], sizes = [8, 128], strides = [1, 1]} : vector<32x128xf32> to vector<8x128xf32>
    %739 = vector.extract_strided_slice %578 {offsets = [16, 0], sizes = [8, 128], strides = [1, 1]} : vector<32x128xf32> to vector<8x128xf32>
    %740 = vector.extract_strided_slice %583 {offsets = [16, 0], sizes = [8, 128], strides = [1, 1]} : vector<32x128xf32> to vector<8x128xf32>
    %741 = vector.extract_strided_slice %588 {offsets = [16, 0], sizes = [8, 128], strides = [1, 1]} : vector<32x128xf32> to vector<8x128xf32>
    %742 = vector.extract_strided_slice %593 {offsets = [16, 0], sizes = [8, 128], strides = [1, 1]} : vector<32x128xf32> to vector<8x128xf32>
    %743 = vector.extract_strided_slice %598 {offsets = [16, 0], sizes = [8, 128], strides = [1, 1]} : vector<32x128xf32> to vector<8x128xf32>
    %744 = vector.extract_strided_slice %603 {offsets = [16, 0], sizes = [8, 128], strides = [1, 1]} : vector<32x128xf32> to vector<8x128xf32>
    %745 = vector.extract_strided_slice %608 {offsets = [16, 0], sizes = [8, 128], strides = [1, 1]} : vector<32x128xf32> to vector<8x128xf32>
    %746 = vector.extract_strided_slice %613 {offsets = [16, 0], sizes = [8, 128], strides = [1, 1]} : vector<32x128xf32> to vector<8x128xf32>
    %747 = vector.extract_strided_slice %618 {offsets = [16, 0], sizes = [8, 128], strides = [1, 1]} : vector<32x128xf32> to vector<8x128xf32>
    %748 = vector.extract_strided_slice %623 {offsets = [16, 0], sizes = [8, 128], strides = [1, 1]} : vector<32x128xf32> to vector<8x128xf32>
    %749 = vector.extract_strided_slice %628 {offsets = [16, 0], sizes = [8, 128], strides = [1, 1]} : vector<32x128xf32> to vector<8x128xf32>
    %750 = vector.extract_strided_slice %633 {offsets = [16, 0], sizes = [8, 128], strides = [1, 1]} : vector<32x128xf32> to vector<8x128xf32>
    %751 = vector.extract_strided_slice %638 {offsets = [16, 0], sizes = [8, 128], strides = [1, 1]} : vector<32x128xf32> to vector<8x128xf32>
    %752 = vector.extract_strided_slice %643 {offsets = [16, 0], sizes = [8, 128], strides = [1, 1]} : vector<32x128xf32> to vector<8x128xf32>
    %753 = vector.extract_strided_slice %648 {offsets = [16, 0], sizes = [8, 128], strides = [1, 1]} : vector<32x128xf32> to vector<8x128xf32>
    %754 = tpu.concatenate %723, %724, %725, %726, %727, %728, %729, %730, %731, %732, %733, %734, %735, %736, %737, %738 in 0 : vector<8x128xf32>, vector<8x128xf32>, vector<8x128xf32>, vector<8x128xf32>, vector<8x128xf32>, vector<8x128xf32>, vector<8x128xf32>, vector<8x128xf32>, vector<8x128xf32>, vector<8x128xf32>, vector<8x128xf32>, vector<8x128xf32>, vector<8x128xf32>, vector<8x128xf32>, vector<8x128xf32>, vector<8x128xf32> -> vector<128x128xf32>
    %755 = tpu.concatenate %739, %740, %741, %742, %743, %744, %745, %746, %747, %748, %749, %750, %751, %752, %753 in 0 : vector<8x128xf32>, vector<8x128xf32>, vector<8x128xf32>, vector<8x128xf32>, vector<8x128xf32>, vector<8x128xf32>, vector<8x128xf32>, vector<8x128xf32>, vector<8x128xf32>, vector<8x128xf32>, vector<8x128xf32>, vector<8x128xf32>, vector<8x128xf32>, vector<8x128xf32>, vector<8x128xf32> -> vector<120x128xf32>
    %756 = tpu.concatenate %754, %755 in 0 : vector<128x128xf32>, vector<120x128xf32> -> vector<248x128xf32>
    %cst_180 = arith.constant dense<0.000000e+00> : vector<8x128xf32>
    %757 = tpu.matmul %8, %756, %cst_180 {dimension_numbers = #tpu.dot_dimension_numbers<[1], [0], [0], [1], [0, 0, 1, 1], [], []>} : vector<8x248xf32>, vector<248x128xf32>, vector<8x128xf32> -> vector<8x128xf32>
    %758 = vector.broadcast %9 : vector<8x1xf32> to vector<8x128xf32>
    %759 = arith.addf %757, %758 : vector<8x128xf32>
    %760 = vector.extract_strided_slice %503 {offsets = [24, 0], sizes = [8, 128], strides = [1, 1]} : vector<32x128xf32> to vector<8x128xf32>
    %761 = vector.extract_strided_slice %508 {offsets = [24, 0], sizes = [8, 128], strides = [1, 1]} : vector<32x128xf32> to vector<8x128xf32>
    %762 = vector.extract_strided_slice %513 {offsets = [24, 0], sizes = [8, 128], strides = [1, 1]} : vector<32x128xf32> to vector<8x128xf32>
    %763 = vector.extract_strided_slice %518 {offsets = [24, 0], sizes = [8, 128], strides = [1, 1]} : vector<32x128xf32> to vector<8x128xf32>
    %764 = vector.extract_strided_slice %523 {offsets = [24, 0], sizes = [8, 128], strides = [1, 1]} : vector<32x128xf32> to vector<8x128xf32>
    %765 = vector.extract_strided_slice %528 {offsets = [24, 0], sizes = [8, 128], strides = [1, 1]} : vector<32x128xf32> to vector<8x128xf32>
    %766 = vector.extract_strided_slice %533 {offsets = [24, 0], sizes = [8, 128], strides = [1, 1]} : vector<32x128xf32> to vector<8x128xf32>
    %767 = vector.extract_strided_slice %538 {offsets = [24, 0], sizes = [8, 128], strides = [1, 1]} : vector<32x128xf32> to vector<8x128xf32>
    %768 = vector.extract_strided_slice %543 {offsets = [24, 0], sizes = [8, 128], strides = [1, 1]} : vector<32x128xf32> to vector<8x128xf32>
    %769 = vector.extract_strided_slice %548 {offsets = [24, 0], sizes = [8, 128], strides = [1, 1]} : vector<32x128xf32> to vector<8x128xf32>
    %770 = vector.extract_strided_slice %553 {offsets = [24, 0], sizes = [8, 128], strides = [1, 1]} : vector<32x128xf32> to vector<8x128xf32>
    %771 = vector.extract_strided_slice %558 {offsets = [24, 0], sizes = [8, 128], strides = [1, 1]} : vector<32x128xf32> to vector<8x128xf32>
    %772 = vector.extract_strided_slice %563 {offsets = [24, 0], sizes = [8, 128], strides = [1, 1]} : vector<32x128xf32> to vector<8x128xf32>
    %773 = vector.extract_strided_slice %568 {offsets = [24, 0], sizes = [8, 128], strides = [1, 1]} : vector<32x128xf32> to vector<8x128xf32>
    %774 = vector.extract_strided_slice %573 {offsets = [24, 0], sizes = [8, 128], strides = [1, 1]} : vector<32x128xf32> to vector<8x128xf32>
    %775 = vector.extract_strided_slice %498 {offsets = [24, 0], sizes = [8, 128], strides = [1, 1]} : vector<32x128xf32> to vector<8x128xf32>
    %776 = vector.extract_strided_slice %578 {offsets = [24, 0], sizes = [8, 128], strides = [1, 1]} : vector<32x128xf32> to vector<8x128xf32>
    %777 = vector.extract_strided_slice %583 {offsets = [24, 0], sizes = [8, 128], strides = [1, 1]} : vector<32x128xf32> to vector<8x128xf32>
    %778 = vector.extract_strided_slice %588 {offsets = [24, 0], sizes = [8, 128], strides = [1, 1]} : vector<32x128xf32> to vector<8x128xf32>
    %779 = vector.extract_strided_slice %593 {offsets = [24, 0], sizes = [8, 128], strides = [1, 1]} : vector<32x128xf32> to vector<8x128xf32>
    %780 = vector.extract_strided_slice %598 {offsets = [24, 0], sizes = [8, 128], strides = [1, 1]} : vector<32x128xf32> to vector<8x128xf32>
    %781 = vector.extract_strided_slice %603 {offsets = [24, 0], sizes = [8, 128], strides = [1, 1]} : vector<32x128xf32> to vector<8x128xf32>
    %782 = vector.extract_strided_slice %608 {offsets = [24, 0], sizes = [8, 128], strides = [1, 1]} : vector<32x128xf32> to vector<8x128xf32>
    %783 = vector.extract_strided_slice %613 {offsets = [24, 0], sizes = [8, 128], strides = [1, 1]} : vector<32x128xf32> to vector<8x128xf32>
    %784 = vector.extract_strided_slice %618 {offsets = [24, 0], sizes = [8, 128], strides = [1, 1]} : vector<32x128xf32> to vector<8x128xf32>
    %785 = vector.extract_strided_slice %623 {offsets = [24, 0], sizes = [8, 128], strides = [1, 1]} : vector<32x128xf32> to vector<8x128xf32>
    %786 = vector.extract_strided_slice %628 {offsets = [24, 0], sizes = [8, 128], strides = [1, 1]} : vector<32x128xf32> to vector<8x128xf32>
    %787 = vector.extract_strided_slice %633 {offsets = [24, 0], sizes = [8, 128], strides = [1, 1]} : vector<32x128xf32> to vector<8x128xf32>
    %788 = vector.extract_strided_slice %638 {offsets = [24, 0], sizes = [8, 128], strides = [1, 1]} : vector<32x128xf32> to vector<8x128xf32>
    %789 = vector.extract_strided_slice %643 {offsets = [24, 0], sizes = [8, 128], strides = [1, 1]} : vector<32x128xf32> to vector<8x128xf32>
    %790 = vector.extract_strided_slice %648 {offsets = [24, 0], sizes = [8, 128], strides = [1, 1]} : vector<32x128xf32> to vector<8x128xf32>
    %791 = tpu.concatenate %760, %761, %762, %763, %764, %765, %766, %767, %768, %769, %770, %771, %772, %773, %774, %775 in 0 : vector<8x128xf32>, vector<8x128xf32>, vector<8x128xf32>, vector<8x128xf32>, vector<8x128xf32>, vector<8x128xf32>, vector<8x128xf32>, vector<8x128xf32>, vector<8x128xf32>, vector<8x128xf32>, vector<8x128xf32>, vector<8x128xf32>, vector<8x128xf32>, vector<8x128xf32>, vector<8x128xf32>, vector<8x128xf32> -> vector<128x128xf32>
    %792 = tpu.concatenate %776, %777, %778, %779, %780, %781, %782, %783, %784, %785, %786, %787, %788, %789, %790 in 0 : vector<8x128xf32>, vector<8x128xf32>, vector<8x128xf32>, vector<8x128xf32>, vector<8x128xf32>, vector<8x128xf32>, vector<8x128xf32>, vector<8x128xf32>, vector<8x128xf32>, vector<8x128xf32>, vector<8x128xf32>, vector<8x128xf32>, vector<8x128xf32>, vector<8x128xf32>, vector<8x128xf32> -> vector<120x128xf32>
    %793 = tpu.concatenate %791, %792 in 0 : vector<128x128xf32>, vector<120x128xf32> -> vector<248x128xf32>
    %cst_181 = arith.constant dense<0.000000e+00> : vector<8x128xf32>
    %794 = tpu.matmul %8, %793, %cst_181 {dimension_numbers = #tpu.dot_dimension_numbers<[1], [0], [0], [1], [0, 0, 1, 1], [], []>} : vector<8x248xf32>, vector<248x128xf32>, vector<8x128xf32> -> vector<8x128xf32>
    %795 = vector.broadcast %9 : vector<8x1xf32> to vector<8x128xf32>
    %796 = arith.addf %794, %795 : vector<8x128xf32>
    %797 = tpu.concatenate %685, %722, %759, %796 in 0 : vector<8x128xf32>, vector<8x128xf32>, vector<8x128xf32>, vector<8x128xf32> -> vector<32x128xf32>
    %cst_182 = arith.constant dense<0.000000e+00> : vector<32xf32>
    %798 = vector.multi_reduction <add>, %797, %cst_182 [1] : vector<32x128xf32> to vector<32xf32>
    %799 = vector.shape_cast %798 : vector<32xf32> to vector<32x1xf32>
    %cst_183 = arith.constant 1.280000e+02 : f32
    %800 = vector.broadcast %cst_183 : f32 to vector<32x1xf32>
    %801 = arith.divf %799, %800 : vector<32x1xf32>
    %802 = arith.mulf %797, %797 : vector<32x128xf32>
    %cst_184 = arith.constant dense<0.000000e+00> : vector<32xf32>
    %803 = vector.multi_reduction <add>, %802, %cst_184 [1] : vector<32x128xf32> to vector<32xf32>
    %804 = vector.shape_cast %803 : vector<32xf32> to vector<32x1xf32>
    %cst_185 = arith.constant 1.280000e+02 : f32
    %805 = vector.broadcast %cst_185 : f32 to vector<32x1xf32>
    %806 = arith.divf %804, %805 : vector<32x1xf32>
    %807 = arith.mulf %801, %801 : vector<32x1xf32>
    %808 = arith.subf %806, %807 : vector<32x1xf32>
    %cst_186 = arith.constant 0.000000e+00 : f32
    %809 = vector.broadcast %cst_186 : f32 to vector<32x1xf32>
    %810 = arith.maximumf %808, %809 : vector<32x1xf32>
    %811 = vector.broadcast %801 : vector<32x1xf32> to vector<32x128xf32>
    %812 = arith.subf %797, %811 : vector<32x128xf32>
    %cst_187 = arith.constant 9.99999974E-6 : f32
    %813 = vector.broadcast %cst_187 : f32 to vector<32x1xf32>
    %814 = arith.addf %810, %813 : vector<32x1xf32>
    %815 = math.rsqrt %814 : vector<32x1xf32>
    %816 = vector.broadcast %815 : vector<32x1xf32> to vector<32x128xf32>
    %817 = arith.mulf %812, %816 : vector<32x128xf32>
    %818 = vector.broadcast %4 : vector<1x128xf32> to vector<32x128xf32>
    %819 = arith.mulf %817, %818 : vector<32x128xf32>
    %820 = vector.broadcast %5 : vector<1x128xf32> to vector<32x128xf32>
    %821 = arith.addf %819, %820 : vector<32x128xf32>
    %822 = arith.mulf %821, %821 : vector<32x128xf32>
    %823 = arith.mulf %821, %822 : vector<32x128xf32>
    %cst_188 = arith.constant 4.471500e-02 : f32
    %824 = vector.broadcast %cst_188 : f32 to vector<32x128xf32>
    %825 = arith.mulf %824, %823 : vector<32x128xf32>
    %826 = arith.addf %821, %825 : vector<32x128xf32>
    %cst_189 = arith.constant 0.797884583 : f32
    %827 = vector.broadcast %cst_189 : f32 to vector<32x128xf32>
    %828 = arith.mulf %827, %826 : vector<32x128xf32>
    %829 = math.tanh %828 : vector<32x128xf32>
    %cst_190 = arith.constant 1.000000e+00 : f32
    %830 = vector.broadcast %cst_190 : f32 to vector<32x128xf32>
    %831 = arith.addf %830, %829 : vector<32x128xf32>
    %cst_191 = arith.constant 5.000000e-01 : f32
    %832 = vector.broadcast %cst_191 : f32 to vector<32x128xf32>
    %833 = arith.mulf %832, %831 : vector<32x128xf32>
    %834 = arith.mulf %821, %833 : vector<32x128xf32>
    %835 = arith.addf %474, %834 : vector<32x128xf32>
    %cst_192 = arith.constant dense<0.000000e+00> : vector<32xf32>
    %836 = vector.multi_reduction <add>, %835, %cst_192 [1] : vector<32x128xf32> to vector<32xf32>
    %837 = vector.shape_cast %836 : vector<32xf32> to vector<32x1xf32>
    %cst_193 = arith.constant 1.280000e+02 : f32
    %838 = vector.broadcast %cst_193 : f32 to vector<32x1xf32>
    %839 = arith.divf %837, %838 : vector<32x1xf32>
    %840 = arith.mulf %835, %835 : vector<32x128xf32>
    %cst_194 = arith.constant dense<0.000000e+00> : vector<32xf32>
    %841 = vector.multi_reduction <add>, %840, %cst_194 [1] : vector<32x128xf32> to vector<32xf32>
    %842 = vector.shape_cast %841 : vector<32xf32> to vector<32x1xf32>
    %cst_195 = arith.constant 1.280000e+02 : f32
    %843 = vector.broadcast %cst_195 : f32 to vector<32x1xf32>
    %844 = arith.divf %842, %843 : vector<32x1xf32>
    %845 = arith.mulf %839, %839 : vector<32x1xf32>
    %846 = arith.subf %844, %845 : vector<32x1xf32>
    %cst_196 = arith.constant 0.000000e+00 : f32
    %847 = vector.broadcast %cst_196 : f32 to vector<32x1xf32>
    %848 = arith.maximumf %846, %847 : vector<32x1xf32>
    %849 = vector.broadcast %839 : vector<32x1xf32> to vector<32x128xf32>
    %850 = arith.subf %835, %849 : vector<32x128xf32>
    %cst_197 = arith.constant 9.99999974E-6 : f32
    %851 = vector.broadcast %cst_197 : f32 to vector<32x1xf32>
    %852 = arith.addf %848, %851 : vector<32x1xf32>
    %853 = math.rsqrt %852 : vector<32x1xf32>
    %854 = vector.broadcast %853 : vector<32x1xf32> to vector<32x128xf32>
    %855 = arith.mulf %850, %854 : vector<32x128xf32>
    %856 = vector.broadcast %6 : vector<1x128xf32> to vector<32x128xf32>
    %857 = arith.mulf %855, %856 : vector<32x128xf32>
    %858 = vector.broadcast %7 : vector<1x128xf32> to vector<32x128xf32>
    %859 = arith.addf %857, %858 : vector<32x128xf32>
    %cst_198 = arith.constant dense<0.000000e+00> : vector<32x128xf32>
    %860 = tpu.matmul %859, %10, %cst_198 {dimension_numbers = #tpu.dot_dimension_numbers<[1], [0], [0], [1], [0, 0, 1, 1], [], []>} : vector<32x128xf32>, vector<128x128xf32>, vector<32x128xf32> -> vector<32x128xf32>
    %861 = vector.broadcast %11 : vector<1x128xf32> to vector<32x128xf32>
    %862 = arith.addf %860, %861 : vector<32x128xf32>
    %863 = arith.mulf %862, %862 : vector<32x128xf32>
    %864 = arith.mulf %862, %863 : vector<32x128xf32>
    %cst_199 = arith.constant 4.471500e-02 : f32
    %865 = vector.broadcast %cst_199 : f32 to vector<32x128xf32>
    %866 = arith.mulf %865, %864 : vector<32x128xf32>
    %867 = arith.addf %862, %866 : vector<32x128xf32>
    %cst_200 = arith.constant 0.797884583 : f32
    %868 = vector.broadcast %cst_200 : f32 to vector<32x128xf32>
    %869 = arith.mulf %868, %867 : vector<32x128xf32>
    %870 = math.tanh %869 : vector<32x128xf32>
    %cst_201 = arith.constant 1.000000e+00 : f32
    %871 = vector.broadcast %cst_201 : f32 to vector<32x128xf32>
    %872 = arith.addf %871, %870 : vector<32x128xf32>
    %cst_202 = arith.constant 5.000000e-01 : f32
    %873 = vector.broadcast %cst_202 : f32 to vector<32x128xf32>
    %874 = arith.mulf %873, %872 : vector<32x128xf32>
    %875 = arith.mulf %862, %874 : vector<32x128xf32>
    %876 = arith.addf %835, %875 : vector<32x128xf32>
    %877 = vector.shape_cast %876 : vector<32x128xf32> to vector<4x8x128xf32>
    %c0_203 = arith.constant 0 : index
    %c0_204 = arith.constant 0 : index
    %c0_205 = arith.constant 0 : index
    %878 = vector.load %arg12[%c0_203, %c0_204, %c0_205] : memref<4x8x128xf32, #tpu.memory_space<vmem>>, vector<4x8x128xf32>
    tpu.vector_store %arg12[%c0_203, %c0_204, %c0_205], %877 {strides = array<i32>} : memref<4x8x128xf32, #tpu.memory_space<vmem>>, vector<4x8x128xf32>,
    return
  }
  func.func @transform_0(%arg0: i32) -> (i32, i32, i32) {
    %c0_i32 = arith.constant 0 : i32
    %c0_i32_0 = arith.constant 0 : i32
    %c0_i32_1 = arith.constant 0 : i32
    return %arg0, %c0_i32, %c0_i32_0 : i32, i32, i32
  }
  func.func @transform_1(%arg0: i32) -> (i32, i32) {
    %c0_i32 = arith.constant 0 : i32
    %c0_i32_0 = arith.constant 0 : i32
    %c0_i32_1 = arith.constant 0 : i32
    return %c0_i32, %c0_i32_0 : i32, i32
  }
  func.func @transform_2(%arg0: i32) -> (i32, i32) {
    %c0_i32 = arith.constant 0 : i32
    %c0_i32_0 = arith.constant 0 : i32
    %c0_i32_1 = arith.constant 0 : i32
    return %c0_i32, %c0_i32_0 : i32, i32
  }
  func.func @transform_3(%arg0: i32) -> (i32, i32) {
    %c0_i32 = arith.constant 0 : i32
    %c0_i32_0 = arith.constant 0 : i32
    %c0_i32_1 = arith.constant 0 : i32
    return %c0_i32, %c0_i32_0 : i32, i32
  }
  func.func @transform_4(%arg0: i32) -> (i32, i32) {
    %c0_i32 = arith.constant 0 : i32
    %c0_i32_0 = arith.constant 0 : i32
    %c0_i32_1 = arith.constant 0 : i32
    return %c0_i32, %c0_i32_0 : i32, i32
  }
  func.func @transform_5(%arg0: i32) -> (i32, i32) {
    %c0_i32 = arith.constant 0 : i32
    %c0_i32_0 = arith.constant 0 : i32
    %c0_i32_1 = arith.constant 0 : i32
    return %c0_i32, %c0_i32_0 : i32, i32
  }
  func.func @transform_6(%arg0: i32) -> (i32, i32) {
    %c0_i32 = arith.constant 0 : i32
    %c0_i32_0 = arith.constant 0 : i32
    %c0_i32_1 = arith.constant 0 : i32
    return %c0_i32, %c0_i32_0 : i32, i32
  }
  func.func @transform_7(%arg0: i32) -> (i32, i32) {
    %c0_i32 = arith.constant 0 : i32
    %c0_i32_0 = arith.constant 0 : i32
    %c0_i32_1 = arith.constant 0 : i32
    return %c0_i32, %c0_i32_0 : i32, i32
  }
  func.func @transform_8(%arg0: i32) -> (i32, i32) {
    %c0_i32 = arith.constant 0 : i32
    %c0_i32_0 = arith.constant 0 : i32
    %c0_i32_1 = arith.constant 0 : i32
    return %c0_i32, %c0_i32_0 : i32, i32
  }
  func.func @transform_9(%arg0: i32) -> (i32, i32) {
    %c0_i32 = arith.constant 0 : i32
    %c0_i32_0 = arith.constant 0 : i32
    %c0_i32_1 = arith.constant 0 : i32
    return %c0_i32, %c0_i32_0 : i32, i32
  }
  func.func @transform_10(%arg0: i32) -> (i32, i32) {
    %c0_i32 = arith.constant 0 : i32
    %c0_i32_0 = arith.constant 0 : i32
    %c0_i32_1 = arith.constant 0 : i32
    return %c0_i32, %c0_i32_0 : i32, i32
  }
  func.func @transform_11(%arg0: i32) -> (i32, i32, i32) {
    %c0_i32 = arith.constant 0 : i32
    %c0_i32_0 = arith.constant 0 : i32
    %c0_i32_1 = arith.constant 0 : i32
    return %arg0, %c0_i32, %c0_i32_0 : i32, i32, i32
  }
}

</mosaic_0001>

<llo_original>
// kernel: tpu_custom_call.1
$region0: #{tpu_custom_call.1}
  #allocation0 [shape = 'u32[]', space=smem, size = 0x4, offset = 0x4, fixed_abs, tag = 'smem constant byte address 0x4 - core index']
  #allocation1 [shape = 'u32[144,128]{1,0:T(1,128)}', space=vmem, size = 0x12000, scoped, tag = 'internal scratch']
  %s0 = inlined_call_operand.hbm [shape: f32[8,8,128], index: 0, kind: input, shape index: {}]
  %s1 = inlined_call_operand.vmem [shape: f32[1,128], index: 1, kind: input, shape index: {}]
  %s2 = inlined_call_operand.vmem [shape: f32[1,128], index: 2, kind: input, shape index: {}]
  %s3 = inlined_call_operand.vmem [shape: f32[8,248], index: 3, kind: input, shape index: {}]
  %s4 = inlined_call_operand.vmem [shape: f32[8,1], index: 4, kind: input, shape index: {}]
  %s5 = inlined_call_operand.vmem [shape: f32[1,128], index: 5, kind: input, shape index: {}]
  %s6 = inlined_call_operand.vmem [shape: f32[1,128], index: 6, kind: input, shape index: {}]
  %s7 = inlined_call_operand.vmem [shape: f32[1,128], index: 7, kind: input, shape index: {}]
  %s8 = inlined_call_operand.vmem [shape: f32[1,128], index: 8, kind: input, shape index: {}]
  %s9 = inlined_call_operand.hbm [shape: f32[128,128], index: 9, kind: input, shape index: {}]
  %s10 = inlined_call_operand.vmem [shape: f32[1,128], index: 10, kind: input, shape index: {}]
  %s11 = inlined_call_operand.hbm [shape: f32[8,8,128], index: 11, kind: output, shape index: {}]
  %s12 = sld [smem:[#allocation0]]
  $region85: #{tpu_custom_call.1} parent=0
    _
  %s14 = ssub.s32 1, %s12
  %s15 = scalar_select 0, %s14, %s12
  $region1: #{tpu_custom_call.1} parent=0
    #allocation2 [shape = 'u8[32768]{0}', space=vmem, size = 0x8000, scoped, tag = 'input window, operand 0']
    #allocation3 [shape = 's32[2]{0}', space=sflag, size = 0x8, scoped, tag = 'scoped memory for tpu_custom_call.1']
    #allocation4 [shape = 's32[2]{0}', space=sflag, size = 0x8, scoped, tag = 'scoped memory for tpu_custom_call.1']
    #allocation5 [shape = 'u8[65536]{0}', space=vmem, size = 0x10000, scoped, tag = 'input window, operand 9, single buffered']
    #allocation6 [shape = 's32[1]{0}', space=sflag, size = 0x4, scoped, tag = 'scoped memory for tpu_custom_call.1']
    #allocation7 [shape = 'u8[32768]{0}', space=vmem, size = 0x8000, scoped, tag = 'output window, operand 0']
    %16 = vsyncpa [#allocation3], 0
    %s17 = scalar_lea.sflag [#allocation3], 1
    %18 = vsyncpa %s17, 0
    %19 = vsyncpa [#allocation6], 0
    %20 = vsyncpa [#allocation4], 0
    %s21 = scalar_lea.sflag [#allocation4], 1
    %22 = vsyncpa %s21, 0
    loop: start=0, step=1, limit=4
    $region2: #{tpu_custom_call.1} parent=1 // loop_pre_header
      _
    $region3: #{tpu_custom_call.1} parent=1 // loop_header
      %s24 = sphi 0, %s28
      %p25 = scmp.ge.s32.totalorder %s24, 4
      %s34 = sphi 0, %s36
      %s37 = sphi 0, %s34
      %s38 = sphi 0, %s37
      %s54 = sphi 0, %s38
      %s58 = sphi 0, %s58
      %s60 = sphi 0, %s58
      %s61 = sphi 0, %s60
      %s75 = sphi 0, %s61
      %s79 = sphi 0, %s79
      %s81 = sphi 0, %s79
      %s82 = sphi 0, %s81
      %s96 = sphi 0, %s82
      %s100 = sphi 0, %s100
      %s102 = sphi 0, %s100
      %s103 = sphi 0, %s102
      %s117 = sphi 0, %s103
      %s121 = sphi 0, %s121
      %s123 = sphi 0, %s121
      %s124 = sphi 0, %s123
      %s138 = sphi 0, %s124
      %s142 = sphi 0, %s142
      %s144 = sphi 0, %s142
      %s145 = sphi 0, %s144
      %s159 = sphi 0, %s145
      %s163 = sphi 0, %s163
      %s165 = sphi 0, %s163
      %s166 = sphi 0, %s165
      %s180 = sphi 0, %s166
      %s184 = sphi 0, %s184
      %s186 = sphi 0, %s184
      %s187 = sphi 0, %s186
      %s201 = sphi 0, %s187
      %s205 = sphi 0, %s205
      %s207 = sphi 0, %s205
      %s208 = sphi 0, %s207
      %s222 = sphi 0, %s208
      %s226 = sphi 0, %s226
      %s228 = sphi 0, %s226
      %s229 = sphi 0, %s228
      %s243 = sphi 0, %s229
      %s247 = sphi 0, %s247
      %s249 = sphi 0, %s247
      %s250 = sphi 0, %s249
      %s264 = sphi 0, %s250
      %s270 = sphi 0, %s272
      %s273 = sphi 0, %s270
      %s274 = sphi 0, %s273
      %s290 = sphi 0, %s274
    $region4: #{tpu_custom_call.1} parent=1 // loop_header_branch
      %27 = sbr.rel (%p25) target = $region8
    $region5: #{tpu_custom_call.1} parent=1 // loop_body
      %s29 = ssub.s32 %s24, 1
      %s30 = ssub.s32 %s24, 2
      %s31 = sadd.s32 %s24, 1
      %s32 = ssub.s32 %s24, %s31
      %p33 = scmp.eq.s32.totalorder %s32, 0
      %s35 = sadd.s32 %s34, 1
      %s36 = scalar_select %p33, %s34, %s35
      %p39 = pneg %p33
      %p40 = scmp.eq.s32.totalorder %s24, 1
      %p41 = por %p39, %p40
      %p42 = scmp.ne.s32.totalorder %s34, %s37
      %p43 = scmp.eq.s32.totalorder %s24, 0
      %p44 = por %p42, %p43
      %p45 = scmp.ne.s32.totalorder %s34, %s37
      %p46 = scmp.eq.s32.totalorder %s29, 1
      %p47 = por %p45, %p46
      %p48 = scmp.ne.s32.totalorder %s37, %s38
      %p49 = scmp.eq.s32.totalorder %s29, 0
      %p50 = por %p48, %p49
      %p51 = scmp.ne.s32.totalorder %s37, %s38
      %p52 = scmp.eq.s32.totalorder %s30, 1
      %p53 = por %p51, %p52
      %p55 = scmp.ne.s32.totalorder %s38, %s54
      %p56 = scmp.eq.s32.totalorder %s30, 0
      %p57 = por %p55, %p56
      %s59 = sadd.s32 %s58, 1
      %p62 = scmp.eq.s32.totalorder %s24, 1
      %p63 = scmp.ne.s32.totalorder %s58, %s60
      %p64 = scmp.eq.s32.totalorder %s24, 0
      %p65 = por %p63, %p64
      %p66 = scmp.ne.s32.totalorder %s58, %s60
      %p67 = scmp.eq.s32.totalorder %s29, 1
      %p68 = por %p66, %p67
      %p69 = scmp.ne.s32.totalorder %s60, %s61
      %p70 = scmp.eq.s32.totalorder %s29, 0
      %p71 = por %p69, %p70
      %p72 = scmp.ne.s32.totalorder %s60, %s61
      %p73 = scmp.eq.s32.totalorder %s30, 1
      %p74 = por %p72, %p73
      %p76 = scmp.ne.s32.totalorder %s61, %s75
      %p77 = scmp.eq.s32.totalorder %s30, 0
      %p78 = por %p76, %p77
      %s80 = sadd.s32 %s79, 1
      %p83 = scmp.eq.s32.totalorder %s24, 1
      %p84 = scmp.ne.s32.totalorder %s79, %s81
      %p85 = scmp.eq.s32.totalorder %s24, 0
      %p86 = por %p84, %p85
      %p87 = scmp.ne.s32.totalorder %s79, %s81
      %p88 = scmp.eq.s32.totalorder %s29, 1
      %p89 = por %p87, %p88
      %p90 = scmp.ne.s32.totalorder %s81, %s82
      %p91 = scmp.eq.s32.totalorder %s29, 0
      %p92 = por %p90, %p91
      %p93 = scmp.ne.s32.totalorder %s81, %s82
      %p94 = scmp.eq.s32.totalorder %s30, 1
      %p95 = por %p93, %p94
      %p97 = scmp.ne.s32.totalorder %s82, %s96
      %p98 = scmp.eq.s32.totalorder %s30, 0
      %p99 = por %p97, %p98
      %s101 = sadd.s32 %s100, 1
      %p104 = scmp.eq.s32.totalorder %s24, 1
      %p105 = scmp.ne.s32.totalorder %s100, %s102
      %p106 = scmp.eq.s32.totalorder %s24, 0
      %p107 = por %p105, %p106
      %p108 = scmp.ne.s32.totalorder %s100, %s102
      %p109 = scmp.eq.s32.totalorder %s29, 1
      %p110 = por %p108, %p109
      %p111 = scmp.ne.s32.totalorder %s102, %s103
      %p112 = scmp.eq.s32.totalorder %s29, 0
      %p113 = por %p111, %p112
      %p114 = scmp.ne.s32.totalorder %s102, %s103
      %p115 = scmp.eq.s32.totalorder %s30, 1
      %p116 = por %p114, %p115
      %p118 = scmp.ne.s32.totalorder %s103, %s117
      %p119 = scmp.eq.s32.totalorder %s30, 0
      %p120 = por %p118, %p119
      %s122 = sadd.s32 %s121, 1
      %p125 = scmp.eq.s32.totalorder %s24, 1
      %p126 = scmp.ne.s32.totalorder %s121, %s123
      %p127 = scmp.eq.s32.totalorder %s24, 0
      %p128 = por %p126, %p127
      %p129 = scmp.ne.s32.totalorder %s121, %s123
      %p130 = scmp.eq.s32.totalorder %s29, 1
      %p131 = por %p129, %p130
      %p132 = scmp.ne.s32.totalorder %s123, %s124
      %p133 = scmp.eq.s32.totalorder %s29, 0
      %p134 = por %p132, %p133
      %p135 = scmp.ne.s32.totalorder %s123, %s124
      %p136 = scmp.eq.s32.totalorder %s30, 1
      %p137 = por %p135, %p136
      %p139 = scmp.ne.s32.totalorder %s124, %s138
      %p140 = scmp.eq.s32.totalorder %s30, 0
      %p141 = por %p139, %p140
      %s143 = sadd.s32 %s142, 1
      %p146 = scmp.eq.s32.totalorder %s24, 1
      %p147 = scmp.ne.s32.totalorder %s142, %s144
      %p148 = scmp.eq.s32.totalorder %s24, 0
      %p149 = por %p147, %p148
      %p150 = scmp.ne.s32.totalorder %s142, %s144
      %p151 = scmp.eq.s32.totalorder %s29, 1
      %p152 = por %p150, %p151
      %p153 = scmp.ne.s32.totalorder %s144, %s145
      %p154 = scmp.eq.s32.totalorder %s29, 0
      %p155 = por %p153, %p154
      %p156 = scmp.ne.s32.totalorder %s144, %s145
      %p157 = scmp.eq.s32.totalorder %s30, 1
      %p158 = por %p156, %p157
      %p160 = scmp.ne.s32.totalorder %s145, %s159
      %p161 = scmp.eq.s32.totalorder %s30, 0
      %p162 = por %p160, %p161
      %s164 = sadd.s32 %s163, 1
      %p167 = scmp.eq.s32.totalorder %s24, 1
      %p168 = scmp.ne.s32.totalorder %s163, %s165
      %p169 = scmp.eq.s32.totalorder %s24, 0
      %p170 = por %p168, %p169
      %p171 = scmp.ne.s32.totalorder %s163, %s165
      %p172 = scmp.eq.s32.totalorder %s29, 1
      %p173 = por %p171, %p172
      %p174 = scmp.ne.s32.totalorder %s165, %s166
      %p175 = scmp.eq.s32.totalorder %s29, 0
      %p176 = por %p174, %p175
      %p177 = scmp.ne.s32.totalorder %s165, %s166
      %p178 = scmp.eq.s32.totalorder %s30, 1
      %p179 = por %p177, %p178
      %p181 = scmp.ne.s32.totalorder %s166, %s180
      %p182 = scmp.eq.s32.totalorder %s30, 0
      %p183 = por %p181, %p182
      %s185 = sadd.s32 %s184, 1
      %p188 = scmp.eq.s32.totalorder %s24, 1
      %p189 = scmp.ne.s32.totalorder %s184, %s186
      %p190 = scmp.eq.s32.totalorder %s24, 0
      %p191 = por %p189, %p190
      %p192 = scmp.ne.s32.totalorder %s184, %s186
      %p193 = scmp.eq.s32.totalorder %s29, 1
      %p194 = por %p192, %p193
      %p195 = scmp.ne.s32.totalorder %s186, %s187
      %p196 = scmp.eq.s32.totalorder %s29, 0
      %p197 = por %p195, %p196
      %p198 = scmp.ne.s32.totalorder %s186, %s187
      %p199 = scmp.eq.s32.totalorder %s30, 1
      %p200 = por %p198, %p199
      %p202 = scmp.ne.s32.totalorder %s187, %s201
      %p203 = scmp.eq.s32.totalorder %s30, 0
      %p204 = por %p202, %p203
      %s206 = sadd.s32 %s205, 1
      %p209 = scmp.eq.s32.totalorder %s24, 1
      %p210 = scmp.ne.s32.totalorder %s205, %s207
      %p211 = scmp.eq.s32.totalorder %s24, 0
      %p212 = por %p210, %p211
      %p213 = scmp.ne.s32.totalorder %s205, %s207
      %p214 = scmp.eq.s32.totalorder %s29, 1
      %p215 = por %p213, %p214
      %p216 = scmp.ne.s32.totalorder %s207, %s208
      %p217 = scmp.eq.s32.totalorder %s29, 0
      %p218 = por %p216, %p217
      %p219 = scmp.ne.s32.totalorder %s207, %s208
      %p220 = scmp.eq.s32.totalorder %s30, 1
      %p221 = por %p219, %p220
      %p223 = scmp.ne.s32.totalorder %s208, %s222
      %p224 = scmp.eq.s32.totalorder %s30, 0
      %p225 = por %p223, %p224
      %s227 = sadd.s32 %s226, 1
      %p230 = scmp.eq.s32.totalorder %s24, 1
      %p231 = scmp.ne.s32.totalorder %s226, %s228
      %p232 = scmp.eq.s32.totalorder %s24, 0
      %p233 = por %p231, %p232
      %p234 = scmp.ne.s32.totalorder %s226, %s228
      %p235 = scmp.eq.s32.totalorder %s29, 1
      %p236 = por %p234, %p235
      %p237 = scmp.ne.s32.totalorder %s228, %s229
      %p238 = scmp.eq.s32.totalorder %s29, 0
      %p239 = por %p237, %p238
      %p240 = scmp.ne.s32.totalorder %s228, %s229
      %p241 = scmp.eq.s32.totalorder %s30, 1
      %p242 = por %p240, %p241
      %p244 = scmp.ne.s32.totalorder %s229, %s243
      %p245 = scmp.eq.s32.totalorder %s30, 0
      %p246 = por %p244, %p245
      %s248 = sadd.s32 %s247, 1
      %p251 = scmp.eq.s32.totalorder %s24, 1
      %p252 = scmp.ne.s32.totalorder %s247, %s249
      %p253 = scmp.eq.s32.totalorder %s24, 0
      %p254 = por %p252, %p253
      %p255 = scmp.ne.s32.totalorder %s247, %s249
      %p256 = scmp.eq.s32.totalorder %s29, 1
      %p257 = por %p255, %p256
      %p258 = scmp.ne.s32.totalorder %s249, %s250
      %p259 = scmp.eq.s32.totalorder %s29, 0
      %p260 = por %p258, %p259
      %p261 = scmp.ne.s32.totalorder %s249, %s250
      %p262 = scmp.eq.s32.totalorder %s30, 1
      %p263 = por %p261, %p262
      %p265 = scmp.ne.s32.totalorder %s250, %s264
      %p266 = scmp.eq.s32.totalorder %s30, 0
      %p267 = por %p265, %p266
      %s268 = ssub.s32 %s24, %s31
      %p269 = scmp.eq.s32.totalorder %s268, 0
      %s271 = sadd.s32 %s270, 1
      %s272 = scalar_select %p269, %s270, %s271
      %p275 = pneg %p269
      %p276 = scmp.eq.s32.totalorder %s24, 1
      %p277 = por %p275, %p276
      %p278 = scmp.ne.s32.totalorder %s270, %s273
      %p279 = scmp.eq.s32.totalorder %s24, 0
      %p280 = por %p278, %p279
      %p281 = scmp.ne.s32.totalorder %s270, %s273
      %p282 = scmp.eq.s32.totalorder %s29, 1
      %p283 = por %p281, %p282
      %p284 = scmp.ne.s32.totalorder %s273, %s274
      %p285 = scmp.eq.s32.totalorder %s29, 0
      %p286 = por %p284, %p285
      %p287 = scmp.ne.s32.totalorder %s273, %s274
      %p288 = scmp.eq.s32.totalorder %s30, 1
      %p289 = por %p287, %p288
      %p291 = scmp.ne.s32.totalorder %s274, %s290
      %p292 = scmp.eq.s32.totalorder %s30, 0
      %p293 = por %p291, %p292
      %p294 = scmp.le.s32.totalorder 1, %s24
      %p295 = scmp.lt.s32.totalorder %s24, 3
      %p296 = pnand %p294, %p295
      %p297 = pneg %p296
      // Predicated region
      $region9: #{tpu_custom_call.1} parent=5 // pred_check
        _
      $region10: #{tpu_custom_call.1} parent=5 // pred_check_branch
        %299 = sbr.rel (%p296) target = $region12
      $region11: #{tpu_custom_call.1} parent=5 // pred_region
        %s300 = ssub.s32 %s24, 1
        // Predicated region
        $region13: #{tpu_custom_call.1} parent=11 // pred_check
          %p301 = pneg %p71
        $region14: #{tpu_custom_call.1} parent=11 // pred_check_branch
          %303 = sbr.rel (%p301) target = $region16
        $region15: #{tpu_custom_call.1} parent=11 // pred_region
          _
        $region16: #{tpu_custom_call.1} parent=11 // pred_fallthru
          _
        // Predicated region
        $region17: #{tpu_custom_call.1} parent=11 // pred_check
          %p304 = pneg %p92
        $region18: #{tpu_custom_call.1} parent=11 // pred_check_branch
          %306 = sbr.rel (%p304) target = $region20
        $region19: #{tpu_custom_call.1} parent=11 // pred_region
          _
        $region20: #{tpu_custom_call.1} parent=11 // pred_fallthru
          _
        // Predicated region
        $region21: #{tpu_custom_call.1} parent=11 // pred_check
          %p307 = pneg %p113
        $region22: #{tpu_custom_call.1} parent=11 // pred_check_branch
          %309 = sbr.rel (%p307) target = $region24
        $region23: #{tpu_custom_call.1} parent=11 // pred_region
          _
        $region24: #{tpu_custom_call.1} parent=11 // pred_fallthru
          _
        // Predicated region
        $region25: #{tpu_custom_call.1} parent=11 // pred_check
          %p310 = pneg %p134
        $region26: #{tpu_custom_call.1} parent=11 // pred_check_branch
          %312 = sbr.rel (%p310) target = $region28
        $region27: #{tpu_custom_call.1} parent=11 // pred_region
          _
        $region28: #{tpu_custom_call.1} parent=11 // pred_fallthru
          _
        // Predicated region
        $region29: #{tpu_custom_call.1} parent=11 // pred_check
          %p313 = pneg %p155
        $region30: #{tpu_custom_call.1} parent=11 // pred_check_branch
          %315 = sbr.rel (%p313) target = $region32
        $region31: #{tpu_custom_call.1} parent=11 // pred_region
          _
        $region32: #{tpu_custom_call.1} parent=11 // pred_fallthru
          _
        // Predicated region
        $region33: #{tpu_custom_call.1} parent=11 // pred_check
          %p316 = pneg %p176
        $region34: #{tpu_custom_call.1} parent=11 // pred_check_branch
          %318 = sbr.rel (%p316) target = $region36
        $region35: #{tpu_custom_call.1} parent=11 // pred_region
          _
        $region36: #{tpu_custom_call.1} parent=11 // pred_fallthru
          _
        // Predicated region
        $region37: #{tpu_custom_call.1} parent=11 // pred_check
          %p319 = pneg %p197
        $region38: #{tpu_custom_call.1} parent=11 // pred_check_branch
          %321 = sbr.rel (%p319) target = $region40
        $region39: #{tpu_custom_call.1} parent=11 // pred_region
          _
        $region40: #{tpu_custom_call.1} parent=11 // pred_fallthru
          _
        // Predicated region
        $region41: #{tpu_custom_call.1} parent=11 // pred_check
          %p322 = pneg %p218
        $region42: #{tpu_custom_call.1} parent=11 // pred_check_branch
          %324 = sbr.rel (%p322) target = $region44
        $region43: #{tpu_custom_call.1} parent=11 // pred_region
          _
        $region44: #{tpu_custom_call.1} parent=11 // pred_fallthru
          _
        // Predicated region
        $region45: #{tpu_custom_call.1} parent=11 // pred_check
          %p325 = pneg %p239
        $region46: #{tpu_custom_call.1} parent=11 // pred_check_branch
          %327 = sbr.rel (%p325) target = $region48
        $region47: #{tpu_custom_call.1} parent=11 // pred_region
          %s329 = ssub.s32 2048, 2048
          %330 = vsyncadd [#allocation6], %s329
          %s331 = sshll.u32 [#allocation5], 4
          %s332 = int_to_ptr.vmem [resolvable:$true] %s331
          %337 = dma.hbm_to_vmem [thread:$0]  %s9, 2048, %s332, [#allocation6], 128, 128, 8
        $region48: #{tpu_custom_call.1} parent=11 // pred_fallthru
          _
        // Predicated region
        $region49: #{tpu_custom_call.1} parent=11 // pred_check
          %p338 = pneg %p260
        $region50: #{tpu_custom_call.1} parent=11 // pred_check_branch
          %340 = sbr.rel (%p338) target = $region52
        $region51: #{tpu_custom_call.1} parent=11 // pred_region
          _
        $region52: #{tpu_custom_call.1} parent=11 // pred_fallthru
          _
      $region12: #{tpu_custom_call.1} parent=5 // pred_fallthru
        _
      %p341 = scmp.lt.s32.totalorder %s24, 2
      // Predicated region
      $region53: #{tpu_custom_call.1} parent=5 // pred_check
        %p342 = pneg %p341
      $region54: #{tpu_custom_call.1} parent=5 // pred_check_branch
        %344 = sbr.rel (%p342) target = $region56
      $region55: #{tpu_custom_call.1} parent=5 // pred_region
        // Predicated region
        $region57: #{tpu_custom_call.1} parent=55 // pred_check
          %p345 = pneg %p44
        $region58: #{tpu_custom_call.1} parent=55 // pred_check_branch
          %347 = sbr.rel (%p345) target = $region60
        $region59: #{tpu_custom_call.1} parent=55 // pred_region
          %s348 = sand.u32 %s34, 1
          %s349 = scalar_lea.sflag [#allocation3], %s348
          %s350 = sand.u32 %s34, 1
          %s351 = smul.addr %s350, 32
          %s352 = scalar_lea.vmem [#allocation2], %s351
          %s353 = smul.u32 4, %s24
          %s355 = ssub.s32 512, 512
          %356 = vsyncadd %s349, %s355
          %s357 = smul.addr %s353, 128
          %s358 = scalar_lea.hbm %s0, %s357
          %s359 = sshll.u32 %s352, 4
          %s360 = int_to_ptr.vmem [resolvable:$true] %s359
          %365 = dma.hbm_to_vmem [thread:$0]  %s358, 512, %s360, %s349, 128, 128, 8
        $region60: #{tpu_custom_call.1} parent=55 // pred_fallthru
          _
      $region56: #{tpu_custom_call.1} parent=5 // pred_fallthru
        _
      %p366 = scmp.le.s32.totalorder 1, %s24
      %p367 = scmp.lt.s32.totalorder %s24, 3
      %p368 = pnand %p366, %p367
      %p369 = pneg %p368
      // Predicated region
      $region61: #{tpu_custom_call.1} parent=5 // pred_check
        _
      $region62: #{tpu_custom_call.1} parent=5 // pred_check_branch
        %371 = sbr.rel (%p368) target = $region64
      $region63: #{tpu_custom_call.1} parent=5 // pred_region
        %s372 = ssub.s32 %s24, 1
        %s373 = sand.u32 %s37, 1
        %s374 = scalar_lea.sflag [#allocation3], %s373
        %s375 = sand.u32 %s37, 1
        %s376 = smul.addr %s375, 32
        %s377 = scalar_lea.vmem [#allocation2], %s376
        // Predicated region
        $region65: #{tpu_custom_call.1} parent=63 // pred_check
          %p378 = pneg %p50
        $region66: #{tpu_custom_call.1} parent=63 // pred_check_branch
          %380 = sbr.rel (%p378) target = $region68
        $region67: #{tpu_custom_call.1} parent=63 // pred_region
          %381 = dma.done %s374, 512
        $region68: #{tpu_custom_call.1} parent=63 // pred_fallthru
          _
        // Predicated region
        $region69: #{tpu_custom_call.1} parent=63 // pred_check
          %p382 = pneg %p239
        $region70: #{tpu_custom_call.1} parent=63 // pred_check_branch
          %384 = sbr.rel (%p382) target = $region72
        $region71: #{tpu_custom_call.1} parent=63 // pred_region
          %385 = dma.done [#allocation6], 2048
        $region72: #{tpu_custom_call.1} parent=63 // pred_fallthru
          _
        %s386 = sand.u32 %s37, 1
        %s387 = scalar_lea.sflag [#allocation3], %s386
        %s388 = sand.u32 %s37, 1
        %s389 = smul.addr %s388, 32
        %s390 = scalar_lea.vmem [#allocation2], %s389
        %p391 = pneg %p50
        %p392 = pneg %p47
        %p393 = pneg %p71
        %p394 = pneg %p68
        %p395 = pneg %p92
        %p396 = pneg %p89
        %p397 = pneg %p113
        %p398 = pneg %p110
        %p399 = pneg %p134
        %p400 = pneg %p131
        %p401 = pneg %p155
        %p402 = pneg %p152
        %p403 = pneg %p176
        %p404 = pneg %p173
        %p405 = pneg %p197
        %p406 = pneg %p194
        %p407 = pneg %p218
        %p408 = pneg %p215
        %p409 = pneg %p239
        %p410 = pneg %p236
        %p411 = pneg %p260
        %p412 = pneg %p257
        %p413 = pneg %p286
        %p414 = pneg %p283
        %s415 = sand.u32 %s273, 1
        %s416 = scalar_lea.sflag [#allocation4], %s415
        %s417 = sand.u32 %s273, 1
        %s418 = smul.addr %s417, 32
        %s419 = scalar_lea.vmem [#allocation7], %s418
        %s420 = smul.u32 4, %s29
        %s421 = smul.u32 4, %s29
        %v422 = vld [vmem:[%s377] sm:$0xff]
        %v423 = vld [vmem:[%s377 + $0x8] sm:$0xff]
        %v424 = vld [vmem:[%s377 + $0x10] sm:$0xff]
        %v425 = vld [vmem:[%s377 + $0x18] sm:$0xff]
        %v426 = vld [vmem:[%s1] sm:$0x1]
        %v427 = vld [vmem:[%s2] sm:$0x1]
        %v428 = vld [vmem:[%s5] sm:$0x1]
        %v429 = vld [vmem:[%s6] sm:$0x1]
        %v430 = vld [vmem:[%s7] sm:$0x1]
        %v431 = vld [vmem:[%s8] sm:$0x1]
        %v432 = vld [vmem:[%s3] sm:$0xff]
        %v433 = vld [vmem:[%s3 + $0x8] sm:$0xff]
        %v434 = vld [vmem:[%s4] sm:$0xff]
        %v435 = vld [vmem:[#allocation5] sm:$0xff]
        %v436 = vld [vmem:[#allocation5 + $0x8] sm:$0xff]
        %v437 = vld [vmem:[#allocation5 + $0x10] sm:$0xff]
        %v438 = vld [vmem:[#allocation5 + $0x18] sm:$0xff]
        %v439 = vld [vmem:[#allocation5 + $0x20] sm:$0xff]
        %v440 = vld [vmem:[#allocation5 + $0x28] sm:$0xff]
        %v441 = vld [vmem:[#allocation5 + $0x30] sm:$0xff]
        %v442 = vld [vmem:[#allocation5 + $0x38] sm:$0xff]
        %v443 = vld [vmem:[#allocation5 + $0x40] sm:$0xff]
        %v444 = vld [vmem:[#allocation5 + $0x48] sm:$0xff]
        %v445 = vld [vmem:[#allocation5 + $0x50] sm:$0xff]
        %v446 = vld [vmem:[#allocation5 + $0x58] sm:$0xff]
        %v447 = vld [vmem:[#allocation5 + $0x60] sm:$0xff]
        %v448 = vld [vmem:[#allocation5 + $0x68] sm:$0xff]
        %v449 = vld [vmem:[#allocation5 + $0x70] sm:$0xff]
        %v450 = vld [vmem:[#allocation5 + $0x78] sm:$0xff]
        %v451 = vld [vmem:[%s10] sm:$0x1]
        %v452 = vlaneseq
        %v453 = vand.u32 %v452, 127
        %vm454 = vcmp.ge.s32.totalorder %v453, 15
        %vm455 = vcmp.ge.s32.totalorder %v453, 14
        %vm456 = vcmp.ge.s32.totalorder %v453, 13
        %vm457 = vcmp.ge.s32.totalorder %v453, 12
        %vm458 = vcmp.ge.s32.totalorder %v453, 11
        %vm459 = vcmp.ge.s32.totalorder %v453, 10
        %vm460 = vcmp.ge.s32.totalorder %v453, 9
        %vm461 = vcmp.ge.s32.totalorder %v453, 8
        %vm462 = vcmp.ge.s32.totalorder %v453, 7
        %vm463 = vcmp.ge.s32.totalorder %v453, 6
        %vm464 = vcmp.ge.s32.totalorder %v453, 5
        %vm465 = vcmp.ge.s32.totalorder %v453, 4
        %vm466 = vcmp.ge.s32.totalorder %v453, 3
        %vm467 = vcmp.ge.s32.totalorder %v453, 2
        %vm468 = vcmp.ge.s32.totalorder %v453, 1
        %vm469 = vcmp.lt.s32.totalorder %v453, 127
        %vm470 = vcmp.lt.s32.totalorder %v453, 126
        %vm471 = vcmp.lt.s32.totalorder %v453, 125
        %vm472 = vcmp.lt.s32.totalorder %v453, 124
        %vm473 = vcmp.lt.s32.totalorder %v453, 123
        %vm474 = vcmp.lt.s32.totalorder %v453, 122
        %vm475 = vcmp.lt.s32.totalorder %v453, 121
        %vm476 = vcmp.lt.s32.totalorder %v453, 120
        %vm477 = vcmp.lt.s32.totalorder %v453, 119
        %vm478 = vcmp.lt.s32.totalorder %v453, 118
        %vm479 = vcmp.lt.s32.totalorder %v453, 117
        %vm480 = vcmp.lt.s32.totalorder %v453, 116
        %vm481 = vcmp.lt.s32.totalorder %v453, 115
        %vm482 = vcmp.lt.s32.totalorder %v453, 114
        %vm483 = vcmp.lt.s32.totalorder %v453, 113
        %484 = vadd.xlane.f32.xlu0 %v422
        %v485 = vpop.xlane.xlu0 %484
        %486 = vadd.xlane.f32.xlu0 %v423
        %v487 = vpop.xlane.xlu0 %486
        %488 = vadd.xlane.f32.xlu0 %v424
        %v489 = vpop.xlane.xlu0 %488
        %490 = vadd.xlane.f32.xlu0 %v425
        %v491 = vpop.xlane.xlu0 %490
        %v492 = vrcp.pop 128.0
        %v493 = vmul.f32 %v485, %v492
        %v494 = vmul.f32 %v487, %v492
        %v495 = vmul.f32 %v489, %v492
        %v496 = vmul.f32 %v491, %v492
        %v497 = vmul.f32 %v422, %v422
        %v498 = vmul.f32 %v423, %v423
        %v499 = vmul.f32 %v424, %v424
        %v500 = vmul.f32 %v425, %v425
        %501 = vadd.xlane.f32.xlu0 %v497
        %v502 = vpop.xlane.xlu0 %501
        %503 = vadd.xlane.f32.xlu0 %v498
        %v504 = vpop.xlane.xlu0 %503
        %505 = vadd.xlane.f32.xlu0 %v499
        %v506 = vpop.xlane.xlu0 %505
        %507 = vadd.xlane.f32.xlu0 %v500
        %v508 = vpop.xlane.xlu0 %507
        %v509 = vmul.f32 %v502, %v492
        %v510 = vmul.f32 %v504, %v492
        %v511 = vmul.f32 %v506, %v492
        %v512 = vmul.f32 %v508, %v492
        %v513 = vmul.f32 %v493, %v493
        %v514 = vmul.f32 %v494, %v494
        %v515 = vmul.f32 %v495, %v495
        %v516 = vmul.f32 %v496, %v496
        %v517 = vsub.f32 %v509, %v513
        %v518 = vsub.f32 %v510, %v514
        %v519 = vsub.f32 %v511, %v515
        %v520 = vsub.f32 %v512, %v516
        %v521 = vmax.f32 %v517, 0.0
        %v522 = vmax.f32 %v518, 0.0
        %v523 = vmax.f32 %v519, 0.0
        %v524 = vmax.f32 %v520, 0.0
        %v525 = vsub.f32 %v422, %v493
        %v526 = vsub.f32 %v423, %v494
        %v527 = vsub.f32 %v424, %v495
        %v528 = vsub.f32 %v425, %v496
        %v529 = vadd.f32 %v521, 1e-05
        %v530 = vadd.f32 %v522, 1e-05
        %v531 = vadd.f32 %v523, 1e-05
        %v532 = vadd.f32 %v524, 1e-05
        %v533 = vrsqrt.pop %v529
        %v534 = vrsqrt.pop %v530
        %v535 = vrsqrt.pop %v531
        %v536 = vrsqrt.pop %v532
        %v537 = vmul.f32 %v525, %v533
        %v538 = vmul.f32 %v526, %v534
        %v539 = vmul.f32 %v527, %v535
        %v540 = vmul.f32 %v528, %v536
        %v542 = vlaneseq
        %v543 = vshrl.u32 %v542, 7
        %v544 = vsub.s32 0, %v543
        %v545 = vrot.slane %v426, %v544
        %v547 = vmul.f32 %v537, %v545
        %v548 = vmul.f32 %v538, %v545
        %v549 = vmul.f32 %v539, %v545
        %v550 = vmul.f32 %v540, %v545
        %v552 = vlaneseq
        %v553 = vshrl.u32 %v552, 7
        %v554 = vsub.s32 0, %v553
        %v555 = vrot.slane %v427, %v554
        %v557 = vadd.f32 %v547, %v555
        %v558 = vadd.f32 %v548, %v555
        %v559 = vadd.f32 %v549, %v555
        %v560 = vadd.f32 %v550, %v555
        %561 = vrot.lane.b32.xlu0 %v557, 15
        %v562 = vpop.permute.xlu0 %561
        %563 = vrot.lane.b32.xlu0 %v558, 15
        %v564 = vpop.permute.xlu0 %563
        %565 = vrot.lane.b32.xlu0 %v559, 15
        %v566 = vpop.permute.xlu0 %565
        %567 = vrot.lane.b32.xlu0 %v560, 15
        %v568 = vpop.permute.xlu0 %567
        %v569 = vsel %vm454, 1, 0
        %vm570 = vcmp.eq.s32.totalorder %v569, 1
        %v571 = vsel %vm570, %v562, 0.0
        %v572 = vsel %vm570, %v564, 0.0
        %v573 = vsel %vm570, %v566, 0.0
        %v574 = vsel %vm570, %v568, 0.0
        %575 = vrot.lane.b32.xlu0 %v557, 14
        %v576 = vpop.permute.xlu0 %575
        %577 = vrot.lane.b32.xlu0 %v558, 14
        %v578 = vpop.permute.xlu0 %577
        %579 = vrot.lane.b32.xlu0 %v559, 14
        %v580 = vpop.permute.xlu0 %579
        %581 = vrot.lane.b32.xlu0 %v560, 14
        %v582 = vpop.permute.xlu0 %581
        %v583 = vsel %vm455, 1, 0
        %vm584 = vcmp.eq.s32.totalorder %v583, 1
        %v585 = vsel %vm584, %v576, 0.0
        %v586 = vsel %vm584, %v578, 0.0
        %v587 = vsel %vm584, %v580, 0.0
        %v588 = vsel %vm584, %v582, 0.0
        %589 = vrot.lane.b32.xlu0 %v557, 13
        %v590 = vpop.permute.xlu0 %589
        %591 = vrot.lane.b32.xlu0 %v558, 13
        %v592 = vpop.permute.xlu0 %591
        %593 = vrot.lane.b32.xlu0 %v559, 13
        %v594 = vpop.permute.xlu0 %593
        %595 = vrot.lane.b32.xlu0 %v560, 13
        %v596 = vpop.permute.xlu0 %595
        %v597 = vsel %vm456, 1, 0
        %vm598 = vcmp.eq.s32.totalorder %v597, 1
        %v599 = vsel %vm598, %v590, 0.0
        %v600 = vsel %vm598, %v592, 0.0
        %v601 = vsel %vm598, %v594, 0.0
        %v602 = vsel %vm598, %v596, 0.0
        %603 = vrot.lane.b32.xlu0 %v557, 12
        %v604 = vpop.permute.xlu0 %603
        %605 = vrot.lane.b32.xlu0 %v558, 12
        %v606 = vpop.permute.xlu0 %605
        %607 = vrot.lane.b32.xlu0 %v559, 12
        %v608 = vpop.permute.xlu0 %607
        %609 = vrot.lane.b32.xlu0 %v560, 12
        %v610 = vpop.permute.xlu0 %609
        %v611 = vsel %vm457, 1, 0
        %vm612 = vcmp.eq.s32.totalorder %v611, 1
        %v613 = vsel %vm612, %v604, 0.0
        %v614 = vsel %vm612, %v606, 0.0
        %v615 = vsel %vm612, %v608, 0.0
        %v616 = vsel %vm612, %v610, 0.0
        %617 = vrot.lane.b32.xlu0 %v557, 11
        %v618 = vpop.permute.xlu0 %617
        %619 = vrot.lane.b32.xlu0 %v558, 11
        %v620 = vpop.permute.xlu0 %619
        %621 = vrot.lane.b32.xlu0 %v559, 11
        %v622 = vpop.permute.xlu0 %621
        %623 = vrot.lane.b32.xlu0 %v560, 11
        %v624 = vpop.permute.xlu0 %623
        %v625 = vsel %vm458, 1, 0
        %vm626 = vcmp.eq.s32.totalorder %v625, 1
        %v627 = vsel %vm626, %v618, 0.0
        %v628 = vsel %vm626, %v620, 0.0
        %v629 = vsel %vm626, %v622, 0.0
        %v630 = vsel %vm626, %v624, 0.0
        %631 = vrot.lane.b32.xlu0 %v557, 10
        %v632 = vpop.permute.xlu0 %631
        %633 = vrot.lane.b32.xlu0 %v558, 10
        %v634 = vpop.permute.xlu0 %633
        %635 = vrot.lane.b32.xlu0 %v559, 10
        %v636 = vpop.permute.xlu0 %635
        %637 = vrot.lane.b32.xlu0 %v560, 10
        %v638 = vpop.permute.xlu0 %637
        %v639 = vsel %vm459, 1, 0
        %vm640 = vcmp.eq.s32.totalorder %v639, 1
        %v641 = vsel %vm640, %v632, 0.0
        %v642 = vsel %vm640, %v634, 0.0
        %v643 = vsel %vm640, %v636, 0.0
        %v644 = vsel %vm640, %v638, 0.0
        %645 = vrot.lane.b32.xlu0 %v557, 9
        %v646 = vpop.permute.xlu0 %645
        %647 = vrot.lane.b32.xlu0 %v558, 9
        %v648 = vpop.permute.xlu0 %647
        %649 = vrot.lane.b32.xlu0 %v559, 9
        %v650 = vpop.permute.xlu0 %649
        %651 = vrot.lane.b32.xlu0 %v560, 9
        %v652 = vpop.permute.xlu0 %651
        %v653 = vsel %vm460, 1, 0
        %vm654 = vcmp.eq.s32.totalorder %v653, 1
        %v655 = vsel %vm654, %v646, 0.0
        %v656 = vsel %vm654, %v648, 0.0
        %v657 = vsel %vm654, %v650, 0.0
        %v658 = vsel %vm654, %v652, 0.0
        %659 = vrot.lane.b32.xlu0 %v557, 8
        %v660 = vpop.permute.xlu0 %659
        %661 = vrot.lane.b32.xlu0 %v558, 8
        %v662 = vpop.permute.xlu0 %661
        %663 = vrot.lane.b32.xlu0 %v559, 8
        %v664 = vpop.permute.xlu0 %663
        %665 = vrot.lane.b32.xlu0 %v560, 8
        %v666 = vpop.permute.xlu0 %665
        %v667 = vsel %vm461, 1, 0
        %vm668 = vcmp.eq.s32.totalorder %v667, 1
        %v669 = vsel %vm668, %v660, 0.0
        %v670 = vsel %vm668, %v662, 0.0
        %v671 = vsel %vm668, %v664, 0.0
        %v672 = vsel %vm668, %v666, 0.0
        %673 = vrot.lane.b32.xlu0 %v557, 7
        %v674 = vpop.permute.xlu0 %673
        %675 = vrot.lane.b32.xlu0 %v558, 7
        %v676 = vpop.permute.xlu0 %675
        %677 = vrot.lane.b32.xlu0 %v559, 7
        %v678 = vpop.permute.xlu0 %677
        %679 = vrot.lane.b32.xlu0 %v560, 7
        %v680 = vpop.permute.xlu0 %679
        %v681 = vsel %vm462, 1, 0
        %vm682 = vcmp.eq.s32.totalorder %v681, 1
        %v683 = vsel %vm682, %v674, 0.0
        %v684 = vsel %vm682, %v676, 0.0
        %v685 = vsel %vm682, %v678, 0.0
        %v686 = vsel %vm682, %v680, 0.0
        %687 = vrot.lane.b32.xlu0 %v557, 6
        %v688 = vpop.permute.xlu0 %687
        %689 = vrot.lane.b32.xlu0 %v558, 6
        %v690 = vpop.permute.xlu0 %689
        %691 = vrot.lane.b32.xlu0 %v559, 6
        %v692 = vpop.permute.xlu0 %691
        %693 = vrot.lane.b32.xlu0 %v560, 6
        %v694 = vpop.permute.xlu0 %693
        %v695 = vsel %vm463, 1, 0
        %vm696 = vcmp.eq.s32.totalorder %v695, 1
        %v697 = vsel %vm696, %v688, 0.0
        %v698 = vsel %vm696, %v690, 0.0
        %v699 = vsel %vm696, %v692, 0.0
        %v700 = vsel %vm696, %v694, 0.0
        %701 = vrot.lane.b32.xlu0 %v557, 5
        %v702 = vpop.permute.xlu0 %701
        %703 = vrot.lane.b32.xlu0 %v558, 5
        %v704 = vpop.permute.xlu0 %703
        %705 = vrot.lane.b32.xlu0 %v559, 5
        %v706 = vpop.permute.xlu0 %705
        %707 = vrot.lane.b32.xlu0 %v560, 5
        %v708 = vpop.permute.xlu0 %707
        %v709 = vsel %vm464, 1, 0
        %vm710 = vcmp.eq.s32.totalorder %v709, 1
        %v711 = vsel %vm710, %v702, 0.0
        %v712 = vsel %vm710, %v704, 0.0
        %v713 = vsel %vm710, %v706, 0.0
        %v714 = vsel %vm710, %v708, 0.0
        %715 = vrot.lane.b32.xlu0 %v557, 4
        %v716 = vpop.permute.xlu0 %715
        %717 = vrot.lane.b32.xlu0 %v558, 4
        %v718 = vpop.permute.xlu0 %717
        %719 = vrot.lane.b32.xlu0 %v559, 4
        %v720 = vpop.permute.xlu0 %719
        %721 = vrot.lane.b32.xlu0 %v560, 4
        %v722 = vpop.permute.xlu0 %721
        %v723 = vsel %vm465, 1, 0
        %vm724 = vcmp.eq.s32.totalorder %v723, 1
        %v725 = vsel %vm724, %v716, 0.0
        %v726 = vsel %vm724, %v718, 0.0
        %v727 = vsel %vm724, %v720, 0.0
        %v728 = vsel %vm724, %v722, 0.0
        %729 = vrot.lane.b32.xlu0 %v557, 3
        %v730 = vpop.permute.xlu0 %729
        %731 = vrot.lane.b32.xlu0 %v558, 3
        %v732 = vpop.permute.xlu0 %731
        %733 = vrot.lane.b32.xlu0 %v559, 3
        %v734 = vpop.permute.xlu0 %733
        %735 = vrot.lane.b32.xlu0 %v560, 3
        %v736 = vpop.permute.xlu0 %735
        %v737 = vsel %vm466, 1, 0
        %vm738 = vcmp.eq.s32.totalorder %v737, 1
        %v739 = vsel %vm738, %v730, 0.0
        %v740 = vsel %vm738, %v732, 0.0
        %v741 = vsel %vm738, %v734, 0.0
        %v742 = vsel %vm738, %v736, 0.0
        %743 = vrot.lane.b32.xlu0 %v557, 2
        %v744 = vpop.permute.xlu0 %743
        %745 = vrot.lane.b32.xlu0 %v558, 2
        %v746 = vpop.permute.xlu0 %745
        %747 = vrot.lane.b32.xlu0 %v559, 2
        %v748 = vpop.permute.xlu0 %747
        %749 = vrot.lane.b32.xlu0 %v560, 2
        %v750 = vpop.permute.xlu0 %749
        %v751 = vsel %vm467, 1, 0
        %vm752 = vcmp.eq.s32.totalorder %v751, 1
        %v753 = vsel %vm752, %v744, 0.0
        %v754 = vsel %vm752, %v746, 0.0
        %v755 = vsel %vm752, %v748, 0.0
        %v756 = vsel %vm752, %v750, 0.0
        %757 = vrot.lane.b32.xlu0 %v557, 1
        %v758 = vpop.permute.xlu0 %757
        %759 = vrot.lane.b32.xlu0 %v558, 1
        %v760 = vpop.permute.xlu0 %759
        %761 = vrot.lane.b32.xlu0 %v559, 1
        %v762 = vpop.permute.xlu0 %761
        %763 = vrot.lane.b32.xlu0 %v560, 1
        %v764 = vpop.permute.xlu0 %763
        %v765 = vsel %vm468, 1, 0
        %vm766 = vcmp.eq.s32.totalorder %v765, 1
        %v767 = vsel %vm766, %v758, 0.0
        %v768 = vsel %vm766, %v760, 0.0
        %v769 = vsel %vm766, %v762, 0.0
        %v770 = vsel %vm766, %v764, 0.0
        %771 = vrot.lane.b32.xlu0 %v557, 127
        %v772 = vpop.permute.xlu0 %771
        %773 = vrot.lane.b32.xlu0 %v558, 127
        %v774 = vpop.permute.xlu0 %773
        %775 = vrot.lane.b32.xlu0 %v559, 127
        %v776 = vpop.permute.xlu0 %775
        %777 = vrot.lane.b32.xlu0 %v560, 127
        %v778 = vpop.permute.xlu0 %777
        %v779 = vsel %vm469, 1, 0
        %vm780 = vcmp.eq.s32.totalorder %v779, 1
        %v781 = vsel %vm780, %v772, 0.0
        %v782 = vsel %vm780, %v774, 0.0
        %v783 = vsel %vm780, %v776, 0.0
        %v784 = vsel %vm780, %v778, 0.0
        %785 = vrot.lane.b32.xlu0 %v557, 126
        %v786 = vpop.permute.xlu0 %785
        %787 = vrot.lane.b32.xlu0 %v558, 126
        %v788 = vpop.permute.xlu0 %787
        %789 = vrot.lane.b32.xlu0 %v559, 126
        %v790 = vpop.permute.xlu0 %789
        %791 = vrot.lane.b32.xlu0 %v560, 126
        %v792 = vpop.permute.xlu0 %791
        %v793 = vsel %vm470, 1, 0
        %vm794 = vcmp.eq.s32.totalorder %v793, 1
        %v795 = vsel %vm794, %v786, 0.0
        %v796 = vsel %vm794, %v788, 0.0
        %v797 = vsel %vm794, %v790, 0.0
        %v798 = vsel %vm794, %v792, 0.0
        %799 = vrot.lane.b32.xlu0 %v557, 125
        %v800 = vpop.permute.xlu0 %799
        %801 = vrot.lane.b32.xlu0 %v558, 125
        %v802 = vpop.permute.xlu0 %801
        %803 = vrot.lane.b32.xlu0 %v559, 125
        %v804 = vpop.permute.xlu0 %803
        %805 = vrot.lane.b32.xlu0 %v560, 125
        %v806 = vpop.permute.xlu0 %805
        %v807 = vsel %vm471, 1, 0
        %vm808 = vcmp.eq.s32.totalorder %v807, 1
        %v809 = vsel %vm808, %v800, 0.0
        %v810 = vsel %vm808, %v802, 0.0
        %v811 = vsel %vm808, %v804, 0.0
        %v812 = vsel %vm808, %v806, 0.0
        %813 = vrot.lane.b32.xlu0 %v557, 124
        %v814 = vpop.permute.xlu0 %813
        %815 = vrot.lane.b32.xlu0 %v558, 124
        %v816 = vpop.permute.xlu0 %815
        %817 = vrot.lane.b32.xlu0 %v559, 124
        %v818 = vpop.permute.xlu0 %817
        %819 = vrot.lane.b32.xlu0 %v560, 124
        %v820 = vpop.permute.xlu0 %819
        %v821 = vsel %vm472, 1, 0
        %vm822 = vcmp.eq.s32.totalorder %v821, 1
        %v823 = vsel %vm822, %v814, 0.0
        %v824 = vsel %vm822, %v816, 0.0
        %v825 = vsel %vm822, %v818, 0.0
        %v826 = vsel %vm822, %v820, 0.0
        %827 = vrot.lane.b32.xlu0 %v557, 123
        %v828 = vpop.permute.xlu0 %827
        %829 = vrot.lane.b32.xlu0 %v558, 123
        %v830 = vpop.permute.xlu0 %829
        %831 = vrot.lane.b32.xlu0 %v559, 123
        %v832 = vpop.permute.xlu0 %831
        %833 = vrot.lane.b32.xlu0 %v560, 123
        %v834 = vpop.permute.xlu0 %833
        %v835 = vsel %vm473, 1, 0
        %vm836 = vcmp.eq.s32.totalorder %v835, 1
        %v837 = vsel %vm836, %v828, 0.0
        %v838 = vsel %vm836, %v830, 0.0
        %v839 = vsel %vm836, %v832, 0.0
        %v840 = vsel %vm836, %v834, 0.0
        %841 = vrot.lane.b32.xlu0 %v557, 122
        %v842 = vpop.permute.xlu0 %841
        %843 = vrot.lane.b32.xlu0 %v558, 122
        %v844 = vpop.permute.xlu0 %843
        %845 = vrot.lane.b32.xlu0 %v559, 122
        %v846 = vpop.permute.xlu0 %845
        %847 = vrot.lane.b32.xlu0 %v560, 122
        %v848 = vpop.permute.xlu0 %847
        %v849 = vsel %vm474, 1, 0
        %vm850 = vcmp.eq.s32.totalorder %v849, 1
        %v851 = vsel %vm850, %v842, 0.0
        %v852 = vsel %vm850, %v844, 0.0
        %v853 = vsel %vm850, %v846, 0.0
        %v854 = vsel %vm850, %v848, 0.0
        %855 = vrot.lane.b32.xlu0 %v557, 121
        %v856 = vpop.permute.xlu0 %855
        %857 = vrot.lane.b32.xlu0 %v558, 121
        %v858 = vpop.permute.xlu0 %857
        %859 = vrot.lane.b32.xlu0 %v559, 121
        %v860 = vpop.permute.xlu0 %859
        %861 = vrot.lane.b32.xlu0 %v560, 121
        %v862 = vpop.permute.xlu0 %861
        %v863 = vsel %vm475, 1, 0
        %vm864 = vcmp.eq.s32.totalorder %v863, 1
        %v865 = vsel %vm864, %v856, 0.0
        %v866 = vsel %vm864, %v858, 0.0
        %v867 = vsel %vm864, %v860, 0.0
        %v868 = vsel %vm864, %v862, 0.0
        %869 = vrot.lane.b32.xlu0 %v557, 120
        %v870 = vpop.permute.xlu0 %869
        %871 = vrot.lane.b32.xlu0 %v558, 120
        %v872 = vpop.permute.xlu0 %871
        %873 = vrot.lane.b32.xlu0 %v559, 120
        %v874 = vpop.permute.xlu0 %873
        %875 = vrot.lane.b32.xlu0 %v560, 120
        %v876 = vpop.permute.xlu0 %875
        %v877 = vsel %vm476, 1, 0
        %vm878 = vcmp.eq.s32.totalorder %v877, 1
        %v879 = vsel %vm878, %v870, 0.0
        %v880 = vsel %vm878, %v872, 0.0
        %v881 = vsel %vm878, %v874, 0.0
        %v882 = vsel %vm878, %v876, 0.0
        %883 = vrot.lane.b32.xlu0 %v557, 119
        %v884 = vpop.permute.xlu0 %883
        %885 = vrot.lane.b32.xlu0 %v558, 119
        %v886 = vpop.permute.xlu0 %885
        %887 = vrot.lane.b32.xlu0 %v559, 119
        %v888 = vpop.permute.xlu0 %887
        %889 = vrot.lane.b32.xlu0 %v560, 119
        %v890 = vpop.permute.xlu0 %889
        %v891 = vsel %vm477, 1, 0
        %vm892 = vcmp.eq.s32.totalorder %v891, 1
        %v893 = vsel %vm892, %v884, 0.0
        %v894 = vsel %vm892, %v886, 0.0
        %v895 = vsel %vm892, %v888, 0.0
        %v896 = vsel %vm892, %v890, 0.0
        %897 = vrot.lane.b32.xlu0 %v557, 118
        %v898 = vpop.permute.xlu0 %897
        %899 = vrot.lane.b32.xlu0 %v558, 118
        %v900 = vpop.permute.xlu0 %899
        %901 = vrot.lane.b32.xlu0 %v559, 118
        %v902 = vpop.permute.xlu0 %901
        %903 = vrot.lane.b32.xlu0 %v560, 118
        %v904 = vpop.permute.xlu0 %903
        %v905 = vsel %vm478, 1, 0
        %vm906 = vcmp.eq.s32.totalorder %v905, 1
        %v907 = vsel %vm906, %v898, 0.0
        %v908 = vsel %vm906, %v900, 0.0
        %v909 = vsel %vm906, %v902, 0.0
        %v910 = vsel %vm906, %v904, 0.0
        %911 = vrot.lane.b32.xlu0 %v557, 117
        %v912 = vpop.permute.xlu0 %911
        %913 = vrot.lane.b32.xlu0 %v558, 117
        %v914 = vpop.permute.xlu0 %913
        %915 = vrot.lane.b32.xlu0 %v559, 117
        %v916 = vpop.permute.xlu0 %915
        %917 = vrot.lane.b32.xlu0 %v560, 117
        %v918 = vpop.permute.xlu0 %917
        %v919 = vsel %vm479, 1, 0
        %vm920 = vcmp.eq.s32.totalorder %v919, 1
        %v921 = vsel %vm920, %v912, 0.0
        %v922 = vsel %vm920, %v914, 0.0
        %v923 = vsel %vm920, %v916, 0.0
        %v924 = vsel %vm920, %v918, 0.0
        %925 = vrot.lane.b32.xlu0 %v557, 116
        %v926 = vpop.permute.xlu0 %925
        %927 = vrot.lane.b32.xlu0 %v558, 116
        %v928 = vpop.permute.xlu0 %927
        %929 = vrot.lane.b32.xlu0 %v559, 116
        %v930 = vpop.permute.xlu0 %929
        %931 = vrot.lane.b32.xlu0 %v560, 116
        %v932 = vpop.permute.xlu0 %931
        %v933 = vsel %vm480, 1, 0
        %vm934 = vcmp.eq.s32.totalorder %v933, 1
        %v935 = vsel %vm934, %v926, 0.0
        %v936 = vsel %vm934, %v928, 0.0
        %v937 = vsel %vm934, %v930, 0.0
        %v938 = vsel %vm934, %v932, 0.0
        %939 = vrot.lane.b32.xlu0 %v557, 115
        %v940 = vpop.permute.xlu0 %939
        %941 = vrot.lane.b32.xlu0 %v558, 115
        %v942 = vpop.permute.xlu0 %941
        %943 = vrot.lane.b32.xlu0 %v559, 115
        %v944 = vpop.permute.xlu0 %943
        %945 = vrot.lane.b32.xlu0 %v560, 115
        %v946 = vpop.permute.xlu0 %945
        %v947 = vsel %vm481, 1, 0
        %vm948 = vcmp.eq.s32.totalorder %v947, 1
        %v949 = vsel %vm948, %v940, 0.0
        %v950 = vsel %vm948, %v942, 0.0
        %v951 = vsel %vm948, %v944, 0.0
        %v952 = vsel %vm948, %v946, 0.0
        %953 = vrot.lane.b32.xlu0 %v557, 114
        %v954 = vpop.permute.xlu0 %953
        %955 = vrot.lane.b32.xlu0 %v558, 114
        %v956 = vpop.permute.xlu0 %955
        %957 = vrot.lane.b32.xlu0 %v559, 114
        %v958 = vpop.permute.xlu0 %957
        %959 = vrot.lane.b32.xlu0 %v560, 114
        %v960 = vpop.permute.xlu0 %959
        %v961 = vsel %vm482, 1, 0
        %vm962 = vcmp.eq.s32.totalorder %v961, 1
        %v963 = vsel %vm962, %v954, 0.0
        %v964 = vsel %vm962, %v956, 0.0
        %v965 = vsel %vm962, %v958, 0.0
        %v966 = vsel %vm962, %v960, 0.0
        %967 = vrot.lane.b32.xlu0 %v557, 113
        %v968 = vpop.permute.xlu0 %967
        %969 = vrot.lane.b32.xlu0 %v558, 113
        %v970 = vpop.permute.xlu0 %969
        %971 = vrot.lane.b32.xlu0 %v559, 113
        %v972 = vpop.permute.xlu0 %971
        %973 = vrot.lane.b32.xlu0 %v560, 113
        %v974 = vpop.permute.xlu0 %973
        %v975 = vsel %vm483, 1, 0
        %vm976 = vcmp.eq.s32.totalorder %v975, 1
        %v977 = vsel %vm976, %v968, 0.0
        %v978 = vsel %vm976, %v970, 0.0
        %v979 = vsel %vm976, %v972, 0.0
        %v980 = vsel %vm976, %v974, 0.0
        %982 = vset.pattern.permute.xlu0 0
        %983 = vperm.xlu0 %982, %v434
        %v984 = vpop.permute.xlu0 %983
        %vm986 = vcmask 982016
        %v988 = vsel %vm986, %v433, 0
        %990 = vmatprep.subr.mxu0 0.0
        %991 = vmatpush1.msra.mxu0 %v571
        %992 = vmatprep.subr.mxu0 0.0
        %993 = vmatpush1.msra.mxu0 %v585
        %994 = vmatprep.subr.mxu0 0.0
        %995 = vmatpush1.msra.mxu0 %v599
        %996 = vmatprep.subr.mxu0 0.0
        %997 = vmatpush1.msra.mxu0 %v613
        %998 = vmatprep.subr.mxu0 0.0
        %999 = vmatpush1.msra.mxu0 %v627
        %1000 = vmatprep.subr.mxu0 0.0
        %1001 = vmatpush1.msra.mxu0 %v641
        %1002 = vmatprep.subr.mxu0 0.0
        %1003 = vmatpush1.msra.mxu0 %v655
        %1004 = vmatprep.subr.mxu0 0.0
        %1005 = vmatpush1.msra.mxu0 %v669
        %1006 = vmatprep.subr.mxu0 0.0
        %1007 = vmatpush1.msra.mxu0 %v683
        %1008 = vmatprep.subr.mxu0 0.0
        %1009 = vmatpush1.msra.mxu0 %v697
        %1010 = vmatprep.subr.mxu0 0.0
        %1011 = vmatpush1.msra.mxu0 %v711
        %1012 = vmatprep.subr.mxu0 0.0
        %1013 = vmatpush1.msra.mxu0 %v725
        %1014 = vmatprep.subr.mxu0 0.0
        %1015 = vmatpush1.msra.mxu0 %v739
        %1016 = vmatprep.subr.mxu0 0.0
        %1017 = vmatpush1.msra.mxu0 %v753
        %1018 = vmatprep.subr.mxu0 0.0
        %1019 = vmatpush1.msra.mxu0 %v767
        %1020 = vmatprep.subr.mxu0 0.0
        %1021 = vmatpush1.msra.mxu0 %v557
        %1022 = vmatprep.subr.mxu0 0.0
        %1023 = vmatpush1.msra.mxu0 %v781
        %1024 = vmatprep.subr.mxu0 0.0
        %1025 = vmatpush1.msra.mxu0 %v795
        %1026 = vmatprep.subr.mxu0 0.0
        %1027 = vmatpush1.msra.mxu0 %v809
        %1028 = vmatprep.subr.mxu0 0.0
        %1029 = vmatpush1.msra.mxu0 %v823
        %1030 = vmatprep.subr.mxu0 0.0
        %1031 = vmatpush1.msra.mxu0 %v837
        %1032 = vmatprep.subr.mxu0 0.0
        %1033 = vmatpush1.msra.mxu0 %v851
        %1034 = vmatprep.subr.mxu0 0.0
        %1035 = vmatpush1.msra.mxu0 %v865
        %1036 = vmatprep.subr.mxu0 0.0
        %1037 = vmatpush1.msra.mxu0 %v879
        %1038 = vmatprep.subr.mxu0 0.0
        %1039 = vmatpush1.msra.mxu0 %v893
        %1040 = vmatprep.subr.mxu0 0.0
        %1041 = vmatpush1.msra.mxu0 %v907
        %1042 = vmatprep.subr.mxu0 0.0
        %1043 = vmatpush1.msra.mxu0 %v921
        %1044 = vmatprep.subr.mxu0 0.0
        %1045 = vmatpush1.msra.mxu0 %v935
        %1046 = vmatprep.subr.mxu0 0.0
        %1047 = vmatpush1.msra.mxu0 %v949
        %1048 = vmatprep.subr.mxu0 0.0
        %1049 = vmatpush1.msra.mxu0 %v963
        %1050 = vmatprep.subr.mxu0 0.0
        %1051 = vmatpush1.msra.mxu0 %v977
        %1052 = vmatprep.subr.mxu0 0.0
        %1053 = vmatpush1.msra.mxu0 0.0
        %1054 = vmatprep.mubr.f32.mxu0 %v988
        %1055 = vmatmul.mubr.f32.gmra.mrb[0].mxu0 %v432
        %v1056 = vpop.f32.mrb[0].mxu0
        %v1057 = vadd.f32 %v984, %v1056
        %v1058 = vpop.f32.mrb[0].mxu0
        %1059 = vdwg.mxu0
        %1060 = vmatprep.subr.mxu0 0.0
        %1061 = vmatpush1.msra.mxu0 %v572
        %1062 = vmatprep.subr.mxu0 0.0
        %1063 = vmatpush1.msra.mxu0 %v586
        %1064 = vmatprep.subr.mxu0 0.0
        %1065 = vmatpush1.msra.mxu0 %v600
        %1066 = vmatprep.subr.mxu0 0.0
        %1067 = vmatpush1.msra.mxu0 %v614
        %1068 = vmatprep.subr.mxu0 0.0
        %1069 = vmatpush1.msra.mxu0 %v628
        %1070 = vmatprep.subr.mxu0 0.0
        %1071 = vmatpush1.msra.mxu0 %v642
        %1072 = vmatprep.subr.mxu0 0.0
        %1073 = vmatpush1.msra.mxu0 %v656
        %1074 = vmatprep.subr.mxu0 0.0
        %1075 = vmatpush1.msra.mxu0 %v670
        %1076 = vmatprep.subr.mxu0 0.0
        %1077 = vmatpush1.msra.mxu0 %v684
        %1078 = vmatprep.subr.mxu0 0.0
        %1079 = vmatpush1.msra.mxu0 %v698
        %1080 = vmatprep.subr.mxu0 0.0
        %1081 = vmatpush1.msra.mxu0 %v712
        %1082 = vmatprep.subr.mxu0 0.0
        %1083 = vmatpush1.msra.mxu0 %v726
        %1084 = vmatprep.subr.mxu0 0.0
        %1085 = vmatpush1.msra.mxu0 %v740
        %1086 = vmatprep.subr.mxu0 0.0
        %1087 = vmatpush1.msra.mxu0 %v754
        %1088 = vmatprep.subr.mxu0 0.0
        %1089 = vmatpush1.msra.mxu0 %v768
        %1090 = vmatprep.subr.mxu0 0.0
        %1091 = vmatpush1.msra.mxu0 %v558
        %1092 = vmatprep.subr.mxu0 0.0
        %1093 = vmatpush1.msra.mxu0 %v782
        %1094 = vmatprep.subr.mxu0 0.0
        %1095 = vmatpush1.msra.mxu0 %v796
        %1096 = vmatprep.subr.mxu0 0.0
        %1097 = vmatpush1.msra.mxu0 %v810
        %1098 = vmatprep.subr.mxu0 0.0
        %1099 = vmatpush1.msra.mxu0 %v824
        %1100 = vmatprep.subr.mxu0 0.0
        %1101 = vmatpush1.msra.mxu0 %v838
        %1102 = vmatprep.subr.mxu0 0.0
        %1103 = vmatpush1.msra.mxu0 %v852
        %1104 = vmatprep.subr.mxu0 0.0
        %1105 = vmatpush1.msra.mxu0 %v866
        %1106 = vmatprep.subr.mxu0 0.0
        %1107 = vmatpush1.msra.mxu0 %v880
        %1108 = vmatprep.subr.mxu0 0.0
        %1109 = vmatpush1.msra.mxu0 %v894
        %1110 = vmatprep.subr.mxu0 0.0
        %1111 = vmatpush1.msra.mxu0 %v908
        %1112 = vmatprep.subr.mxu0 0.0
        %1113 = vmatpush1.msra.mxu0 %v922
        %1114 = vmatprep.subr.mxu0 0.0
        %1115 = vmatpush1.msra.mxu0 %v936
        %1116 = vmatprep.subr.mxu0 0.0
        %1117 = vmatpush1.msra.mxu0 %v950
        %1118 = vmatprep.subr.mxu0 0.0
        %1119 = vmatpush1.msra.mxu0 %v964
        %1120 = vmatprep.subr.mxu0 0.0
        %1121 = vmatpush1.msra.mxu0 %v978
        %1122 = vmatprep.subr.mxu0 0.0
        %1123 = vmatpush1.msra.mxu0 0.0
        %1124 = vmatprep.mubr.f32.mxu0 %v988
        %1125 = vmatmul.mubr.f32.gmra.mrb[0].mxu0 %v432
        %v1126 = vpop.f32.mrb[0].mxu0
        %v1127 = vadd.f32 %v984, %v1126
        %v1128 = vpop.f32.mrb[0].mxu0
        %1129 = vdwg.mxu0
        %1130 = vmatprep.subr.mxu0 0.0
        %1131 = vmatpush1.msra.mxu0 %v573
        %1132 = vmatprep.subr.mxu0 0.0
        %1133 = vmatpush1.msra.mxu0 %v587
        %1134 = vmatprep.subr.mxu0 0.0
        %1135 = vmatpush1.msra.mxu0 %v601
        %1136 = vmatprep.subr.mxu0 0.0
        %1137 = vmatpush1.msra.mxu0 %v615
        %1138 = vmatprep.subr.mxu0 0.0
        %1139 = vmatpush1.msra.mxu0 %v629
        %1140 = vmatprep.subr.mxu0 0.0
        %1141 = vmatpush1.msra.mxu0 %v643
        %1142 = vmatprep.subr.mxu0 0.0
        %1143 = vmatpush1.msra.mxu0 %v657
        %1144 = vmatprep.subr.mxu0 0.0
        %1145 = vmatpush1.msra.mxu0 %v671
        %1146 = vmatprep.subr.mxu0 0.0
        %1147 = vmatpush1.msra.mxu0 %v685
        %1148 = vmatprep.subr.mxu0 0.0
        %1149 = vmatpush1.msra.mxu0 %v699
        %1150 = vmatprep.subr.mxu0 0.0
        %1151 = vmatpush1.msra.mxu0 %v713
        %1152 = vmatprep.subr.mxu0 0.0
        %1153 = vmatpush1.msra.mxu0 %v727
        %1154 = vmatprep.subr.mxu0 0.0
        %1155 = vmatpush1.msra.mxu0 %v741
        %1156 = vmatprep.subr.mxu0 0.0
        %1157 = vmatpush1.msra.mxu0 %v755
        %1158 = vmatprep.subr.mxu0 0.0
        %1159 = vmatpush1.msra.mxu0 %v769
        %1160 = vmatprep.subr.mxu0 0.0
        %1161 = vmatpush1.msra.mxu0 %v559
        %1162 = vmatprep.subr.mxu0 0.0
        %1163 = vmatpush1.msra.mxu0 %v783
        %1164 = vmatprep.subr.mxu0 0.0
        %1165 = vmatpush1.msra.mxu0 %v797
        %1166 = vmatprep.subr.mxu0 0.0
        %1167 = vmatpush1.msra.mxu0 %v811
        %1168 = vmatprep.subr.mxu0 0.0
        %1169 = vmatpush1.msra.mxu0 %v825
        %1170 = vmatprep.subr.mxu0 0.0
        %1171 = vmatpush1.msra.mxu0 %v839
        %1172 = vmatprep.subr.mxu0 0.0
        %1173 = vmatpush1.msra.mxu0 %v853
        %1174 = vmatprep.subr.mxu0 0.0
        %1175 = vmatpush1.msra.mxu0 %v867
        %1176 = vmatprep.subr.mxu0 0.0
        %1177 = vmatpush1.msra.mxu0 %v881
        %1178 = vmatprep.subr.mxu0 0.0
        %1179 = vmatpush1.msra.mxu0 %v895
        %1180 = vmatprep.subr.mxu0 0.0
        %1181 = vmatpush1.msra.mxu0 %v909
        %1182 = vmatprep.subr.mxu0 0.0
        %1183 = vmatpush1.msra.mxu0 %v923
        %1184 = vmatprep.subr.mxu0 0.0
        %1185 = vmatpush1.msra.mxu0 %v937
        %1186 = vmatprep.subr.mxu0 0.0
        %1187 = vmatpush1.msra.mxu0 %v951
        %1188 = vmatprep.subr.mxu0 0.0
        %1189 = vmatpush1.msra.mxu0 %v965
        %1190 = vmatprep.subr.mxu0 0.0
        %1191 = vmatpush1.msra.mxu0 %v979
        %1192 = vmatprep.subr.mxu0 0.0
        %1193 = vmatpush1.msra.mxu0 0.0
        %1194 = vmatprep.mubr.f32.mxu0 %v988
        %1195 = vmatmul.mubr.f32.gmra.mrb[0].mxu0 %v432
        %v1196 = vpop.f32.mrb[0].mxu0
        %v1197 = vadd.f32 %v984, %v1196
        %v1198 = vpop.f32.mrb[0].mxu0
        %1199 = vdwg.mxu0
        %1200 = vmatprep.subr.mxu0 0.0
        %1201 = vmatpush1.msra.mxu0 %v574
        %1202 = vmatprep.subr.mxu0 0.0
        %1203 = vmatpush1.msra.mxu0 %v588
        %1204 = vmatprep.subr.mxu0 0.0
        %1205 = vmatpush1.msra.mxu0 %v602
        %1206 = vmatprep.subr.mxu0 0.0
        %1207 = vmatpush1.msra.mxu0 %v616
        %1208 = vmatprep.subr.mxu0 0.0
        %1209 = vmatpush1.msra.mxu0 %v630
        %1210 = vmatprep.subr.mxu0 0.0
        %1211 = vmatpush1.msra.mxu0 %v644
        %1212 = vmatprep.subr.mxu0 0.0
        %1213 = vmatpush1.msra.mxu0 %v658
        %1214 = vmatprep.subr.mxu0 0.0
        %1215 = vmatpush1.msra.mxu0 %v672
        %1216 = vmatprep.subr.mxu0 0.0
        %1217 = vmatpush1.msra.mxu0 %v686
        %1218 = vmatprep.subr.mxu0 0.0
        %1219 = vmatpush1.msra.mxu0 %v700
        %1220 = vmatprep.subr.mxu0 0.0
        %1221 = vmatpush1.msra.mxu0 %v714
        %1222 = vmatprep.subr.mxu0 0.0
        %1223 = vmatpush1.msra.mxu0 %v728
        %1224 = vmatprep.subr.mxu0 0.0
        %1225 = vmatpush1.msra.mxu0 %v742
        %1226 = vmatprep.subr.mxu0 0.0
        %1227 = vmatpush1.msra.mxu0 %v756
        %1228 = vmatprep.subr.mxu0 0.0
        %1229 = vmatpush1.msra.mxu0 %v770
        %1230 = vmatprep.subr.mxu0 0.0
        %1231 = vmatpush1.msra.mxu0 %v560
        %1232 = vmatprep.subr.mxu0 0.0
        %1233 = vmatpush1.msra.mxu0 %v784
        %1234 = vmatprep.subr.mxu0 0.0
        %1235 = vmatpush1.msra.mxu0 %v798
        %1236 = vmatprep.subr.mxu0 0.0
        %1237 = vmatpush1.msra.mxu0 %v812
        %1238 = vmatprep.subr.mxu0 0.0
        %1239 = vmatpush1.msra.mxu0 %v826
        %1240 = vmatprep.subr.mxu0 0.0
        %1241 = vmatpush1.msra.mxu0 %v840
        %1242 = vmatprep.subr.mxu0 0.0
        %1243 = vmatpush1.msra.mxu0 %v854
        %1244 = vmatprep.subr.mxu0 0.0
        %1245 = vmatpush1.msra.mxu0 %v868
        %1246 = vmatprep.subr.mxu0 0.0
        %1247 = vmatpush1.msra.mxu0 %v882
        %1248 = vmatprep.subr.mxu0 0.0
        %1249 = vmatpush1.msra.mxu0 %v896
        %1250 = vmatprep.subr.mxu0 0.0
        %1251 = vmatpush1.msra.mxu0 %v910
        %1252 = vmatprep.subr.mxu0 0.0
        %1253 = vmatpush1.msra.mxu0 %v924
        %1254 = vmatprep.subr.mxu0 0.0
        %1255 = vmatpush1.msra.mxu0 %v938
        %1256 = vmatprep.subr.mxu0 0.0
        %1257 = vmatpush1.msra.mxu0 %v952
        %1258 = vmatprep.subr.mxu0 0.0
        %1259 = vmatpush1.msra.mxu0 %v966
        %1260 = vmatprep.subr.mxu0 0.0
        %1261 = vmatpush1.msra.mxu0 %v980
        %1262 = vmatprep.subr.mxu0 0.0
        %1263 = vmatpush1.msra.mxu0 0.0
        %1264 = vmatprep.mubr.f32.mxu0 %v988
        %1265 = vmatmul.mubr.f32.gmra.mrb[0].mxu0 %v432
        %v1266 = vpop.f32.mrb[0].mxu0
        %v1267 = vadd.f32 %v984, %v1266
        %v1268 = vpop.f32.mrb[0].mxu0
        %1269 = vdwg.mxu0
        %1270 = vadd.xlane.f32.xlu0 %v1057
        %v1271 = vpop.xlane.xlu0 %1270
        %1272 = vadd.xlane.f32.xlu0 %v1127
        %v1273 = vpop.xlane.xlu0 %1272
        %1274 = vadd.xlane.f32.xlu0 %v1197
        %v1275 = vpop.xlane.xlu0 %1274
        %1276 = vadd.xlane.f32.xlu0 %v1267
        %v1277 = vpop.xlane.xlu0 %1276
        %v1278 = vmul.f32 %v1271, %v492
        %v1279 = vmul.f32 %v1273, %v492
        %v1280 = vmul.f32 %v1275, %v492
        %v1281 = vmul.f32 %v1277, %v492
        %v1282 = vmul.f32 %v1057, %v1057
        %v1283 = vmul.f32 %v1127, %v1127
        %v1284 = vmul.f32 %v1197, %v1197
        %v1285 = vmul.f32 %v1267, %v1267
        %1286 = vadd.xlane.f32.xlu0 %v1282
        %v1287 = vpop.xlane.xlu0 %1286
        %1288 = vadd.xlane.f32.xlu0 %v1283
        %v1289 = vpop.xlane.xlu0 %1288
        %1290 = vadd.xlane.f32.xlu0 %v1284
        %v1291 = vpop.xlane.xlu0 %1290
        %1292 = vadd.xlane.f32.xlu0 %v1285
        %v1293 = vpop.xlane.xlu0 %1292
        %v1294 = vmul.f32 %v1287, %v492
        %v1295 = vmul.f32 %v1289, %v492
        %v1296 = vmul.f32 %v1291, %v492
        %v1297 = vmul.f32 %v1293, %v492
        %v1298 = vmul.f32 %v1278, %v1278
        %v1299 = vmul.f32 %v1279, %v1279
        %v1300 = vmul.f32 %v1280, %v1280
        %v1301 = vmul.f32 %v1281, %v1281
        %v1302 = vsub.f32 %v1294, %v1298
        %v1303 = vsub.f32 %v1295, %v1299
        %v1304 = vsub.f32 %v1296, %v1300
        %v1305 = vsub.f32 %v1297, %v1301
        %v1306 = vmax.f32 %v1302, 0.0
        %v1307 = vmax.f32 %v1303, 0.0
        %v1308 = vmax.f32 %v1304, 0.0
        %v1309 = vmax.f32 %v1305, 0.0
        %v1310 = vsub.f32 %v1057, %v1278
        %v1311 = vsub.f32 %v1127, %v1279
        %v1312 = vsub.f32 %v1197, %v1280
        %v1313 = vsub.f32 %v1267, %v1281
        %v1314 = vadd.f32 %v1306, 1e-05
        %v1315 = vadd.f32 %v1307, 1e-05
        %v1316 = vadd.f32 %v1308, 1e-05
        %v1317 = vadd.f32 %v1309, 1e-05
        %v1318 = vrsqrt.pop %v1314
        %v1319 = vrsqrt.pop %v1315
        %v1320 = vrsqrt.pop %v1316
        %v1321 = vrsqrt.pop %v1317
        %v1322 = vmul.f32 %v1310, %v1318
        %v1323 = vmul.f32 %v1311, %v1319
        %v1324 = vmul.f32 %v1312, %v1320
        %v1325 = vmul.f32 %v1313, %v1321
        %v1327 = vlaneseq
        %v1328 = vshrl.u32 %v1327, 7
        %v1329 = vsub.s32 0, %v1328
        %v1330 = vrot.slane %v428, %v1329
        %v1332 = vmul.f32 %v1322, %v1330
        %v1333 = vmul.f32 %v1323, %v1330
        %v1334 = vmul.f32 %v1324, %v1330
        %v1335 = vmul.f32 %v1325, %v1330
        %v1337 = vlaneseq
        %v1338 = vshrl.u32 %v1337, 7
        %v1339 = vsub.s32 0, %v1338
        %v1340 = vrot.slane %v429, %v1339
        %v1342 = vadd.f32 %v1332, %v1340
        %v1343 = vadd.f32 %v1333, %v1340
        %v1344 = vadd.f32 %v1334, %v1340
        %v1345 = vadd.f32 %v1335, %v1340
        %v1346 = vmul.f32 %v1342, %v1342
        %v1347 = vmul.f32 %v1343, %v1343
        %v1348 = vmul.f32 %v1344, %v1344
        %v1349 = vmul.f32 %v1345, %v1345
        %v1350 = vmul.f32 %v1342, %v1346
        %v1351 = vmul.f32 %v1343, %v1347
        %v1352 = vmul.f32 %v1344, %v1348
        %v1353 = vmul.f32 %v1345, %v1349
        %v1354 = vmul.f32 %v1350, 0.044715
        %v1355 = vmul.f32 %v1351, 0.044715
        %v1356 = vmul.f32 %v1352, 0.044715
        %v1357 = vmul.f32 %v1353, 0.044715
        %v1358 = vadd.f32 %v1342, %v1354
        %v1359 = vadd.f32 %v1343, %v1355
        %v1360 = vadd.f32 %v1344, %v1356
        %v1361 = vadd.f32 %v1345, %v1357
        %v1362 = vmul.f32 %v1358, 0.7978846
        %v1363 = vmul.f32 %v1359, 0.7978846
        %v1364 = vmul.f32 %v1360, 0.7978846
        %v1365 = vmul.f32 %v1361, 0.7978846
        %v1366 = vtanh.pop %v1362
        %v1367 = vtanh.pop %v1363
        %v1368 = vtanh.pop %v1364
        %v1369 = vtanh.pop %v1365
        %v1370 = vadd.f32 %v1366, 1.0
        %v1371 = vadd.f32 %v1367, 1.0
        %v1372 = vadd.f32 %v1368, 1.0
        %v1373 = vadd.f32 %v1369, 1.0
        %v1374 = vmul.f32 %v1370, 0.5
        %v1375 = vmul.f32 %v1371, 0.5
        %v1376 = vmul.f32 %v1372, 0.5
        %v1377 = vmul.f32 %v1373, 0.5
        %v1378 = vmul.f32 %v1342, %v1374
        %v1379 = vmul.f32 %v1343, %v1375
        %v1380 = vmul.f32 %v1344, %v1376
        %v1381 = vmul.f32 %v1345, %v1377
        %v1382 = vadd.f32 %v422, %v1378
        %v1383 = vadd.f32 %v423, %v1379
        %v1384 = vadd.f32 %v424, %v1380
        %v1385 = vadd.f32 %v425, %v1381
        %1386 = vadd.xlane.f32.xlu0 %v1382
        %v1387 = vpop.xlane.xlu0 %1386
        %1388 = vadd.xlane.f32.xlu0 %v1383
        %v1389 = vpop.xlane.xlu0 %1388
        %1390 = vadd.xlane.f32.xlu0 %v1384
        %v1391 = vpop.xlane.xlu0 %1390
        %1392 = vadd.xlane.f32.xlu0 %v1385
        %v1393 = vpop.xlane.xlu0 %1392
        %v1394 = vmul.f32 %v1387, %v492
        %v1395 = vmul.f32 %v1389, %v492
        %v1396 = vmul.f32 %v1391, %v492
        %v1397 = vmul.f32 %v1393, %v492
        %v1398 = vmul.f32 %v1382, %v1382
        %v1399 = vmul.f32 %v1383, %v1383
        %v1400 = vmul.f32 %v1384, %v1384
        %v1401 = vmul.f32 %v1385, %v1385
        %1402 = vadd.xlane.f32.xlu0 %v1398
        %v1403 = vpop.xlane.xlu0 %1402
        %1404 = vadd.xlane.f32.xlu0 %v1399
        %v1405 = vpop.xlane.xlu0 %1404
        %1406 = vadd.xlane.f32.xlu0 %v1400
        %v1407 = vpop.xlane.xlu0 %1406
        %1408 = vadd.xlane.f32.xlu0 %v1401
        %v1409 = vpop.xlane.xlu0 %1408
        %v1410 = vmul.f32 %v1403, %v492
        %v1411 = vmul.f32 %v1405, %v492
        %v1412 = vmul.f32 %v1407, %v492
        %v1413 = vmul.f32 %v1409, %v492
        %v1414 = vmul.f32 %v1394, %v1394
        %v1415 = vmul.f32 %v1395, %v1395
        %v1416 = vmul.f32 %v1396, %v1396
        %v1417 = vmul.f32 %v1397, %v1397
        %v1418 = vsub.f32 %v1410, %v1414
        %v1419 = vsub.f32 %v1411, %v1415
        %v1420 = vsub.f32 %v1412, %v1416
        %v1421 = vsub.f32 %v1413, %v1417
        %v1422 = vmax.f32 %v1418, 0.0
        %v1423 = vmax.f32 %v1419, 0.0
        %v1424 = vmax.f32 %v1420, 0.0
        %v1425 = vmax.f32 %v1421, 0.0
        %v1426 = vsub.f32 %v1382, %v1394
        %v1427 = vsub.f32 %v1383, %v1395
        %v1428 = vsub.f32 %v1384, %v1396
        %v1429 = vsub.f32 %v1385, %v1397
        %v1430 = vadd.f32 %v1422, 1e-05
        %v1431 = vadd.f32 %v1423, 1e-05
        %v1432 = vadd.f32 %v1424, 1e-05
        %v1433 = vadd.f32 %v1425, 1e-05
        %v1434 = vrsqrt.pop %v1430
        %v1435 = vrsqrt.pop %v1431
        %v1436 = vrsqrt.pop %v1432
        %v1437 = vrsqrt.pop %v1433
        %v1438 = vmul.f32 %v1426, %v1434
        %v1439 = vmul.f32 %v1427, %v1435
        %v1440 = vmul.f32 %v1428, %v1436
        %v1441 = vmul.f32 %v1429, %v1437
        %v1443 = vlaneseq
        %v1444 = vshrl.u32 %v1443, 7
        %v1445 = vsub.s32 0, %v1444
        %v1446 = vrot.slane %v430, %v1445
        %v1448 = vmul.f32 %v1438, %v1446
        %v1449 = vmul.f32 %v1439, %v1446
        %v1450 = vmul.f32 %v1440, %v1446
        %v1451 = vmul.f32 %v1441, %v1446
        %v1453 = vlaneseq
        %v1454 = vshrl.u32 %v1453, 7
        %v1455 = vsub.s32 0, %v1454
        %v1456 = vrot.slane %v431, %v1455
        %v1458 = vadd.f32 %v1448, %v1456
        %v1459 = vadd.f32 %v1449, %v1456
        %v1460 = vadd.f32 %v1450, %v1456
        %v1461 = vadd.f32 %v1451, %v1456
        %v1463 = vlaneseq
        %v1464 = vshrl.u32 %v1463, 7
        %v1465 = vsub.s32 0, %v1464
        %v1466 = vrot.slane %v451, %v1465
        %1468 = vmatprep.subr.mxu0 0.0
        %1469 = vmatpush1.msra.mxu0 %v435
        %1470 = vmatprep.subr.mxu0 0.0
        %1471 = vmatpush1.msra.mxu0 %v436
        %1472 = vmatprep.subr.mxu0 0.0
        %1473 = vmatpush1.msra.mxu0 %v437
        %1474 = vmatprep.subr.mxu0 0.0
        %1475 = vmatpush1.msra.mxu0 %v438
        %1476 = vmatprep.subr.mxu0 0.0
        %1477 = vmatpush1.msra.mxu0 %v439
        %1478 = vmatprep.subr.mxu0 0.0
        %1479 = vmatpush1.msra.mxu0 %v440
        %1480 = vmatprep.subr.mxu0 0.0
        %1481 = vmatpush1.msra.mxu0 %v441
        %1482 = vmatprep.subr.mxu0 0.0
        %1483 = vmatpush1.msra.mxu0 %v442
        %1484 = vmatprep.subr.mxu0 0.0
        %1485 = vmatpush1.msra.mxu0 %v443
        %1486 = vmatprep.subr.mxu0 0.0
        %1487 = vmatpush1.msra.mxu0 %v444
        %1488 = vmatprep.subr.mxu0 0.0
        %1489 = vmatpush1.msra.mxu0 %v445
        %1490 = vmatprep.subr.mxu0 0.0
        %1491 = vmatpush1.msra.mxu0 %v446
        %1492 = vmatprep.subr.mxu0 0.0
        %1493 = vmatpush1.msra.mxu0 %v447
        %1494 = vmatprep.subr.mxu0 0.0
        %1495 = vmatpush1.msra.mxu0 %v448
        %1496 = vmatprep.subr.mxu0 0.0
        %1497 = vmatpush1.msra.mxu0 %v449
        %1498 = vmatprep.subr.mxu0 0.0
        %1499 = vmatpush1.msra.mxu0 %v450
        %1500 = vmatprep.subr.mxu0 0.0
        %1501 = vmatpush1.msra.mxu0 0.0
        %1502 = vmatprep.subr.mxu0 0.0
        %1503 = vmatpush1.msra.mxu0 0.0
        %1504 = vmatprep.subr.mxu0 0.0
        %1505 = vmatpush1.msra.mxu0 0.0
        %1506 = vmatprep.subr.mxu0 0.0
        %1507 = vmatpush1.msra.mxu0 0.0
        %1508 = vmatprep.subr.mxu0 0.0
        %1509 = vmatpush1.msra.mxu0 0.0
        %1510 = vmatprep.subr.mxu0 0.0
        %1511 = vmatpush1.msra.mxu0 0.0
        %1512 = vmatprep.subr.mxu0 0.0
        %1513 = vmatpush1.msra.mxu0 0.0
        %1514 = vmatprep.subr.mxu0 0.0
        %1515 = vmatpush1.msra.mxu0 0.0
        %1516 = vmatprep.subr.mxu0 0.0
        %1517 = vmatpush1.msra.mxu0 0.0
        %1518 = vmatprep.subr.mxu0 0.0
        %1519 = vmatpush1.msra.mxu0 0.0
        %1520 = vmatprep.subr.mxu0 0.0
        %1521 = vmatpush1.msra.mxu0 0.0
        %1522 = vmatprep.subr.mxu0 0.0
        %1523 = vmatpush1.msra.mxu0 0.0
        %1524 = vmatprep.subr.mxu0 0.0
        %1525 = vmatpush1.msra.mxu0 0.0
        %1526 = vmatprep.subr.mxu0 0.0
        %1527 = vmatpush1.msra.mxu0 0.0
        %1528 = vmatprep.subr.mxu0 0.0
        %1529 = vmatpush1.msra.mxu0 0.0
        %1530 = vmatprep.subr.mxu0 0.0
        %1531 = vmatpush1.msra.mxu0 0.0
        %1532 = vmatprep.mubr.f32.mxu0 0.0
        %1533 = vmatmul.mubr.f32.gmra.mrb[0].mxu0 %v1458
        %v1534 = vpop.f32.mrb[0].mxu0
        %v1535 = vadd.f32 %v1466, %v1534
        %v1536 = vpop.f32.mrb[0].mxu0
        %1537 = vmatprep.mubr.f32.mxu0 0.0
        %1538 = vmatmul.mubr.f32.gmra.mrb[0].mxu0 %v1459
        %v1539 = vpop.f32.mrb[0].mxu0
        %v1540 = vadd.f32 %v1466, %v1539
        %v1541 = vpop.f32.mrb[0].mxu0
        %1542 = vmatprep.mubr.f32.mxu0 0.0
        %1543 = vmatmul.mubr.f32.gmra.mrb[0].mxu0 %v1460
        %v1544 = vpop.f32.mrb[0].mxu0
        %v1545 = vadd.f32 %v1466, %v1544
        %v1546 = vpop.f32.mrb[0].mxu0
        %1547 = vmatprep.mubr.f32.mxu0 0.0
        %1548 = vmatmul.mubr.f32.gmra.mrb[0].mxu0 %v1461
        %v1549 = vpop.f32.mrb[0].mxu0
        %v1550 = vadd.f32 %v1466, %v1549
        %v1551 = vpop.f32.mrb[0].mxu0
        %1552 = vdwg.mxu0
        %v1553 = vmul.f32 %v1535, %v1535
        %v1554 = vmul.f32 %v1540, %v1540
        %v1555 = vmul.f32 %v1545, %v1545
        %v1556 = vmul.f32 %v1550, %v1550
        %v1557 = vmul.f32 %v1535, %v1553
        %v1558 = vmul.f32 %v1540, %v1554
        %v1559 = vmul.f32 %v1545, %v1555
        %v1560 = vmul.f32 %v1550, %v1556
        %v1561 = vmul.f32 %v1557, 0.044715
        %v1562 = vmul.f32 %v1558, 0.044715
        %v1563 = vmul.f32 %v1559, 0.044715
        %v1564 = vmul.f32 %v1560, 0.044715
        %v1565 = vadd.f32 %v1535, %v1561
        %v1566 = vadd.f32 %v1540, %v1562
        %v1567 = vadd.f32 %v1545, %v1563
        %v1568 = vadd.f32 %v1550, %v1564
        %v1569 = vmul.f32 %v1565, 0.7978846
        %v1570 = vmul.f32 %v1566, 0.7978846
        %v1571 = vmul.f32 %v1567, 0.7978846
        %v1572 = vmul.f32 %v1568, 0.7978846
        %v1573 = vtanh.pop %v1569
        %v1574 = vtanh.pop %v1570
        %v1575 = vtanh.pop %v1571
        %v1576 = vtanh.pop %v1572
        %v1577 = vadd.f32 %v1573, 1.0
        %v1578 = vadd.f32 %v1574, 1.0
        %v1579 = vadd.f32 %v1575, 1.0
        %v1580 = vadd.f32 %v1576, 1.0
        %v1581 = vmul.f32 %v1577, 0.5
        %v1582 = vmul.f32 %v1578, 0.5
        %v1583 = vmul.f32 %v1579, 0.5
        %v1584 = vmul.f32 %v1580, 0.5
        %v1585 = vmul.f32 %v1535, %v1581
        %v1586 = vmul.f32 %v1540, %v1582
        %v1587 = vmul.f32 %v1545, %v1583
        %v1588 = vmul.f32 %v1550, %v1584
        %v1589 = vadd.f32 %v1382, %v1585
        %v1590 = vadd.f32 %v1383, %v1586
        %v1591 = vadd.f32 %v1384, %v1587
        %v1592 = vadd.f32 %v1385, %v1588
        %1593 = vadd.xlane.f32.xlu0 %v1589
        %v1594 = vpop.xlane.xlu0 %1593
        %1595 = vadd.xlane.f32.xlu0 %v1590
        %v1596 = vpop.xlane.xlu0 %1595
        %1597 = vadd.xlane.f32.xlu0 %v1591
        %v1598 = vpop.xlane.xlu0 %1597
        %1599 = vadd.xlane.f32.xlu0 %v1592
        %v1600 = vpop.xlane.xlu0 %1599
        %v1601 = vmul.f32 %v1594, %v492
        %v1602 = vmul.f32 %v1596, %v492
        %v1603 = vmul.f32 %v1598, %v492
        %v1604 = vmul.f32 %v1600, %v492
        %v1605 = vmul.f32 %v1589, %v1589
        %v1606 = vmul.f32 %v1590, %v1590
        %v1607 = vmul.f32 %v1591, %v1591
        %v1608 = vmul.f32 %v1592, %v1592
        %1609 = vadd.xlane.f32.xlu0 %v1605
        %v1610 = vpop.xlane.xlu0 %1609
        %1611 = vadd.xlane.f32.xlu0 %v1606
        %v1612 = vpop.xlane.xlu0 %1611
        %1613 = vadd.xlane.f32.xlu0 %v1607
        %v1614 = vpop.xlane.xlu0 %1613
        %1615 = vadd.xlane.f32.xlu0 %v1608
        %v1616 = vpop.xlane.xlu0 %1615
        %v1617 = vmul.f32 %v1610, %v492
        %v1618 = vmul.f32 %v1612, %v492
        %v1619 = vmul.f32 %v1614, %v492
        %v1620 = vmul.f32 %v1616, %v492
        %v1621 = vmul.f32 %v1601, %v1601
        %v1622 = vmul.f32 %v1602, %v1602
        %v1623 = vmul.f32 %v1603, %v1603
        %v1624 = vmul.f32 %v1604, %v1604
        %v1625 = vsub.f32 %v1617, %v1621
        %v1626 = vsub.f32 %v1618, %v1622
        %v1627 = vsub.f32 %v1619, %v1623
        %v1628 = vsub.f32 %v1620, %v1624
        %v1629 = vmax.f32 %v1625, 0.0
        %v1630 = vmax.f32 %v1626, 0.0
        %v1631 = vmax.f32 %v1627, 0.0
        %v1632 = vmax.f32 %v1628, 0.0
        %v1633 = vsub.f32 %v1589, %v1601
        %v1634 = vsub.f32 %v1590, %v1602
        %v1635 = vsub.f32 %v1591, %v1603
        %v1636 = vsub.f32 %v1592, %v1604
        %v1637 = vadd.f32 %v1629, 1e-05
        %v1638 = vadd.f32 %v1630, 1e-05
        %v1639 = vadd.f32 %v1631, 1e-05
        %v1640 = vadd.f32 %v1632, 1e-05
        %v1641 = vrsqrt.pop %v1637
        %v1642 = vrsqrt.pop %v1638
        %v1643 = vrsqrt.pop %v1639
        %v1644 = vrsqrt.pop %v1640
        %v1645 = vmul.f32 %v1633, %v1641
        %v1646 = vmul.f32 %v1634, %v1642
        %v1647 = vmul.f32 %v1635, %v1643
        %v1648 = vmul.f32 %v1636, %v1644
        %v1649 = vmul.f32 %v1645, %v545
        %v1650 = vmul.f32 %v1646, %v545
        %v1651 = vmul.f32 %v1647, %v545
        %v1652 = vmul.f32 %v1648, %v545
        %v1653 = vadd.f32 %v1649, %v555
        %v1654 = vadd.f32 %v1650, %v555
        %v1655 = vadd.f32 %v1651, %v555
        %v1656 = vadd.f32 %v1652, %v555
        %1657 = vrot.lane.b32.xlu0 %v1653, 15
        %v1658 = vpop.permute.xlu0 %1657
        %1659 = vrot.lane.b32.xlu0 %v1654, 15
        %v1660 = vpop.permute.xlu0 %1659
        %1661 = vrot.lane.b32.xlu0 %v1655, 15
        %v1662 = vpop.permute.xlu0 %1661
        %1663 = vrot.lane.b32.xlu0 %v1656, 15
        %v1664 = vpop.permute.xlu0 %1663
        %v1665 = vsel %vm570, %v1658, 0.0
        %v1666 = vsel %vm570, %v1660, 0.0
        %v1667 = vsel %vm570, %v1662, 0.0
        %v1668 = vsel %vm570, %v1664, 0.0
        %1669 = vrot.lane.b32.xlu0 %v1653, 14
        %v1670 = vpop.permute.xlu0 %1669
        %1671 = vrot.lane.b32.xlu0 %v1654, 14
        %v1672 = vpop.permute.xlu0 %1671
        %1673 = vrot.lane.b32.xlu0 %v1655, 14
        %v1674 = vpop.permute.xlu0 %1673
        %1675 = vrot.lane.b32.xlu0 %v1656, 14
        %v1676 = vpop.permute.xlu0 %1675
        %v1677 = vsel %vm584, %v1670, 0.0
        %v1678 = vsel %vm584, %v1672, 0.0
        %v1679 = vsel %vm584, %v1674, 0.0
        %v1680 = vsel %vm584, %v1676, 0.0
        %1681 = vrot.lane.b32.xlu0 %v1653, 13
        %v1682 = vpop.permute.xlu0 %1681
        %1683 = vrot.lane.b32.xlu0 %v1654, 13
        %v1684 = vpop.permute.xlu0 %1683
        %1685 = vrot.lane.b32.xlu0 %v1655, 13
        %v1686 = vpop.permute.xlu0 %1685
        %1687 = vrot.lane.b32.xlu0 %v1656, 13
        %v1688 = vpop.permute.xlu0 %1687
        %v1689 = vsel %vm598, %v1682, 0.0
        %v1690 = vsel %vm598, %v1684, 0.0
        %v1691 = vsel %vm598, %v1686, 0.0
        %v1692 = vsel %vm598, %v1688, 0.0
        %1693 = vrot.lane.b32.xlu0 %v1653, 12
        %v1694 = vpop.permute.xlu0 %1693
        %1695 = vrot.lane.b32.xlu0 %v1654, 12
        %v1696 = vpop.permute.xlu0 %1695
        %1697 = vrot.lane.b32.xlu0 %v1655, 12
        %v1698 = vpop.permute.xlu0 %1697
        %1699 = vrot.lane.b32.xlu0 %v1656, 12
        %v1700 = vpop.permute.xlu0 %1699
        %v1701 = vsel %vm612, %v1694, 0.0
        %v1702 = vsel %vm612, %v1696, 0.0
        %v1703 = vsel %vm612, %v1698, 0.0
        %v1704 = vsel %vm612, %v1700, 0.0
        %1705 = vrot.lane.b32.xlu0 %v1653, 11
        %v1706 = vpop.permute.xlu0 %1705
        %1707 = vrot.lane.b32.xlu0 %v1654, 11
        %v1708 = vpop.permute.xlu0 %1707
        %1709 = vrot.lane.b32.xlu0 %v1655, 11
        %v1710 = vpop.permute.xlu0 %1709
        %1711 = vrot.lane.b32.xlu0 %v1656, 11
        %v1712 = vpop.permute.xlu0 %1711
        %v1713 = vsel %vm626, %v1706, 0.0
        %v1714 = vsel %vm626, %v1708, 0.0
        %v1715 = vsel %vm626, %v1710, 0.0
        %v1716 = vsel %vm626, %v1712, 0.0
        %1717 = vrot.lane.b32.xlu0 %v1653, 10
        %v1718 = vpop.permute.xlu0 %1717
        %1719 = vrot.lane.b32.xlu0 %v1654, 10
        %v1720 = vpop.permute.xlu0 %1719
        %1721 = vrot.lane.b32.xlu0 %v1655, 10
        %v1722 = vpop.permute.xlu0 %1721
        %1723 = vrot.lane.b32.xlu0 %v1656, 10
        %v1724 = vpop.permute.xlu0 %1723
        %v1725 = vsel %vm640, %v1718, 0.0
        %v1726 = vsel %vm640, %v1720, 0.0
        %v1727 = vsel %vm640, %v1722, 0.0
        %v1728 = vsel %vm640, %v1724, 0.0
        %1729 = vrot.lane.b32.xlu0 %v1653, 9
        %v1730 = vpop.permute.xlu0 %1729
        %1731 = vrot.lane.b32.xlu0 %v1654, 9
        %v1732 = vpop.permute.xlu0 %1731
        %1733 = vrot.lane.b32.xlu0 %v1655, 9
        %v1734 = vpop.permute.xlu0 %1733
        %1735 = vrot.lane.b32.xlu0 %v1656, 9
        %v1736 = vpop.permute.xlu0 %1735
        %v1737 = vsel %vm654, %v1730, 0.0
        %v1738 = vsel %vm654, %v1732, 0.0
        %v1739 = vsel %vm654, %v1734, 0.0
        %v1740 = vsel %vm654, %v1736, 0.0
        %1741 = vrot.lane.b32.xlu0 %v1653, 8
        %v1742 = vpop.permute.xlu0 %1741
        %1743 = vrot.lane.b32.xlu0 %v1654, 8
        %v1744 = vpop.permute.xlu0 %1743
        %1745 = vrot.lane.b32.xlu0 %v1655, 8
        %v1746 = vpop.permute.xlu0 %1745
        %1747 = vrot.lane.b32.xlu0 %v1656, 8
        %v1748 = vpop.permute.xlu0 %1747
        %v1749 = vsel %vm668, %v1742, 0.0
        %v1750 = vsel %vm668, %v1744, 0.0
        %v1751 = vsel %vm668, %v1746, 0.0
        %v1752 = vsel %vm668, %v1748, 0.0
        %1753 = vrot.lane.b32.xlu0 %v1653, 7
        %v1754 = vpop.permute.xlu0 %1753
        %1755 = vrot.lane.b32.xlu0 %v1654, 7
        %v1756 = vpop.permute.xlu0 %1755
        %1757 = vrot.lane.b32.xlu0 %v1655, 7
        %v1758 = vpop.permute.xlu0 %1757
        %1759 = vrot.lane.b32.xlu0 %v1656, 7
        %v1760 = vpop.permute.xlu0 %1759
        %v1761 = vsel %vm682, %v1754, 0.0
        %v1762 = vsel %vm682, %v1756, 0.0
        %v1763 = vsel %vm682, %v1758, 0.0
        %v1764 = vsel %vm682, %v1760, 0.0
        %1765 = vrot.lane.b32.xlu0 %v1653, 6
        %v1766 = vpop.permute.xlu0 %1765
        %1767 = vrot.lane.b32.xlu0 %v1654, 6
        %v1768 = vpop.permute.xlu0 %1767
        %1769 = vrot.lane.b32.xlu0 %v1655, 6
        %v1770 = vpop.permute.xlu0 %1769
        %1771 = vrot.lane.b32.xlu0 %v1656, 6
        %v1772 = vpop.permute.xlu0 %1771
        %v1773 = vsel %vm696, %v1766, 0.0
        %v1774 = vsel %vm696, %v1768, 0.0
        %v1775 = vsel %vm696, %v1770, 0.0
        %v1776 = vsel %vm696, %v1772, 0.0
        %1777 = vrot.lane.b32.xlu0 %v1653, 5
        %v1778 = vpop.permute.xlu0 %1777
        %1779 = vrot.lane.b32.xlu0 %v1654, 5
        %v1780 = vpop.permute.xlu0 %1779
        %1781 = vrot.lane.b32.xlu0 %v1655, 5
        %v1782 = vpop.permute.xlu0 %1781
        %1783 = vrot.lane.b32.xlu0 %v1656, 5
        %v1784 = vpop.permute.xlu0 %1783
        %v1785 = vsel %vm710, %v1778, 0.0
        %v1786 = vsel %vm710, %v1780, 0.0
        %v1787 = vsel %vm710, %v1782, 0.0
        %v1788 = vsel %vm710, %v1784, 0.0
        %1789 = vrot.lane.b32.xlu0 %v1653, 4
        %v1790 = vpop.permute.xlu0 %1789
        %1791 = vrot.lane.b32.xlu0 %v1654, 4
        %v1792 = vpop.permute.xlu0 %1791
        %1793 = vrot.lane.b32.xlu0 %v1655, 4
        %v1794 = vpop.permute.xlu0 %1793
        %1795 = vrot.lane.b32.xlu0 %v1656, 4
        %v1796 = vpop.permute.xlu0 %1795
        %v1797 = vsel %vm724, %v1790, 0.0
        %v1798 = vsel %vm724, %v1792, 0.0
        %v1799 = vsel %vm724, %v1794, 0.0
        %v1800 = vsel %vm724, %v1796, 0.0
        %1801 = vrot.lane.b32.xlu0 %v1653, 3
        %v1802 = vpop.permute.xlu0 %1801
        %1803 = vrot.lane.b32.xlu0 %v1654, 3
        %v1804 = vpop.permute.xlu0 %1803
        %1805 = vrot.lane.b32.xlu0 %v1655, 3
        %v1806 = vpop.permute.xlu0 %1805
        %1807 = vrot.lane.b32.xlu0 %v1656, 3
        %v1808 = vpop.permute.xlu0 %1807
        %v1809 = vsel %vm738, %v1802, 0.0
        %v1810 = vsel %vm738, %v1804, 0.0
        %v1811 = vsel %vm738, %v1806, 0.0
        %v1812 = vsel %vm738, %v1808, 0.0
        %1813 = vrot.lane.b32.xlu0 %v1653, 2
        %v1814 = vpop.permute.xlu0 %1813
        %1815 = vrot.lane.b32.xlu0 %v1654, 2
        %v1816 = vpop.permute.xlu0 %1815
        %1817 = vrot.lane.b32.xlu0 %v1655, 2
        %v1818 = vpop.permute.xlu0 %1817
        %1819 = vrot.lane.b32.xlu0 %v1656, 2
        %v1820 = vpop.permute.xlu0 %1819
        %v1821 = vsel %vm752, %v1814, 0.0
        %v1822 = vsel %vm752, %v1816, 0.0
        %v1823 = vsel %vm752, %v1818, 0.0
        %v1824 = vsel %vm752, %v1820, 0.0
        %1825 = vrot.lane.b32.xlu0 %v1653, 1
        %v1826 = vpop.permute.xlu0 %1825
        %1827 = vrot.lane.b32.xlu0 %v1654, 1
        %v1828 = vpop.permute.xlu0 %1827
        %1829 = vrot.lane.b32.xlu0 %v1655, 1
        %v1830 = vpop.permute.xlu0 %1829
        %1831 = vrot.lane.b32.xlu0 %v1656, 1
        %v1832 = vpop.permute.xlu0 %1831
        %v1833 = vsel %vm766, %v1826, 0.0
        %v1834 = vsel %vm766, %v1828, 0.0
        %v1835 = vsel %vm766, %v1830, 0.0
        %v1836 = vsel %vm766, %v1832, 0.0
        %1837 = vrot.lane.b32.xlu0 %v1653, 127
        %v1838 = vpop.permute.xlu0 %1837
        %1839 = vrot.lane.b32.xlu0 %v1654, 127
        %v1840 = vpop.permute.xlu0 %1839
        %1841 = vrot.lane.b32.xlu0 %v1655, 127
        %v1842 = vpop.permute.xlu0 %1841
        %1843 = vrot.lane.b32.xlu0 %v1656, 127
        %v1844 = vpop.permute.xlu0 %1843
        %v1845 = vsel %vm780, %v1838, 0.0
        %v1846 = vsel %vm780, %v1840, 0.0
        %v1847 = vsel %vm780, %v1842, 0.0
        %v1848 = vsel %vm780, %v1844, 0.0
        %1849 = vrot.lane.b32.xlu0 %v1653, 126
        %v1850 = vpop.permute.xlu0 %1849
        %1851 = vrot.lane.b32.xlu0 %v1654, 126
        %v1852 = vpop.permute.xlu0 %1851
        %1853 = vrot.lane.b32.xlu0 %v1655, 126
        %v1854 = vpop.permute.xlu0 %1853
        %1855 = vrot.lane.b32.xlu0 %v1656, 126
        %v1856 = vpop.permute.xlu0 %1855
        %v1857 = vsel %vm794, %v1850, 0.0
        %v1858 = vsel %vm794, %v1852, 0.0
        %v1859 = vsel %vm794, %v1854, 0.0
        %v1860 = vsel %vm794, %v1856, 0.0
        %1861 = vrot.lane.b32.xlu0 %v1653, 125
        %v1862 = vpop.permute.xlu0 %1861
        %1863 = vrot.lane.b32.xlu0 %v1654, 125
        %v1864 = vpop.permute.xlu0 %1863
        %1865 = vrot.lane.b32.xlu0 %v1655, 125
        %v1866 = vpop.permute.xlu0 %1865
        %1867 = vrot.lane.b32.xlu0 %v1656, 125
        %v1868 = vpop.permute.xlu0 %1867
        %v1869 = vsel %vm808, %v1862, 0.0
        %v1870 = vsel %vm808, %v1864, 0.0
        %v1871 = vsel %vm808, %v1866, 0.0
        %v1872 = vsel %vm808, %v1868, 0.0
        %1873 = vrot.lane.b32.xlu0 %v1653, 124
        %v1874 = vpop.permute.xlu0 %1873
        %1875 = vrot.lane.b32.xlu0 %v1654, 124
        %v1876 = vpop.permute.xlu0 %1875
        %1877 = vrot.lane.b32.xlu0 %v1655, 124
        %v1878 = vpop.permute.xlu0 %1877
        %1879 = vrot.lane.b32.xlu0 %v1656, 124
        %v1880 = vpop.permute.xlu0 %1879
        %v1881 = vsel %vm822, %v1874, 0.0
        %v1882 = vsel %vm822, %v1876, 0.0
        %v1883 = vsel %vm822, %v1878, 0.0
        %v1884 = vsel %vm822, %v1880, 0.0
        %1885 = vrot.lane.b32.xlu0 %v1653, 123
        %v1886 = vpop.permute.xlu0 %1885
        %1887 = vrot.lane.b32.xlu0 %v1654, 123
        %v1888 = vpop.permute.xlu0 %1887
        %1889 = vrot.lane.b32.xlu0 %v1655, 123
        %v1890 = vpop.permute.xlu0 %1889
        %1891 = vrot.lane.b32.xlu0 %v1656, 123
        %v1892 = vpop.permute.xlu0 %1891
        %v1893 = vsel %vm836, %v1886, 0.0
        %v1894 = vsel %vm836, %v1888, 0.0
        %v1895 = vsel %vm836, %v1890, 0.0
        %v1896 = vsel %vm836, %v1892, 0.0
        %1897 = vrot.lane.b32.xlu0 %v1653, 122
        %v1898 = vpop.permute.xlu0 %1897
        %1899 = vrot.lane.b32.xlu0 %v1654, 122
        %v1900 = vpop.permute.xlu0 %1899
        %1901 = vrot.lane.b32.xlu0 %v1655, 122
        %v1902 = vpop.permute.xlu0 %1901
        %1903 = vrot.lane.b32.xlu0 %v1656, 122
        %v1904 = vpop.permute.xlu0 %1903
        %v1905 = vsel %vm850, %v1898, 0.0
        %v1906 = vsel %vm850, %v1900, 0.0
        %v1907 = vsel %vm850, %v1902, 0.0
        %v1908 = vsel %vm850, %v1904, 0.0
        %1909 = vrot.lane.b32.xlu0 %v1653, 121
        %v1910 = vpop.permute.xlu0 %1909
        %1911 = vrot.lane.b32.xlu0 %v1654, 121
        %v1912 = vpop.permute.xlu0 %1911
        %1913 = vrot.lane.b32.xlu0 %v1655, 121
        %v1914 = vpop.permute.xlu0 %1913
        %1915 = vrot.lane.b32.xlu0 %v1656, 121
        %v1916 = vpop.permute.xlu0 %1915
        %v1917 = vsel %vm864, %v1910, 0.0
        %v1918 = vsel %vm864, %v1912, 0.0
        %v1919 = vsel %vm864, %v1914, 0.0
        %v1920 = vsel %vm864, %v1916, 0.0
        %1921 = vrot.lane.b32.xlu0 %v1653, 120
        %v1922 = vpop.permute.xlu0 %1921
        %1923 = vrot.lane.b32.xlu0 %v1654, 120
        %v1924 = vpop.permute.xlu0 %1923
        %1925 = vrot.lane.b32.xlu0 %v1655, 120
        %v1926 = vpop.permute.xlu0 %1925
        %1927 = vrot.lane.b32.xlu0 %v1656, 120
        %v1928 = vpop.permute.xlu0 %1927
        %v1929 = vsel %vm878, %v1922, 0.0
        %v1930 = vsel %vm878, %v1924, 0.0
        %v1931 = vsel %vm878, %v1926, 0.0
        %v1932 = vsel %vm878, %v1928, 0.0
        %1933 = vrot.lane.b32.xlu0 %v1653, 119
        %v1934 = vpop.permute.xlu0 %1933
        %1935 = vrot.lane.b32.xlu0 %v1654, 119
        %v1936 = vpop.permute.xlu0 %1935
        %1937 = vrot.lane.b32.xlu0 %v1655, 119
        %v1938 = vpop.permute.xlu0 %1937
        %1939 = vrot.lane.b32.xlu0 %v1656, 119
        %v1940 = vpop.permute.xlu0 %1939
        %v1941 = vsel %vm892, %v1934, 0.0
        %v1942 = vsel %vm892, %v1936, 0.0
        %v1943 = vsel %vm892, %v1938, 0.0
        %v1944 = vsel %vm892, %v1940, 0.0
        %1945 = vrot.lane.b32.xlu0 %v1653, 118
        %v1946 = vpop.permute.xlu0 %1945
        %1947 = vrot.lane.b32.xlu0 %v1654, 118
        %v1948 = vpop.permute.xlu0 %1947
        %1949 = vrot.lane.b32.xlu0 %v1655, 118
        %v1950 = vpop.permute.xlu0 %1949
        %1951 = vrot.lane.b32.xlu0 %v1656, 118
        %v1952 = vpop.permute.xlu0 %1951
        %v1953 = vsel %vm906, %v1946, 0.0
        %v1954 = vsel %vm906, %v1948, 0.0
        %v1955 = vsel %vm906, %v1950, 0.0
        %v1956 = vsel %vm906, %v1952, 0.0
        %1957 = vrot.lane.b32.xlu0 %v1653, 117
        %v1958 = vpop.permute.xlu0 %1957
        %1959 = vrot.lane.b32.xlu0 %v1654, 117
        %v1960 = vpop.permute.xlu0 %1959
        %1961 = vrot.lane.b32.xlu0 %v1655, 117
        %v1962 = vpop.permute.xlu0 %1961
        %1963 = vrot.lane.b32.xlu0 %v1656, 117
        %v1964 = vpop.permute.xlu0 %1963
        %v1965 = vsel %vm920, %v1958, 0.0
        %v1966 = vsel %vm920, %v1960, 0.0
        %v1967 = vsel %vm920, %v1962, 0.0
        %v1968 = vsel %vm920, %v1964, 0.0
        %1969 = vrot.lane.b32.xlu0 %v1653, 116
        %v1970 = vpop.permute.xlu0 %1969
        %1971 = vrot.lane.b32.xlu0 %v1654, 116
        %v1972 = vpop.permute.xlu0 %1971
        %1973 = vrot.lane.b32.xlu0 %v1655, 116
        %v1974 = vpop.permute.xlu0 %1973
        %1975 = vrot.lane.b32.xlu0 %v1656, 116
        %v1976 = vpop.permute.xlu0 %1975
        %v1977 = vsel %vm934, %v1970, 0.0
        %v1978 = vsel %vm934, %v1972, 0.0
        %v1979 = vsel %vm934, %v1974, 0.0
        %v1980 = vsel %vm934, %v1976, 0.0
        %1981 = vrot.lane.b32.xlu0 %v1653, 115
        %v1982 = vpop.permute.xlu0 %1981
        %1983 = vrot.lane.b32.xlu0 %v1654, 115
        %v1984 = vpop.permute.xlu0 %1983
        %1985 = vrot.lane.b32.xlu0 %v1655, 115
        %v1986 = vpop.permute.xlu0 %1985
        %1987 = vrot.lane.b32.xlu0 %v1656, 115
        %v1988 = vpop.permute.xlu0 %1987
        %v1989 = vsel %vm948, %v1982, 0.0
        %v1990 = vsel %vm948, %v1984, 0.0
        %v1991 = vsel %vm948, %v1986, 0.0
        %v1992 = vsel %vm948, %v1988, 0.0
        %1993 = vrot.lane.b32.xlu0 %v1653, 114
        %v1994 = vpop.permute.xlu0 %1993
        %1995 = vrot.lane.b32.xlu0 %v1654, 114
        %v1996 = vpop.permute.xlu0 %1995
        %1997 = vrot.lane.b32.xlu0 %v1655, 114
        %v1998 = vpop.permute.xlu0 %1997
        %1999 = vrot.lane.b32.xlu0 %v1656, 114
        %v2000 = vpop.permute.xlu0 %1999
        %v2001 = vsel %vm962, %v1994, 0.0
        %v2002 = vsel %vm962, %v1996, 0.0
        %v2003 = vsel %vm962, %v1998, 0.0
        %v2004 = vsel %vm962, %v2000, 0.0
        %2005 = vrot.lane.b32.xlu0 %v1653, 113
        %v2006 = vpop.permute.xlu0 %2005
        %2007 = vrot.lane.b32.xlu0 %v1654, 113
        %v2008 = vpop.permute.xlu0 %2007
        %2009 = vrot.lane.b32.xlu0 %v1655, 113
        %v2010 = vpop.permute.xlu0 %2009
        %2011 = vrot.lane.b32.xlu0 %v1656, 113
        %v2012 = vpop.permute.xlu0 %2011
        %v2013 = vsel %vm976, %v2006, 0.0
        %v2014 = vsel %vm976, %v2008, 0.0
        %v2015 = vsel %vm976, %v2010, 0.0
        %v2016 = vsel %vm976, %v2012, 0.0
        %2017 = vmatprep.subr.mxu0 0.0
        %2018 = vmatpush1.msra.mxu0 %v1665
        %2019 = vmatprep.subr.mxu0 0.0
        %2020 = vmatpush1.msra.mxu0 %v1677
        %2021 = vmatprep.subr.mxu0 0.0
        %2022 = vmatpush1.msra.mxu0 %v1689
        %2023 = vmatprep.subr.mxu0 0.0
        %2024 = vmatpush1.msra.mxu0 %v1701
        %2025 = vmatprep.subr.mxu0 0.0
        %2026 = vmatpush1.msra.mxu0 %v1713
        %2027 = vmatprep.subr.mxu0 0.0
        %2028 = vmatpush1.msra.mxu0 %v1725
        %2029 = vmatprep.subr.mxu0 0.0
        %2030 = vmatpush1.msra.mxu0 %v1737
        %2031 = vmatprep.subr.mxu0 0.0
        %2032 = vmatpush1.msra.mxu0 %v1749
        %2033 = vmatprep.subr.mxu0 0.0
        %2034 = vmatpush1.msra.mxu0 %v1761
        %2035 = vmatprep.subr.mxu0 0.0
        %2036 = vmatpush1.msra.mxu0 %v1773
        %2037 = vmatprep.subr.mxu0 0.0
        %2038 = vmatpush1.msra.mxu0 %v1785
        %2039 = vmatprep.subr.mxu0 0.0
        %2040 = vmatpush1.msra.mxu0 %v1797
        %2041 = vmatprep.subr.mxu0 0.0
        %2042 = vmatpush1.msra.mxu0 %v1809
        %2043 = vmatprep.subr.mxu0 0.0
        %2044 = vmatpush1.msra.mxu0 %v1821
        %2045 = vmatprep.subr.mxu0 0.0
        %2046 = vmatpush1.msra.mxu0 %v1833
        %2047 = vmatprep.subr.mxu0 0.0
        %2048 = vmatpush1.msra.mxu0 %v1653
        %2049 = vmatprep.subr.mxu0 0.0
        %2050 = vmatpush1.msra.mxu0 %v1845
        %2051 = vmatprep.subr.mxu0 0.0
        %2052 = vmatpush1.msra.mxu0 %v1857
        %2053 = vmatprep.subr.mxu0 0.0
        %2054 = vmatpush1.msra.mxu0 %v1869
        %2055 = vmatprep.subr.mxu0 0.0
        %2056 = vmatpush1.msra.mxu0 %v1881
        %2057 = vmatprep.subr.mxu0 0.0
        %2058 = vmatpush1.msra.mxu0 %v1893
        %2059 = vmatprep.subr.mxu0 0.0
        %2060 = vmatpush1.msra.mxu0 %v1905
        %2061 = vmatprep.subr.mxu0 0.0
        %2062 = vmatpush1.msra.mxu0 %v1917
        %2063 = vmatprep.subr.mxu0 0.0
        %2064 = vmatpush1.msra.mxu0 %v1929
        %2065 = vmatprep.subr.mxu0 0.0
        %2066 = vmatpush1.msra.mxu0 %v1941
        %2067 = vmatprep.subr.mxu0 0.0
        %2068 = vmatpush1.msra.mxu0 %v1953
        %2069 = vmatprep.subr.mxu0 0.0
        %2070 = vmatpush1.msra.mxu0 %v1965
        %2071 = vmatprep.subr.mxu0 0.0
        %2072 = vmatpush1.msra.mxu0 %v1977
        %2073 = vmatprep.subr.mxu0 0.0
        %2074 = vmatpush1.msra.mxu0 %v1989
        %2075 = vmatprep.subr.mxu0 0.0
        %2076 = vmatpush1.msra.mxu0 %v2001
        %2077 = vmatprep.subr.mxu0 0.0
        %2078 = vmatpush1.msra.mxu0 %v2013
        %2079 = vmatprep.subr.mxu0 0.0
        %2080 = vmatpush1.msra.mxu0 0.0
        %2081 = vmatprep.mubr.f32.mxu0 %v988
        %2082 = vmatmul.mubr.f32.gmra.mrb[0].mxu0 %v432
        %v2083 = vpop.f32.mrb[0].mxu0
        %v2084 = vadd.f32 %v984, %v2083
        %v2085 = vpop.f32.mrb[0].mxu0
        %2086 = vdwg.mxu0
        %2087 = vmatprep.subr.mxu0 0.0
        %2088 = vmatpush1.msra.mxu0 %v1666
        %2089 = vmatprep.subr.mxu0 0.0
        %2090 = vmatpush1.msra.mxu0 %v1678
        %2091 = vmatprep.subr.mxu0 0.0
        %2092 = vmatpush1.msra.mxu0 %v1690
        %2093 = vmatprep.subr.mxu0 0.0
        %2094 = vmatpush1.msra.mxu0 %v1702
        %2095 = vmatprep.subr.mxu0 0.0
        %2096 = vmatpush1.msra.mxu0 %v1714
        %2097 = vmatprep.subr.mxu0 0.0
        %2098 = vmatpush1.msra.mxu0 %v1726
        %2099 = vmatprep.subr.mxu0 0.0
        %2100 = vmatpush1.msra.mxu0 %v1738
        %2101 = vmatprep.subr.mxu0 0.0
        %2102 = vmatpush1.msra.mxu0 %v1750
        %2103 = vmatprep.subr.mxu0 0.0
        %2104 = vmatpush1.msra.mxu0 %v1762
        %2105 = vmatprep.subr.mxu0 0.0
        %2106 = vmatpush1.msra.mxu0 %v1774
        %2107 = vmatprep.subr.mxu0 0.0
        %2108 = vmatpush1.msra.mxu0 %v1786
        %2109 = vmatprep.subr.mxu0 0.0
        %2110 = vmatpush1.msra.mxu0 %v1798
        %2111 = vmatprep.subr.mxu0 0.0
        %2112 = vmatpush1.msra.mxu0 %v1810
        %2113 = vmatprep.subr.mxu0 0.0
        %2114 = vmatpush1.msra.mxu0 %v1822
        %2115 = vmatprep.subr.mxu0 0.0
        %2116 = vmatpush1.msra.mxu0 %v1834
        %2117 = vmatprep.subr.mxu0 0.0
        %2118 = vmatpush1.msra.mxu0 %v1654
        %2119 = vmatprep.subr.mxu0 0.0
        %2120 = vmatpush1.msra.mxu0 %v1846
        %2121 = vmatprep.subr.mxu0 0.0
        %2122 = vmatpush1.msra.mxu0 %v1858
        %2123 = vmatprep.subr.mxu0 0.0
        %2124 = vmatpush1.msra.mxu0 %v1870
        %2125 = vmatprep.subr.mxu0 0.0
        %2126 = vmatpush1.msra.mxu0 %v1882
        %2127 = vmatprep.subr.mxu0 0.0
        %2128 = vmatpush1.msra.mxu0 %v1894
        %2129 = vmatprep.subr.mxu0 0.0
        %2130 = vmatpush1.msra.mxu0 %v1906
        %2131 = vmatprep.subr.mxu0 0.0
        %2132 = vmatpush1.msra.mxu0 %v1918
        %2133 = vmatprep.subr.mxu0 0.0
        %2134 = vmatpush1.msra.mxu0 %v1930
        %2135 = vmatprep.subr.mxu0 0.0
        %2136 = vmatpush1.msra.mxu0 %v1942
        %2137 = vmatprep.subr.mxu0 0.0
        %2138 = vmatpush1.msra.mxu0 %v1954
        %2139 = vmatprep.subr.mxu0 0.0
        %2140 = vmatpush1.msra.mxu0 %v1966
        %2141 = vmatprep.subr.mxu0 0.0
        %2142 = vmatpush1.msra.mxu0 %v1978
        %2143 = vmatprep.subr.mxu0 0.0
        %2144 = vmatpush1.msra.mxu0 %v1990
        %2145 = vmatprep.subr.mxu0 0.0
        %2146 = vmatpush1.msra.mxu0 %v2002
        %2147 = vmatprep.subr.mxu0 0.0
        %2148 = vmatpush1.msra.mxu0 %v2014
        %2149 = vmatprep.subr.mxu0 0.0
        %2150 = vmatpush1.msra.mxu0 0.0
        %2151 = vmatprep.mubr.f32.mxu0 %v988
        %2152 = vmatmul.mubr.f32.gmra.mrb[0].mxu0 %v432
        %v2153 = vpop.f32.mrb[0].mxu0
        %v2154 = vadd.f32 %v984, %v2153
        %v2155 = vpop.f32.mrb[0].mxu0
        %2156 = vdwg.mxu0
        %2157 = vmatprep.subr.mxu0 0.0
        %2158 = vmatpush1.msra.mxu0 %v1667
        %2159 = vmatprep.subr.mxu0 0.0
        %2160 = vmatpush1.msra.mxu0 %v1679
        %2161 = vmatprep.subr.mxu0 0.0
        %2162 = vmatpush1.msra.mxu0 %v1691
        %2163 = vmatprep.subr.mxu0 0.0
        %2164 = vmatpush1.msra.mxu0 %v1703
        %2165 = vmatprep.subr.mxu0 0.0
        %2166 = vmatpush1.msra.mxu0 %v1715
        %2167 = vmatprep.subr.mxu0 0.0
        %2168 = vmatpush1.msra.mxu0 %v1727
        %2169 = vmatprep.subr.mxu0 0.0
        %2170 = vmatpush1.msra.mxu0 %v1739
        %2171 = vmatprep.subr.mxu0 0.0
        %2172 = vmatpush1.msra.mxu0 %v1751
        %2173 = vmatprep.subr.mxu0 0.0
        %2174 = vmatpush1.msra.mxu0 %v1763
        %2175 = vmatprep.subr.mxu0 0.0
        %2176 = vmatpush1.msra.mxu0 %v1775
        %2177 = vmatprep.subr.mxu0 0.0
        %2178 = vmatpush1.msra.mxu0 %v1787
        %2179 = vmatprep.subr.mxu0 0.0
        %2180 = vmatpush1.msra.mxu0 %v1799
        %2181 = vmatprep.subr.mxu0 0.0
        %2182 = vmatpush1.msra.mxu0 %v1811
        %2183 = vmatprep.subr.mxu0 0.0
        %2184 = vmatpush1.msra.mxu0 %v1823
        %2185 = vmatprep.subr.mxu0 0.0
        %2186 = vmatpush1.msra.mxu0 %v1835
        %2187 = vmatprep.subr.mxu0 0.0
        %2188 = vmatpush1.msra.mxu0 %v1655
        %2189 = vmatprep.subr.mxu0 0.0
        %2190 = vmatpush1.msra.mxu0 %v1847
        %2191 = vmatprep.subr.mxu0 0.0
        %2192 = vmatpush1.msra.mxu0 %v1859
        %2193 = vmatprep.subr.mxu0 0.0
        %2194 = vmatpush1.msra.mxu0 %v1871
        %2195 = vmatprep.subr.mxu0 0.0
        %2196 = vmatpush1.msra.mxu0 %v1883
        %2197 = vmatprep.subr.mxu0 0.0
        %2198 = vmatpush1.msra.mxu0 %v1895
        %2199 = vmatprep.subr.mxu0 0.0
        %2200 = vmatpush1.msra.mxu0 %v1907
        %2201 = vmatprep.subr.mxu0 0.0
        %2202 = vmatpush1.msra.mxu0 %v1919
        %2203 = vmatprep.subr.mxu0 0.0
        %2204 = vmatpush1.msra.mxu0 %v1931
        %2205 = vmatprep.subr.mxu0 0.0
        %2206 = vmatpush1.msra.mxu0 %v1943
        %2207 = vmatprep.subr.mxu0 0.0
        %2208 = vmatpush1.msra.mxu0 %v1955
        %2209 = vmatprep.subr.mxu0 0.0
        %2210 = vmatpush1.msra.mxu0 %v1967
        %2211 = vmatprep.subr.mxu0 0.0
        %2212 = vmatpush1.msra.mxu0 %v1979
        %2213 = vmatprep.subr.mxu0 0.0
        %2214 = vmatpush1.msra.mxu0 %v1991
        %2215 = vmatprep.subr.mxu0 0.0
        %2216 = vmatpush1.msra.mxu0 %v2003
        %2217 = vmatprep.subr.mxu0 0.0
        %2218 = vmatpush1.msra.mxu0 %v2015
        %2219 = vmatprep.subr.mxu0 0.0
        %2220 = vmatpush1.msra.mxu0 0.0
        %2221 = vmatprep.mubr.f32.mxu0 %v988
        %2222 = vmatmul.mubr.f32.gmra.mrb[0].mxu0 %v432
        %v2223 = vpop.f32.mrb[0].mxu0
        %v2224 = vadd.f32 %v984, %v2223
        %v2225 = vpop.f32.mrb[0].mxu0
        %2226 = vdwg.mxu0
        %2227 = vmatprep.subr.mxu0 0.0
        %2228 = vmatpush1.msra.mxu0 %v1668
        %2229 = vmatprep.subr.mxu0 0.0
        %2230 = vmatpush1.msra.mxu0 %v1680
        %2231 = vmatprep.subr.mxu0 0.0
        %2232 = vmatpush1.msra.mxu0 %v1692
        %2233 = vmatprep.subr.mxu0 0.0
        %2234 = vmatpush1.msra.mxu0 %v1704
        %2235 = vmatprep.subr.mxu0 0.0
        %2236 = vmatpush1.msra.mxu0 %v1716
        %2237 = vmatprep.subr.mxu0 0.0
        %2238 = vmatpush1.msra.mxu0 %v1728
        %2239 = vmatprep.subr.mxu0 0.0
        %2240 = vmatpush1.msra.mxu0 %v1740
        %2241 = vmatprep.subr.mxu0 0.0
        %2242 = vmatpush1.msra.mxu0 %v1752
        %2243 = vmatprep.subr.mxu0 0.0
        %2244 = vmatpush1.msra.mxu0 %v1764
        %2245 = vmatprep.subr.mxu0 0.0
        %2246 = vmatpush1.msra.mxu0 %v1776
        %2247 = vmatprep.subr.mxu0 0.0
        %2248 = vmatpush1.msra.mxu0 %v1788
        %2249 = vmatprep.subr.mxu0 0.0
        %2250 = vmatpush1.msra.mxu0 %v1800
        %2251 = vmatprep.subr.mxu0 0.0
        %2252 = vmatpush1.msra.mxu0 %v1812
        %2253 = vmatprep.subr.mxu0 0.0
        %2254 = vmatpush1.msra.mxu0 %v1824
        %2255 = vmatprep.subr.mxu0 0.0
        %2256 = vmatpush1.msra.mxu0 %v1836
        %2257 = vmatprep.subr.mxu0 0.0
        %2258 = vmatpush1.msra.mxu0 %v1656
        %2259 = vmatprep.subr.mxu0 0.0
        %2260 = vmatpush1.msra.mxu0 %v1848
        %2261 = vmatprep.subr.mxu0 0.0
        %2262 = vmatpush1.msra.mxu0 %v1860
        %2263 = vmatprep.subr.mxu0 0.0
        %2264 = vmatpush1.msra.mxu0 %v1872
        %2265 = vmatprep.subr.mxu0 0.0
        %2266 = vmatpush1.msra.mxu0 %v1884
        %2267 = vmatprep.subr.mxu0 0.0
        %2268 = vmatpush1.msra.mxu0 %v1896
        %2269 = vmatprep.subr.mxu0 0.0
        %2270 = vmatpush1.msra.mxu0 %v1908
        %2271 = vmatprep.subr.mxu0 0.0
        %2272 = vmatpush1.msra.mxu0 %v1920
        %2273 = vmatprep.subr.mxu0 0.0
        %2274 = vmatpush1.msra.mxu0 %v1932
        %2275 = vmatprep.subr.mxu0 0.0
        %2276 = vmatpush1.msra.mxu0 %v1944
        %2277 = vmatprep.subr.mxu0 0.0
        %2278 = vmatpush1.msra.mxu0 %v1956
        %2279 = vmatprep.subr.mxu0 0.0
        %2280 = vmatpush1.msra.mxu0 %v1968
        %2281 = vmatprep.subr.mxu0 0.0
        %2282 = vmatpush1.msra.mxu0 %v1980
        %2283 = vmatprep.subr.mxu0 0.0
        %2284 = vmatpush1.msra.mxu0 %v1992
        %2285 = vmatprep.subr.mxu0 0.0
        %2286 = vmatpush1.msra.mxu0 %v2004
        %2287 = vmatprep.subr.mxu0 0.0
        %2288 = vmatpush1.msra.mxu0 %v2016
        %2289 = vmatprep.subr.mxu0 0.0
        %2290 = vmatpush1.msra.mxu0 0.0
        %2291 = vmatprep.mubr.f32.mxu0 %v988
        %2292 = vmatmul.mubr.f32.gmra.mrb[0].mxu0 %v432
        %v2293 = vpop.f32.mrb[0].mxu0
        %v2294 = vadd.f32 %v984, %v2293
        %v2295 = vpop.f32.mrb[0].mxu0
        %2296 = vdwg.mxu0
        %2297 = vadd.xlane.f32.xlu0 %v2084
        %v2298 = vpop.xlane.xlu0 %2297
        %2299 = vadd.xlane.f32.xlu0 %v2154
        %v2300 = vpop.xlane.xlu0 %2299
        %2301 = vadd.xlane.f32.xlu0 %v2224
        %v2302 = vpop.xlane.xlu0 %2301
        %2303 = vadd.xlane.f32.xlu0 %v2294
        %v2304 = vpop.xlane.xlu0 %2303
        %v2305 = vmul.f32 %v2298, %v492
        %v2306 = vmul.f32 %v2300, %v492
        %v2307 = vmul.f32 %v2302, %v492
        %v2308 = vmul.f32 %v2304, %v492
        %v2309 = vmul.f32 %v2084, %v2084
        %v2310 = vmul.f32 %v2154, %v2154
        %v2311 = vmul.f32 %v2224, %v2224
        %v2312 = vmul.f32 %v2294, %v2294
        %2313 = vadd.xlane.f32.xlu0 %v2309
        %v2314 = vpop.xlane.xlu0 %2313
        %2315 = vadd.xlane.f32.xlu0 %v2310
        %v2316 = vpop.xlane.xlu0 %2315
        %2317 = vadd.xlane.f32.xlu0 %v2311
        %v2318 = vpop.xlane.xlu0 %2317
        %2319 = vadd.xlane.f32.xlu0 %v2312
        %v2320 = vpop.xlane.xlu0 %2319
        %v2321 = vmul.f32 %v2314, %v492
        %v2322 = vmul.f32 %v2316, %v492
        %v2323 = vmul.f32 %v2318, %v492
        %v2324 = vmul.f32 %v2320, %v492
        %v2325 = vmul.f32 %v2305, %v2305
        %v2326 = vmul.f32 %v2306, %v2306
        %v2327 = vmul.f32 %v2307, %v2307
        %v2328 = vmul.f32 %v2308, %v2308
        %v2329 = vsub.f32 %v2321, %v2325
        %v2330 = vsub.f32 %v2322, %v2326
        %v2331 = vsub.f32 %v2323, %v2327
        %v2332 = vsub.f32 %v2324, %v2328
        %v2333 = vmax.f32 %v2329, 0.0
        %v2334 = vmax.f32 %v2330, 0.0
        %v2335 = vmax.f32 %v2331, 0.0
        %v2336 = vmax.f32 %v2332, 0.0
        %v2337 = vsub.f32 %v2084, %v2305
        %v2338 = vsub.f32 %v2154, %v2306
        %v2339 = vsub.f32 %v2224, %v2307
        %v2340 = vsub.f32 %v2294, %v2308
        %v2341 = vadd.f32 %v2333, 1e-05
        %v2342 = vadd.f32 %v2334, 1e-05
        %v2343 = vadd.f32 %v2335, 1e-05
        %v2344 = vadd.f32 %v2336, 1e-05
        %v2345 = vrsqrt.pop %v2341
        %v2346 = vrsqrt.pop %v2342
        %v2347 = vrsqrt.pop %v2343
        %v2348 = vrsqrt.pop %v2344
        %v2349 = vmul.f32 %v2337, %v2345
        %v2350 = vmul.f32 %v2338, %v2346
        %v2351 = vmul.f32 %v2339, %v2347
        %v2352 = vmul.f32 %v2340, %v2348
        %v2353 = vmul.f32 %v2349, %v1330
        %v2354 = vmul.f32 %v2350, %v1330
        %v2355 = vmul.f32 %v2351, %v1330
        %v2356 = vmul.f32 %v2352, %v1330
        %v2357 = vadd.f32 %v2353, %v1340
        %v2358 = vadd.f32 %v2354, %v1340
        %v2359 = vadd.f32 %v2355, %v1340
        %v2360 = vadd.f32 %v2356, %v1340
        %v2361 = vmul.f32 %v2357, %v2357
        %v2362 = vmul.f32 %v2358, %v2358
        %v2363 = vmul.f32 %v2359, %v2359
        %v2364 = vmul.f32 %v2360, %v2360
        %v2365 = vmul.f32 %v2357, %v2361
        %v2366 = vmul.f32 %v2358, %v2362
        %v2367 = vmul.f32 %v2359, %v2363
        %v2368 = vmul.f32 %v2360, %v2364
        %v2369 = vmul.f32 %v2365, 0.044715
        %v2370 = vmul.f32 %v2366, 0.044715
        %v2371 = vmul.f32 %v2367, 0.044715
        %v2372 = vmul.f32 %v2368, 0.044715
        %v2373 = vadd.f32 %v2357, %v2369
        %v2374 = vadd.f32 %v2358, %v2370
        %v2375 = vadd.f32 %v2359, %v2371
        %v2376 = vadd.f32 %v2360, %v2372
        %v2377 = vmul.f32 %v2373, 0.7978846
        %v2378 = vmul.f32 %v2374, 0.7978846
        %v2379 = vmul.f32 %v2375, 0.7978846
        %v2380 = vmul.f32 %v2376, 0.7978846
        %v2381 = vtanh.pop %v2377
        %v2382 = vtanh.pop %v2378
        %v2383 = vtanh.pop %v2379
        %v2384 = vtanh.pop %v2380
        %v2385 = vadd.f32 %v2381, 1.0
        %v2386 = vadd.f32 %v2382, 1.0
        %v2387 = vadd.f32 %v2383, 1.0
        %v2388 = vadd.f32 %v2384, 1.0
        %v2389 = vmul.f32 %v2385, 0.5
        %v2390 = vmul.f32 %v2386, 0.5
        %v2391 = vmul.f32 %v2387, 0.5
        %v2392 = vmul.f32 %v2388, 0.5
        %v2393 = vmul.f32 %v2357, %v2389
        %v2394 = vmul.f32 %v2358, %v2390
        %v2395 = vmul.f32 %v2359, %v2391
        %v2396 = vmul.f32 %v2360, %v2392
        %v2397 = vadd.f32 %v1589, %v2393
        %v2398 = vadd.f32 %v1590, %v2394
        %v2399 = vadd.f32 %v1591, %v2395
        %v2400 = vadd.f32 %v1592, %v2396
        %2401 = vadd.xlane.f32.xlu0 %v2397
        %v2402 = vpop.xlane.xlu0 %2401
        %2403 = vadd.xlane.f32.xlu0 %v2398
        %v2404 = vpop.xlane.xlu0 %2403
        %2405 = vadd.xlane.f32.xlu0 %v2399
        %v2406 = vpop.xlane.xlu0 %2405
        %2407 = vadd.xlane.f32.xlu0 %v2400
        %v2408 = vpop.xlane.xlu0 %2407
        %v2409 = vmul.f32 %v2402, %v492
        %v2410 = vmul.f32 %v2404, %v492
        %v2411 = vmul.f32 %v2406, %v492
        %v2412 = vmul.f32 %v2408, %v492
        %v2413 = vmul.f32 %v2397, %v2397
        %v2414 = vmul.f32 %v2398, %v2398
        %v2415 = vmul.f32 %v2399, %v2399
        %v2416 = vmul.f32 %v2400, %v2400
        %2417 = vadd.xlane.f32.xlu0 %v2413
        %v2418 = vpop.xlane.xlu0 %2417
        %2419 = vadd.xlane.f32.xlu0 %v2414
        %v2420 = vpop.xlane.xlu0 %2419
        %2421 = vadd.xlane.f32.xlu0 %v2415
        %v2422 = vpop.xlane.xlu0 %2421
        %2423 = vadd.xlane.f32.xlu0 %v2416
        %v2424 = vpop.xlane.xlu0 %2423
        %v2425 = vmul.f32 %v2418, %v492
        %v2426 = vmul.f32 %v2420, %v492
        %v2427 = vmul.f32 %v2422, %v492
        %v2428 = vmul.f32 %v2424, %v492
        %v2429 = vmul.f32 %v2409, %v2409
        %v2430 = vmul.f32 %v2410, %v2410
        %v2431 = vmul.f32 %v2411, %v2411
        %v2432 = vmul.f32 %v2412, %v2412
        %v2433 = vsub.f32 %v2425, %v2429
        %v2434 = vsub.f32 %v2426, %v2430
        %v2435 = vsub.f32 %v2427, %v2431
        %v2436 = vsub.f32 %v2428, %v2432
        %v2437 = vmax.f32 %v2433, 0.0
        %v2438 = vmax.f32 %v2434, 0.0
        %v2439 = vmax.f32 %v2435, 0.0
        %v2440 = vmax.f32 %v2436, 0.0
        %v2441 = vsub.f32 %v2397, %v2409
        %v2442 = vsub.f32 %v2398, %v2410
        %v2443 = vsub.f32 %v2399, %v2411
        %v2444 = vsub.f32 %v2400, %v2412
        %v2445 = vadd.f32 %v2437, 1e-05
        %v2446 = vadd.f32 %v2438, 1e-05
        %v2447 = vadd.f32 %v2439, 1e-05
        %v2448 = vadd.f32 %v2440, 1e-05
        %v2449 = vrsqrt.pop %v2445
        %v2450 = vrsqrt.pop %v2446
        %v2451 = vrsqrt.pop %v2447
        %v2452 = vrsqrt.pop %v2448
        %v2453 = vmul.f32 %v2441, %v2449
        %v2454 = vmul.f32 %v2442, %v2450
        %v2455 = vmul.f32 %v2443, %v2451
        %v2456 = vmul.f32 %v2444, %v2452
        %v2457 = vmul.f32 %v2453, %v1446
        %v2458 = vmul.f32 %v2454, %v1446
        %v2459 = vmul.f32 %v2455, %v1446
        %v2460 = vmul.f32 %v2456, %v1446
        %v2461 = vadd.f32 %v2457, %v1456
        %v2462 = vadd.f32 %v2458, %v1456
        %v2463 = vadd.f32 %v2459, %v1456
        %v2464 = vadd.f32 %v2460, %v1456
        %2465 = vmatprep.subr.mxu0 0.0
        %2466 = vmatpush1.msra.mxu0 %v435
        %2467 = vmatprep.subr.mxu0 0.0
        %2468 = vmatpush1.msra.mxu0 %v436
        %2469 = vmatprep.subr.mxu0 0.0
        %2470 = vmatpush1.msra.mxu0 %v437
        %2471 = vmatprep.subr.mxu0 0.0
        %2472 = vmatpush1.msra.mxu0 %v438
        %2473 = vmatprep.subr.mxu0 0.0
        %2474 = vmatpush1.msra.mxu0 %v439
        %2475 = vmatprep.subr.mxu0 0.0
        %2476 = vmatpush1.msra.mxu0 %v440
        %2477 = vmatprep.subr.mxu0 0.0
        %2478 = vmatpush1.msra.mxu0 %v441
        %2479 = vmatprep.subr.mxu0 0.0
        %2480 = vmatpush1.msra.mxu0 %v442
        %2481 = vmatprep.subr.mxu0 0.0
        %2482 = vmatpush1.msra.mxu0 %v443
        %2483 = vmatprep.subr.mxu0 0.0
        %2484 = vmatpush1.msra.mxu0 %v444
        %2485 = vmatprep.subr.mxu0 0.0
        %2486 = vmatpush1.msra.mxu0 %v445
        %2487 = vmatprep.subr.mxu0 0.0
        %2488 = vmatpush1.msra.mxu0 %v446
        %2489 = vmatprep.subr.mxu0 0.0
        %2490 = vmatpush1.msra.mxu0 %v447
        %2491 = vmatprep.subr.mxu0 0.0
        %2492 = vmatpush1.msra.mxu0 %v448
        %2493 = vmatprep.subr.mxu0 0.0
        %2494 = vmatpush1.msra.mxu0 %v449
        %2495 = vmatprep.subr.mxu0 0.0
        %2496 = vmatpush1.msra.mxu0 %v450
        %2497 = vmatprep.subr.mxu0 0.0
        %2498 = vmatpush1.msra.mxu0 0.0
        %2499 = vmatprep.subr.mxu0 0.0
        %2500 = vmatpush1.msra.mxu0 0.0
        %2501 = vmatprep.subr.mxu0 0.0
        %2502 = vmatpush1.msra.mxu0 0.0
        %2503 = vmatprep.subr.mxu0 0.0
        %2504 = vmatpush1.msra.mxu0 0.0
        %2505 = vmatprep.subr.mxu0 0.0
        %2506 = vmatpush1.msra.mxu0 0.0
        %2507 = vmatprep.subr.mxu0 0.0
        %2508 = vmatpush1.msra.mxu0 0.0
        %2509 = vmatprep.subr.mxu0 0.0
        %2510 = vmatpush1.msra.mxu0 0.0
        %2511 = vmatprep.subr.mxu0 0.0
        %2512 = vmatpush1.msra.mxu0 0.0
        %2513 = vmatprep.subr.mxu0 0.0
        %2514 = vmatpush1.msra.mxu0 0.0
        %2515 = vmatprep.subr.mxu0 0.0
        %2516 = vmatpush1.msra.mxu0 0.0
        %2517 = vmatprep.subr.mxu0 0.0
        %2518 = vmatpush1.msra.mxu0 0.0
        %2519 = vmatprep.subr.mxu0 0.0
        %2520 = vmatpush1.msra.mxu0 0.0
        %2521 = vmatprep.subr.mxu0 0.0
        %2522 = vmatpush1.msra.mxu0 0.0
        %2523 = vmatprep.subr.mxu0 0.0
        %2524 = vmatpush1.msra.mxu0 0.0
        %2525 = vmatprep.subr.mxu0 0.0
        %2526 = vmatpush1.msra.mxu0 0.0
        %2527 = vmatprep.subr.mxu0 0.0
        %2528 = vmatpush1.msra.mxu0 0.0
        %2529 = vmatprep.mubr.f32.mxu0 0.0
        %2530 = vmatmul.mubr.f32.gmra.mrb[0].mxu0 %v2461
        %v2531 = vpop.f32.mrb[0].mxu0
        %v2532 = vadd.f32 %v1466, %v2531
        %v2533 = vpop.f32.mrb[0].mxu0
        %2534 = vmatprep.mubr.f32.mxu0 0.0
        %2535 = vmatmul.mubr.f32.gmra.mrb[0].mxu0 %v2462
        %v2536 = vpop.f32.mrb[0].mxu0
        %v2537 = vadd.f32 %v1466, %v2536
        %v2538 = vpop.f32.mrb[0].mxu0
        %2539 = vmatprep.mubr.f32.mxu0 0.0
        %2540 = vmatmul.mubr.f32.gmra.mrb[0].mxu0 %v2463
        %v2541 = vpop.f32.mrb[0].mxu0
        %v2542 = vadd.f32 %v1466, %v2541
        %v2543 = vpop.f32.mrb[0].mxu0
        %2544 = vmatprep.mubr.f32.mxu0 0.0
        %2545 = vmatmul.mubr.f32.gmra.mrb[0].mxu0 %v2464
        %v2546 = vpop.f32.mrb[0].mxu0
        %v2547 = vadd.f32 %v1466, %v2546
        %v2548 = vpop.f32.mrb[0].mxu0
        %2549 = vdwg.mxu0
        %v2550 = vmul.f32 %v2532, %v2532
        %v2551 = vmul.f32 %v2537, %v2537
        %v2552 = vmul.f32 %v2542, %v2542
        %v2553 = vmul.f32 %v2547, %v2547
        %v2554 = vmul.f32 %v2532, %v2550
        %v2555 = vmul.f32 %v2537, %v2551
        %v2556 = vmul.f32 %v2542, %v2552
        %v2557 = vmul.f32 %v2547, %v2553
        %v2558 = vmul.f32 %v2554, 0.044715
        %v2559 = vmul.f32 %v2555, 0.044715
        %v2560 = vmul.f32 %v2556, 0.044715
        %v2561 = vmul.f32 %v2557, 0.044715
        %v2562 = vadd.f32 %v2532, %v2558
        %v2563 = vadd.f32 %v2537, %v2559
        %v2564 = vadd.f32 %v2542, %v2560
        %v2565 = vadd.f32 %v2547, %v2561
        %v2566 = vmul.f32 %v2562, 0.7978846
        %v2567 = vmul.f32 %v2563, 0.7978846
        %v2568 = vmul.f32 %v2564, 0.7978846
        %v2569 = vmul.f32 %v2565, 0.7978846
        %v2570 = vtanh.pop %v2566
        %v2571 = vtanh.pop %v2567
        %v2572 = vtanh.pop %v2568
        %v2573 = vtanh.pop %v2569
        %v2574 = vadd.f32 %v2570, 1.0
        %v2575 = vadd.f32 %v2571, 1.0
        %v2576 = vadd.f32 %v2572, 1.0
        %v2577 = vadd.f32 %v2573, 1.0
        %v2578 = vmul.f32 %v2574, 0.5
        %v2579 = vmul.f32 %v2575, 0.5
        %v2580 = vmul.f32 %v2576, 0.5
        %v2581 = vmul.f32 %v2577, 0.5
        %v2582 = vmul.f32 %v2532, %v2578
        %v2583 = vmul.f32 %v2537, %v2579
        %v2584 = vmul.f32 %v2542, %v2580
        %v2585 = vmul.f32 %v2547, %v2581
        %v2586 = vadd.f32 %v2397, %v2582
        %v2587 = vadd.f32 %v2398, %v2583
        %v2588 = vadd.f32 %v2399, %v2584
        %v2589 = vadd.f32 %v2400, %v2585
        %2590 = vst [vmem:[%s419] sm:$0xff] %v2586
        %2591 = vst [vmem:[%s419 + $0x8] sm:$0xff] %v2587
        %2592 = vst [vmem:[%s419 + $0x10] sm:$0xff] %v2588
        %2593 = vst [vmem:[%s419 + $0x18] sm:$0xff] %v2589
        %s2594 = sand.u32 %s273, 1
        %s2595 = scalar_lea.sflag [#allocation4], %s2594
        %s2596 = sand.u32 %s273, 1
        %s2597 = smul.addr %s2596, 32
        %s2598 = scalar_lea.vmem [#allocation7], %s2597
        // Predicated region
        $region73: #{tpu_custom_call.1} parent=63 // pred_check
          %p2599 = pneg %p283
        $region74: #{tpu_custom_call.1} parent=63 // pred_check_branch
          %2601 = sbr.rel (%p2599) target = $region76
        $region75: #{tpu_custom_call.1} parent=63 // pred_region
          %s2602 = smul.u32 4, %s29
          %s2604 = ssub.s32 512, 512
          %2605 = vsyncadd %s2595, %s2604
          %s2606 = smul.addr %s2602, 128
          %s2607 = scalar_lea.hbm %s11, %s2606
          %s2608 = sshll.u32 %s2598, 4
          %s2609 = int_to_ptr.vmem [resolvable:$true] %s2608
          %2614 = dma.vmem_to_hbm [thread:$0]  %s2609, 512, %s2607, %s2595, 128, 128, 8
        $region76: #{tpu_custom_call.1} parent=63 // pred_fallthru
          _
      $region64: #{tpu_custom_call.1} parent=5 // pred_fallthru
        _
      %p2615 = scmp.le.s32.totalorder 2, %s24
      // Predicated region
      $region77: #{tpu_custom_call.1} parent=5 // pred_check
        %p2616 = pneg %p2615
      $region78: #{tpu_custom_call.1} parent=5 // pred_check_branch
        %2618 = sbr.rel (%p2616) target = $region80
      $region79: #{tpu_custom_call.1} parent=5 // pred_region
        %s2619 = ssub.s32 %s24, 2
        // Predicated region
        $region81: #{tpu_custom_call.1} parent=79 // pred_check
          %p2620 = pneg %p289
        $region82: #{tpu_custom_call.1} parent=79 // pred_check_branch
          %2622 = sbr.rel (%p2620) target = $region84
        $region83: #{tpu_custom_call.1} parent=79 // pred_region
          %s2623 = sand.u32 %s274, 1
          %s2624 = scalar_lea.sflag [#allocation4], %s2623
          %s2625 = sand.u32 %s274, 1
          %s2626 = smul.addr %s2625, 32
          %s2627 = scalar_lea.vmem [#allocation7], %s2626
          %2628 = dma.done %s2624, 512
        $region84: #{tpu_custom_call.1} parent=79 // pred_fallthru
          _
      $region80: #{tpu_custom_call.1} parent=5 // pred_fallthru
        _
    $region6: #{tpu_custom_call.1} parent=1 // loop_footer
      %s28 = sadd.s32 1, %s24
    $region7: #{tpu_custom_call.1} parent=1 // loop_footer_branch
      %23 = sbr.rel target = $region3
    $region8: #{tpu_custom_call.1} parent=1 // loop_exit
      _
    %2629 = vsyncpa [#allocation3], 1
    %s2630 = scalar_lea.sflag [#allocation3], 1
    %2631 = vsyncpa %s2630, 1
    %2632 = vsyncpa [#allocation6], 1
    %2633 = vsyncpa [#allocation4], 1
    %s2634 = scalar_lea.sflag [#allocation4], 1
    %2635 = vsyncpa %s2634, 1

</llo_original>
